<compile_context>
chip_gen: v7x
topology: tpu7x:2x2x1
jax: 0.10.0
libtpu: 0.0.40
codegen_flags: <defaults>
</compile_context>

<pallas_src>
import functools
from math import sqrt

import jax
import jax.numpy as jnp
from jax.experimental import pallas as pl
from jax.experimental.pallas import tpu as pltpu

LEAK = 0.2
EPS = 1e-8


def _progen_kernel(z_ref, lin_w_ref, lin_b_ref, conv_w_ref, conv_b_ref,
                   rgb_w_ref, rgb_b_ref, out_ref, acc_ref,
                   *, he_lin, he_conv, he_rgb, C, CP, TB):
    """One grid step = TB batch elements; all intermediates stay in vregs / VMEM.

    Row layout of every (M, 128) tensor: row = s*TB + b (s = oh*4 + ow spatial
    index, b = batch element within the block); lane = channel (C real channels,
    zero-padded to CP=128 so every tile is lane-dense and every store unmasked).
    """
    M = 16 * TB
    w_dtype = lin_w_ref.dtype          # f32 by default; bf16 if weights pre-cast

    def mm(a, w):
        return jnp.dot(a.astype(w_dtype), w, preferred_element_type=jnp.float32)

    # ---- Stage 1: PixelNorm(z) -> EqualizedLinear (*he) -> LeakyReLU ----------
    z = z_ref[...]                                                  # (TB, z_dim)
    zn = z * jax.lax.rsqrt(jnp.mean(z * z, axis=-1, keepdims=True) + EPS)

    # 16 column slices of the (s, c)-ordered linear weight -> one lane-dense
    # (TB, 128) feature tile per spatial position, kept in registers (no stores).
    parts = []
    for s in range(16):
        w_s = lin_w_ref[:, pl.ds(s * CP, CP)]                       # (z_dim, CP)
        b_s = lin_b_ref[:, pl.ds(s * CP, CP)]                       # (1, CP)
        hs = (mm(zn, w_s) + b_s) * he_lin                           # (TB, CP)
        parts.append(jnp.where(hs >= 0, hs, LEAK * hs))

    # ---- Stage 2: 3x3 EqualizedConv2d as 9 accumulating tap matmuls -----------
    # For tap (dh, dw) the (M, CP) LHS is the feature map with every spatial
    # row-group replaced by its (oh+dh, ow+dw) neighbour (zero tile at borders).
    # The "shift" is a pure re-ordering of register-resident tiles, so there is
    # no scatter, no im2col materialization and no masked sub-tile store.
    zero_part = jnp.zeros((TB, CP), jnp.float32)
    for t in range(9):
        kh, kw = divmod(t, 3)
        dh, dw = kh - 1, kw - 1
        pieces = []
        for s in range(16):                          # output spatial position
            oh, ow = divmod(s, 4)
            ih, iw = oh + dh, ow + dw
            pieces.append(parts[ih * 4 + iw]
                          if (0 <= ih < 4 and 0 <= iw < 4) else zero_part)
        src = jnp.concatenate(pieces, axis=0)                        # (M, CP)
        contrib = mm(src, conv_w_ref[pl.ds(t * CP, CP), :])          # (M, CP) f32
        if t == 0:
            acc_ref[...] = contrib
        else:
            acc_ref[...] += contrib

    y = (acc_ref[...] + conv_b_ref[...]) * he_conv
    y = jnp.where(y >= 0, y, LEAK * y)
    # PixelNorm over channels: padded lanes are exactly zero, so the channel mean
    # is the 128-lane sum divided by the *real* channel count C.
    y = y * jax.lax.rsqrt(jnp.sum(y * y, axis=-1, keepdims=True) * (1.0 / C) + EPS)

    # ---- Stage 3: toRGB (1x1 EqualizedConv2d); lane-dense full-tile store -----
    out_ref[...] = (mm(y, rgb_w_ref[...]) + rgb_b_ref[...]) * he_rgb


def init_progenerator_params(key, z_dim, channel_depth, out_channels):
    """PyTorch-layout parameters matching EqualizedLayer init: weights ~ N(0,1),
    biases = 0, He const = sqrt(2 / prod(weight.shape[1:])) applied at runtime."""
    C = channel_depth
    k1, k2, k3 = jax.random.split(key, 3)
    return {
        "z_dim": z_dim, "C": C, "out_channels": out_channels,
        "lin_w": jax.random.normal(k1, (16 * C, z_dim), jnp.float32),  # nn.Linear (out, in)
        "lin_b": jnp.zeros((16 * C,), jnp.float32),
        "lin_he": sqrt(2.0 / z_dim),
        "conv_w": jax.random.normal(k2, (C, C, 3, 3), jnp.float32),    # nn.Conv2d (O, I, kH, kW)
        "conv_b": jnp.zeros((C,), jnp.float32),
        "conv_he": sqrt(2.0 / (C * 3 * 3)),
        "rgb_w": jax.random.normal(k3, (out_channels, C, 1, 1), jnp.float32),
        "rgb_b": jnp.zeros((out_channels,), jnp.float32),
        "rgb_he": sqrt(2.0 / C),
    }


def prepare_kernel_params(params, mm_dtype=jnp.float32):
    """One-time layout transforms (init cost, not per-forward):
      * linear weight cols permuted from torch's view(B, C, 4, 4) order (c, s) to
        (s, c) and channel-padded to 128 lanes;
      * 3x3 conv weight to tap-major (kh*3+kw, cin) rows, cin/cout padded to 128;
      * toRGB weight/bias padded to 128 K-rows / 128 output lanes;
      * weights stored once in mm_dtype (f32 default = exact PyTorch numerics;
        bf16 halves resident weight VMEM and skips per-step VPU casts at large C).
    """
    C, out_ch, z_dim = params["C"], params["out_channels"], params["z_dim"]
    CP = ((C + 127) // 128) * 128           # channel lanes (padded)
    RGBL = ((out_ch + 127) // 128) * 128    # output lanes (padded)

    lin_w = params["lin_w"].T.reshape(z_dim, C, 16).transpose(0, 2, 1)      # (z, s, c)
    lin_w = jnp.pad(lin_w, ((0, 0), (0, 0), (0, CP - C))).reshape(z_dim, 16 * CP)
    lin_b = params["lin_b"].reshape(C, 16).T                                 # (s, c)
    lin_b = jnp.pad(lin_b, ((0, 0), (0, CP - C))).reshape(1, 16 * CP)

    conv_w = params["conv_w"].transpose(2, 3, 1, 0)                          # (kh, kw, ci, co)
    conv_w = jnp.pad(conv_w, ((0, 0), (0, 0), (0, CP - C), (0, CP - C)))
    conv_w = conv_w.reshape(9 * CP, CP)                                      # row = t*CP + ci
    conv_b = jnp.pad(params["conv_b"], (0, CP - C)).reshape(1, CP)

    rgb_w = params["rgb_w"][:, :, 0, 0].T                                    # (ci, co)
    rgb_w = jnp.pad(rgb_w, ((0, CP - C), (0, RGBL - out_ch)))
    rgb_b = jnp.pad(params["rgb_b"], (0, RGBL - out_ch)).reshape(1, RGBL)

    return {
        "lin_w": lin_w.astype(mm_dtype), "lin_b": lin_b.astype(jnp.float32),
        "conv_w": conv_w.astype(mm_dtype), "conv_b": conv_b.astype(jnp.float32),
        "rgb_w": rgb_w.astype(mm_dtype), "rgb_b": rgb_b.astype(jnp.float32),
        "lin_he": float(params["lin_he"]), "conv_he": float(params["conv_he"]),
        "rgb_he": float(params["rgb_he"]),
        "C": C, "z_dim": z_dim, "out_channels": out_ch, "CP": CP, "RGBL": RGBL,
    }


def progenerator_forward(kp, z, *, block_batch=8, core_parallel=False):
    """ProGenerator.forward at default depth/alpha. Returns NCHW (B, out_ch, 4, 4).

    block_batch (TB) batch elements are processed per grid step so the conv /
    toRGB matmuls have M = 16*TB rows: TB=8 fills a 128-row (v5e) MXU pass,
    TB=16/32 fills the 256-row MXU on v6e/v7x.  core_parallel=True switches the
    batch grid axis to pltpu.CORE_PARALLEL so the two v7x TensorCores split blocks.
    """
    B = z.shape[0]
    z2 = z.reshape(B, -1).astype(jnp.float32)           # x.view(-1, features)
    C, z_dim = kp["C"], kp["z_dim"]
    out_ch, CP, RGBL = kp["out_channels"], kp["CP"], kp["RGBL"]
    assert z2.shape[1] == z_dim

    TB = max(8, 8 * (int(block_batch) // 8))            # keep (8, 128) sublane alignment
    Bp = ((B + TB - 1) // TB) * TB
    if Bp != B:
        z2 = jnp.pad(z2, ((0, Bp - B), (0, 0)))         # padded batch rows sliced off below
    nblk = Bp // TB
    M = 16 * TB

    kernel = functools.partial(
        _progen_kernel, he_lin=kp["lin_he"], he_conv=kp["conv_he"],
        he_rgb=kp["rgb_he"], C=C, CP=CP, TB=TB)

    batch_sem = pltpu.CORE_PARALLEL if core_parallel else "parallel"

    out_flat = pl.pallas_call(
        kernel,
        out_shape=jax.ShapeDtypeStruct((nblk * M, RGBL), jnp.float32),
        grid=(nblk,),
        in_specs=[
            pl.BlockSpec((TB, z_dim), lambda i: (i, 0)),        # z block
            pl.BlockSpec((z_dim, 16 * CP), lambda i: (0, 0)),   # lin_w (resident, (s,c) cols)
            pl.BlockSpec((1, 16 * CP), lambda i: (0, 0)),       # lin_b
            pl.BlockSpec((9 * CP, CP), lambda i: (0, 0)),       # conv_w (tap-major rows)
            pl.BlockSpec((1, CP), lambda i: (0, 0)),            # conv_b
            pl.BlockSpec((CP, RGBL), lambda i: (0, 0)),         # rgb_w (lane-padded)
            pl.BlockSpec((1, RGBL), lambda i: (0, 0)),          # rgb_b
        ],
        out_specs=pl.BlockSpec((M, RGBL), lambda i: (i, 0)),
        scratch_shapes=[pltpu.VMEM((M, CP), jnp.float32)],      # f32 conv accumulator
        compiler_params=pltpu.CompilerParams(
            dimension_semantics=(batch_sem,)),
    )(z2, kp["lin_w"], kp["lin_b"], kp["conv_w"], kp["conv_b"],
      kp["rgb_w"], kp["rgb_b"])

    # Decode the (spatial-major, lane-padded) kernel layout back to NCHW.  Tiny
    # layout glue (Bp*16*out_ch floats) handled by XLA outside the kernel.
    out = out_flat.reshape(nblk, 16, TB, RGBL).transpose(0, 2, 1, 3)  # (blk, b, s, co)
    out = out.reshape(Bp, 4, 4, RGBL)[:B, :, :, :out_ch]
    return jnp.transpose(out, (0, 3, 1, 2))                           # (B, out_ch, 4, 4)


def _reference_forward(params, z):
    """Pure-XLA reference of ProGenerator.forward at default depth/alpha."""
    C, out_ch = params["C"], params["out_channels"]
    hp = jax.lax.Precision.HIGHEST
    x = z * jax.lax.rsqrt(jnp.mean(z * z, axis=1, keepdims=True) + EPS)
    x = (jnp.matmul(x, params["lin_w"].T, precision=hp) + params["lin_b"]) * params["lin_he"]
    x = jnp.where(x >= 0, x, LEAK * x)
    x = x.reshape(-1, C, 4, 4)
    y = jax.lax.conv_general_dilated(
        x, params["conv_w"], window_strides=(1, 1), padding=((1, 1), (1, 1)),
        dimension_numbers=("NCHW", "OIHW", "NCHW"), precision=hp)
    y = (y + params["conv_b"].reshape(1, C, 1, 1)) * params["conv_he"]
    y = jnp.where(y >= 0, y, LEAK * y)
    y = y * jax.lax.rsqrt(jnp.mean(y * y, axis=1, keepdims=True) + EPS)
    r = jax.lax.conv_general_dilated(
        y, params["rgb_w"], window_strides=(1, 1), padding=((0, 0), (0, 0)),
        dimension_numbers=("NCHW", "OIHW", "NCHW"), precision=hp)
    return (r + params["rgb_b"].reshape(1, out_ch, 1, 1)) * params["rgb_he"]


if __name__ == "__main__":
    key = jax.random.PRNGKey(0)
    z_dim, channel_depth, out_channels, batch = 32, 32, 3, 16
    pkey, zkey = jax.random.split(key)

    params = init_progenerator_params(pkey, z_dim, channel_depth, out_channels)
    kparams = prepare_kernel_params(params)             # f32 weights: exact PyTorch numerics
    z = jax.random.normal(zkey, (batch, z_dim), jnp.float32)

    out = progenerator_forward(kparams, z, block_batch=8)   # grid of 2 batch blocks
    out = jax.block_until_ready(out)
    assert out.shape == (batch, out_channels, 4, 4), out.shape
    assert out.dtype == jnp.float32

    ref = _reference_forward(params, z)
    err = float(jnp.max(jnp.abs(out - ref)))
    assert err < 5e-2, f"kernel/reference mismatch: max abs err = {err}"
    print("KERNEL_OK")
</pallas_src>

<mosaic_0001>
module attributes {stable_mosaic.version = 11 : i64} {
  func.func @_progen_kernel(%arg0: i32, %arg1: memref<8x32xf32, #tpu.memory_space<vmem>>, %arg2: memref<32x2048xf32, #tpu.memory_space<vmem>>, %arg3: memref<1x2048xf32, #tpu.memory_space<vmem>>, %arg4: memref<1152x128xf32, #tpu.memory_space<vmem>>, %arg5: memref<1x128xf32, #tpu.memory_space<vmem>>, %arg6: memref<128x128xf32, #tpu.memory_space<vmem>>, %arg7: memref<1x128xf32, #tpu.memory_space<vmem>>, %arg8: memref<128x128xf32, #tpu.memory_space<vmem>>, %arg9: memref<128x128xf32, #tpu.memory_space<vmem>>) attributes {dimension_semantics = [#tpu.dimension_semantics<parallel>], iteration_bounds = array<i64: 2>, scalar_prefetch = 0 : i64, scratch_operands = 1 : i64, tpu.core_type = #tpu.core_type<tc>, window_params = [{transform_indices = @transform_0, window_bounds = array<i64: 8, 32>}, {pipeline_mode = #tpu.pipeline_mode<synchronous>, transform_indices = @transform_1, window_bounds = array<i64: 32, 2048>}, {pipeline_mode = #tpu.pipeline_mode<synchronous>, transform_indices = @transform_2, window_bounds = array<i64: 1, 2048>}, {pipeline_mode = #tpu.pipeline_mode<synchronous>, transform_indices = @transform_3, window_bounds = array<i64: 1152, 128>}, {pipeline_mode = #tpu.pipeline_mode<synchronous>, transform_indices = @transform_4, window_bounds = array<i64: 1, 128>}, {pipeline_mode = #tpu.pipeline_mode<synchronous>, transform_indices = @transform_5, window_bounds = array<i64: 128, 128>}, {pipeline_mode = #tpu.pipeline_mode<synchronous>, transform_indices = @transform_6, window_bounds = array<i64: 1, 128>}, {transform_indices = @transform_7, window_bounds = array<i64: 128, 128>}]} {
    %c0 = arith.constant 0 : index
    %c0_0 = arith.constant 0 : index
    %0 = vector.load %arg1[%c0, %c0_0] : memref<8x32xf32, #tpu.memory_space<vmem>>, vector<8x32xf32>
    %1 = arith.mulf %0, %0 : vector<8x32xf32>
    %cst = arith.constant dense<0.000000e+00> : vector<8xf32>
    %2 = vector.multi_reduction <add>, %1, %cst [1] : vector<8x32xf32> to vector<8xf32>
    %3 = vector.shape_cast %2 : vector<8xf32> to vector<8x1xf32>
    %cst_1 = arith.constant 3.200000e+01 : f32
    %4 = vector.broadcast %cst_1 : f32 to vector<8x1xf32>
    %5 = arith.divf %3, %4 : vector<8x1xf32>
    %cst_2 = arith.constant 9.99999993E-9 : f32
    %6 = vector.broadcast %cst_2 : f32 to vector<8x1xf32>
    %7 = arith.addf %5, %6 : vector<8x1xf32>
    %8 = math.rsqrt %7 : vector<8x1xf32>
    %9 = vector.broadcast %8 : vector<8x1xf32> to vector<8x32xf32>
    %10 = arith.mulf %0, %9 : vector<8x32xf32>
    %c0_3 = arith.constant 0 : index
    %c0_4 = arith.constant 0 : index
    %11 = vector.load %arg2[%c0_3, %c0_4] : memref<32x2048xf32, #tpu.memory_space<vmem>>, vector<32x128xf32>
    %c0_5 = arith.constant 0 : index
    %c0_6 = arith.constant 0 : index
    %12 = vector.load %arg3[%c0_5, %c0_6] : memref<1x2048xf32, #tpu.memory_space<vmem>>, vector<1x128xf32>
    %cst_7 = arith.constant dense<0.000000e+00> : vector<8x128xf32>
    %13 = tpu.matmul %10, %11, %cst_7 {dimension_numbers = #tpu.dot_dimension_numbers<[1], [0], [0], [1], [0, 0, 1, 1], [], []>} : vector<8x32xf32>, vector<32x128xf32>, vector<8x128xf32> -> vector<8x128xf32>
    %14 = vector.broadcast %12 : vector<1x128xf32> to vector<8x128xf32>
    %15 = arith.addf %13, %14 : vector<8x128xf32>
    %cst_8 = arith.constant 2.500000e-01 : f32
    %16 = vector.broadcast %cst_8 : f32 to vector<8x128xf32>
    %17 = arith.mulf %15, %16 : vector<8x128xf32>
    %cst_9 = arith.constant 0.000000e+00 : f32
    %18 = vector.broadcast %cst_9 : f32 to vector<8x128xf32>
    %19 = arith.cmpf oge, %17, %18 : vector<8x128xf32>
    %cst_10 = arith.constant 2.000000e-01 : f32
    %20 = vector.broadcast %cst_10 : f32 to vector<8x128xf32>
    %21 = arith.mulf %20, %17 : vector<8x128xf32>
    %22 = arith.select %19, %17, %21 : vector<8x128xi1>, vector<8x128xf32>
    %c0_11 = arith.constant 0 : index
    %c128 = arith.constant 128 : index
    %23 = vector.load %arg2[%c0_11, %c128] : memref<32x2048xf32, #tpu.memory_space<vmem>>, vector<32x128xf32>
    %c0_12 = arith.constant 0 : index
    %c128_13 = arith.constant 128 : index
    %24 = vector.load %arg3[%c0_12, %c128_13] : memref<1x2048xf32, #tpu.memory_space<vmem>>, vector<1x128xf32>
    %cst_14 = arith.constant dense<0.000000e+00> : vector<8x128xf32>
    %25 = tpu.matmul %10, %23, %cst_14 {dimension_numbers = #tpu.dot_dimension_numbers<[1], [0], [0], [1], [0, 0, 1, 1], [], []>} : vector<8x32xf32>, vector<32x128xf32>, vector<8x128xf32> -> vector<8x128xf32>
    %26 = vector.broadcast %24 : vector<1x128xf32> to vector<8x128xf32>
    %27 = arith.addf %25, %26 : vector<8x128xf32>
    %cst_15 = arith.constant 2.500000e-01 : f32
    %28 = vector.broadcast %cst_15 : f32 to vector<8x128xf32>
    %29 = arith.mulf %27, %28 : vector<8x128xf32>
    %cst_16 = arith.constant 0.000000e+00 : f32
    %30 = vector.broadcast %cst_16 : f32 to vector<8x128xf32>
    %31 = arith.cmpf oge, %29, %30 : vector<8x128xf32>
    %cst_17 = arith.constant 2.000000e-01 : f32
    %32 = vector.broadcast %cst_17 : f32 to vector<8x128xf32>
    %33 = arith.mulf %32, %29 : vector<8x128xf32>
    %34 = arith.select %31, %29, %33 : vector<8x128xi1>, vector<8x128xf32>
    %c0_18 = arith.constant 0 : index
    %c256 = arith.constant 256 : index
    %35 = vector.load %arg2[%c0_18, %c256] : memref<32x2048xf32, #tpu.memory_space<vmem>>, vector<32x128xf32>
    %c0_19 = arith.constant 0 : index
    %c256_20 = arith.constant 256 : index
    %36 = vector.load %arg3[%c0_19, %c256_20] : memref<1x2048xf32, #tpu.memory_space<vmem>>, vector<1x128xf32>
    %cst_21 = arith.constant dense<0.000000e+00> : vector<8x128xf32>
    %37 = tpu.matmul %10, %35, %cst_21 {dimension_numbers = #tpu.dot_dimension_numbers<[1], [0], [0], [1], [0, 0, 1, 1], [], []>} : vector<8x32xf32>, vector<32x128xf32>, vector<8x128xf32> -> vector<8x128xf32>
    %38 = vector.broadcast %36 : vector<1x128xf32> to vector<8x128xf32>
    %39 = arith.addf %37, %38 : vector<8x128xf32>
    %cst_22 = arith.constant 2.500000e-01 : f32
    %40 = vector.broadcast %cst_22 : f32 to vector<8x128xf32>
    %41 = arith.mulf %39, %40 : vector<8x128xf32>
    %cst_23 = arith.constant 0.000000e+00 : f32
    %42 = vector.broadcast %cst_23 : f32 to vector<8x128xf32>
    %43 = arith.cmpf oge, %41, %42 : vector<8x128xf32>
    %cst_24 = arith.constant 2.000000e-01 : f32
    %44 = vector.broadcast %cst_24 : f32 to vector<8x128xf32>
    %45 = arith.mulf %44, %41 : vector<8x128xf32>
    %46 = arith.select %43, %41, %45 : vector<8x128xi1>, vector<8x128xf32>
    %c0_25 = arith.constant 0 : index
    %c384 = arith.constant 384 : index
    %47 = vector.load %arg2[%c0_25, %c384] : memref<32x2048xf32, #tpu.memory_space<vmem>>, vector<32x128xf32>
    %c0_26 = arith.constant 0 : index
    %c384_27 = arith.constant 384 : index
    %48 = vector.load %arg3[%c0_26, %c384_27] : memref<1x2048xf32, #tpu.memory_space<vmem>>, vector<1x128xf32>
    %cst_28 = arith.constant dense<0.000000e+00> : vector<8x128xf32>
    %49 = tpu.matmul %10, %47, %cst_28 {dimension_numbers = #tpu.dot_dimension_numbers<[1], [0], [0], [1], [0, 0, 1, 1], [], []>} : vector<8x32xf32>, vector<32x128xf32>, vector<8x128xf32> -> vector<8x128xf32>
    %50 = vector.broadcast %48 : vector<1x128xf32> to vector<8x128xf32>
    %51 = arith.addf %49, %50 : vector<8x128xf32>
    %cst_29 = arith.constant 2.500000e-01 : f32
    %52 = vector.broadcast %cst_29 : f32 to vector<8x128xf32>
    %53 = arith.mulf %51, %52 : vector<8x128xf32>
    %cst_30 = arith.constant 0.000000e+00 : f32
    %54 = vector.broadcast %cst_30 : f32 to vector<8x128xf32>
    %55 = arith.cmpf oge, %53, %54 : vector<8x128xf32>
    %cst_31 = arith.constant 2.000000e-01 : f32
    %56 = vector.broadcast %cst_31 : f32 to vector<8x128xf32>
    %57 = arith.mulf %56, %53 : vector<8x128xf32>
    %58 = arith.select %55, %53, %57 : vector<8x128xi1>, vector<8x128xf32>
    %c0_32 = arith.constant 0 : index
    %c512 = arith.constant 512 : index
    %59 = vector.load %arg2[%c0_32, %c512] : memref<32x2048xf32, #tpu.memory_space<vmem>>, vector<32x128xf32>
    %c0_33 = arith.constant 0 : index
    %c512_34 = arith.constant 512 : index
    %60 = vector.load %arg3[%c0_33, %c512_34] : memref<1x2048xf32, #tpu.memory_space<vmem>>, vector<1x128xf32>
    %cst_35 = arith.constant dense<0.000000e+00> : vector<8x128xf32>
    %61 = tpu.matmul %10, %59, %cst_35 {dimension_numbers = #tpu.dot_dimension_numbers<[1], [0], [0], [1], [0, 0, 1, 1], [], []>} : vector<8x32xf32>, vector<32x128xf32>, vector<8x128xf32> -> vector<8x128xf32>
    %62 = vector.broadcast %60 : vector<1x128xf32> to vector<8x128xf32>
    %63 = arith.addf %61, %62 : vector<8x128xf32>
    %cst_36 = arith.constant 2.500000e-01 : f32
    %64 = vector.broadcast %cst_36 : f32 to vector<8x128xf32>
    %65 = arith.mulf %63, %64 : vector<8x128xf32>
    %cst_37 = arith.constant 0.000000e+00 : f32
    %66 = vector.broadcast %cst_37 : f32 to vector<8x128xf32>
    %67 = arith.cmpf oge, %65, %66 : vector<8x128xf32>
    %cst_38 = arith.constant 2.000000e-01 : f32
    %68 = vector.broadcast %cst_38 : f32 to vector<8x128xf32>
    %69 = arith.mulf %68, %65 : vector<8x128xf32>
    %70 = arith.select %67, %65, %69 : vector<8x128xi1>, vector<8x128xf32>
    %c0_39 = arith.constant 0 : index
    %c640 = arith.constant 640 : index
    %71 = vector.load %arg2[%c0_39, %c640] : memref<32x2048xf32, #tpu.memory_space<vmem>>, vector<32x128xf32>
    %c0_40 = arith.constant 0 : index
    %c640_41 = arith.constant 640 : index
    %72 = vector.load %arg3[%c0_40, %c640_41] : memref<1x2048xf32, #tpu.memory_space<vmem>>, vector<1x128xf32>
    %cst_42 = arith.constant dense<0.000000e+00> : vector<8x128xf32>
    %73 = tpu.matmul %10, %71, %cst_42 {dimension_numbers = #tpu.dot_dimension_numbers<[1], [0], [0], [1], [0, 0, 1, 1], [], []>} : vector<8x32xf32>, vector<32x128xf32>, vector<8x128xf32> -> vector<8x128xf32>
    %74 = vector.broadcast %72 : vector<1x128xf32> to vector<8x128xf32>
    %75 = arith.addf %73, %74 : vector<8x128xf32>
    %cst_43 = arith.constant 2.500000e-01 : f32
    %76 = vector.broadcast %cst_43 : f32 to vector<8x128xf32>
    %77 = arith.mulf %75, %76 : vector<8x128xf32>
    %cst_44 = arith.constant 0.000000e+00 : f32
    %78 = vector.broadcast %cst_44 : f32 to vector<8x128xf32>
    %79 = arith.cmpf oge, %77, %78 : vector<8x128xf32>
    %cst_45 = arith.constant 2.000000e-01 : f32
    %80 = vector.broadcast %cst_45 : f32 to vector<8x128xf32>
    %81 = arith.mulf %80, %77 : vector<8x128xf32>
    %82 = arith.select %79, %77, %81 : vector<8x128xi1>, vector<8x128xf32>
    %c0_46 = arith.constant 0 : index
    %c768 = arith.constant 768 : index
    %83 = vector.load %arg2[%c0_46, %c768] : memref<32x2048xf32, #tpu.memory_space<vmem>>, vector<32x128xf32>
    %c0_47 = arith.constant 0 : index
    %c768_48 = arith.constant 768 : index
    %84 = vector.load %arg3[%c0_47, %c768_48] : memref<1x2048xf32, #tpu.memory_space<vmem>>, vector<1x128xf32>
    %cst_49 = arith.constant dense<0.000000e+00> : vector<8x128xf32>
    %85 = tpu.matmul %10, %83, %cst_49 {dimension_numbers = #tpu.dot_dimension_numbers<[1], [0], [0], [1], [0, 0, 1, 1], [], []>} : vector<8x32xf32>, vector<32x128xf32>, vector<8x128xf32> -> vector<8x128xf32>
    %86 = vector.broadcast %84 : vector<1x128xf32> to vector<8x128xf32>
    %87 = arith.addf %85, %86 : vector<8x128xf32>
    %cst_50 = arith.constant 2.500000e-01 : f32
    %88 = vector.broadcast %cst_50 : f32 to vector<8x128xf32>
    %89 = arith.mulf %87, %88 : vector<8x128xf32>
    %cst_51 = arith.constant 0.000000e+00 : f32
    %90 = vector.broadcast %cst_51 : f32 to vector<8x128xf32>
    %91 = arith.cmpf oge, %89, %90 : vector<8x128xf32>
    %cst_52 = arith.constant 2.000000e-01 : f32
    %92 = vector.broadcast %cst_52 : f32 to vector<8x128xf32>
    %93 = arith.mulf %92, %89 : vector<8x128xf32>
    %94 = arith.select %91, %89, %93 : vector<8x128xi1>, vector<8x128xf32>
    %c0_53 = arith.constant 0 : index
    %c896 = arith.constant 896 : index
    %95 = vector.load %arg2[%c0_53, %c896] : memref<32x2048xf32, #tpu.memory_space<vmem>>, vector<32x128xf32>
    %c0_54 = arith.constant 0 : index
    %c896_55 = arith.constant 896 : index
    %96 = vector.load %arg3[%c0_54, %c896_55] : memref<1x2048xf32, #tpu.memory_space<vmem>>, vector<1x128xf32>
    %cst_56 = arith.constant dense<0.000000e+00> : vector<8x128xf32>
    %97 = tpu.matmul %10, %95, %cst_56 {dimension_numbers = #tpu.dot_dimension_numbers<[1], [0], [0], [1], [0, 0, 1, 1], [], []>} : vector<8x32xf32>, vector<32x128xf32>, vector<8x128xf32> -> vector<8x128xf32>
    %98 = vector.broadcast %96 : vector<1x128xf32> to vector<8x128xf32>
    %99 = arith.addf %97, %98 : vector<8x128xf32>
    %cst_57 = arith.constant 2.500000e-01 : f32
    %100 = vector.broadcast %cst_57 : f32 to vector<8x128xf32>
    %101 = arith.mulf %99, %100 : vector<8x128xf32>
    %cst_58 = arith.constant 0.000000e+00 : f32
    %102 = vector.broadcast %cst_58 : f32 to vector<8x128xf32>
    %103 = arith.cmpf oge, %101, %102 : vector<8x128xf32>
    %cst_59 = arith.constant 2.000000e-01 : f32
    %104 = vector.broadcast %cst_59 : f32 to vector<8x128xf32>
    %105 = arith.mulf %104, %101 : vector<8x128xf32>
    %106 = arith.select %103, %101, %105 : vector<8x128xi1>, vector<8x128xf32>
    %c0_60 = arith.constant 0 : index
    %c1024 = arith.constant 1024 : index
    %107 = vector.load %arg2[%c0_60, %c1024] : memref<32x2048xf32, #tpu.memory_space<vmem>>, vector<32x128xf32>
    %c0_61 = arith.constant 0 : index
    %c1024_62 = arith.constant 1024 : index
    %108 = vector.load %arg3[%c0_61, %c1024_62] : memref<1x2048xf32, #tpu.memory_space<vmem>>, vector<1x128xf32>
    %cst_63 = arith.constant dense<0.000000e+00> : vector<8x128xf32>
    %109 = tpu.matmul %10, %107, %cst_63 {dimension_numbers = #tpu.dot_dimension_numbers<[1], [0], [0], [1], [0, 0, 1, 1], [], []>} : vector<8x32xf32>, vector<32x128xf32>, vector<8x128xf32> -> vector<8x128xf32>
    %110 = vector.broadcast %108 : vector<1x128xf32> to vector<8x128xf32>
    %111 = arith.addf %109, %110 : vector<8x128xf32>
    %cst_64 = arith.constant 2.500000e-01 : f32
    %112 = vector.broadcast %cst_64 : f32 to vector<8x128xf32>
    %113 = arith.mulf %111, %112 : vector<8x128xf32>
    %cst_65 = arith.constant 0.000000e+00 : f32
    %114 = vector.broadcast %cst_65 : f32 to vector<8x128xf32>
    %115 = arith.cmpf oge, %113, %114 : vector<8x128xf32>
    %cst_66 = arith.constant 2.000000e-01 : f32
    %116 = vector.broadcast %cst_66 : f32 to vector<8x128xf32>
    %117 = arith.mulf %116, %113 : vector<8x128xf32>
    %118 = arith.select %115, %113, %117 : vector<8x128xi1>, vector<8x128xf32>
    %c0_67 = arith.constant 0 : index
    %c1152 = arith.constant 1152 : index
    %119 = vector.load %arg2[%c0_67, %c1152] : memref<32x2048xf32, #tpu.memory_space<vmem>>, vector<32x128xf32>
    %c0_68 = arith.constant 0 : index
    %c1152_69 = arith.constant 1152 : index
    %120 = vector.load %arg3[%c0_68, %c1152_69] : memref<1x2048xf32, #tpu.memory_space<vmem>>, vector<1x128xf32>
    %cst_70 = arith.constant dense<0.000000e+00> : vector<8x128xf32>
    %121 = tpu.matmul %10, %119, %cst_70 {dimension_numbers = #tpu.dot_dimension_numbers<[1], [0], [0], [1], [0, 0, 1, 1], [], []>} : vector<8x32xf32>, vector<32x128xf32>, vector<8x128xf32> -> vector<8x128xf32>
    %122 = vector.broadcast %120 : vector<1x128xf32> to vector<8x128xf32>
    %123 = arith.addf %121, %122 : vector<8x128xf32>
    %cst_71 = arith.constant 2.500000e-01 : f32
    %124 = vector.broadcast %cst_71 : f32 to vector<8x128xf32>
    %125 = arith.mulf %123, %124 : vector<8x128xf32>
    %cst_72 = arith.constant 0.000000e+00 : f32
    %126 = vector.broadcast %cst_72 : f32 to vector<8x128xf32>
    %127 = arith.cmpf oge, %125, %126 : vector<8x128xf32>
    %cst_73 = arith.constant 2.000000e-01 : f32
    %128 = vector.broadcast %cst_73 : f32 to vector<8x128xf32>
    %129 = arith.mulf %128, %125 : vector<8x128xf32>
    %130 = arith.select %127, %125, %129 : vector<8x128xi1>, vector<8x128xf32>
    %c0_74 = arith.constant 0 : index
    %c1280 = arith.constant 1280 : index
    %131 = vector.load %arg2[%c0_74, %c1280] : memref<32x2048xf32, #tpu.memory_space<vmem>>, vector<32x128xf32>
    %c0_75 = arith.constant 0 : index
    %c1280_76 = arith.constant 1280 : index
    %132 = vector.load %arg3[%c0_75, %c1280_76] : memref<1x2048xf32, #tpu.memory_space<vmem>>, vector<1x128xf32>
    %cst_77 = arith.constant dense<0.000000e+00> : vector<8x128xf32>
    %133 = tpu.matmul %10, %131, %cst_77 {dimension_numbers = #tpu.dot_dimension_numbers<[1], [0], [0], [1], [0, 0, 1, 1], [], []>} : vector<8x32xf32>, vector<32x128xf32>, vector<8x128xf32> -> vector<8x128xf32>
    %134 = vector.broadcast %132 : vector<1x128xf32> to vector<8x128xf32>
    %135 = arith.addf %133, %134 : vector<8x128xf32>
    %cst_78 = arith.constant 2.500000e-01 : f32
    %136 = vector.broadcast %cst_78 : f32 to vector<8x128xf32>
    %137 = arith.mulf %135, %136 : vector<8x128xf32>
    %cst_79 = arith.constant 0.000000e+00 : f32
    %138 = vector.broadcast %cst_79 : f32 to vector<8x128xf32>
    %139 = arith.cmpf oge, %137, %138 : vector<8x128xf32>
    %cst_80 = arith.constant 2.000000e-01 : f32
    %140 = vector.broadcast %cst_80 : f32 to vector<8x128xf32>
    %141 = arith.mulf %140, %137 : vector<8x128xf32>
    %142 = arith.select %139, %137, %141 : vector<8x128xi1>, vector<8x128xf32>
    %c0_81 = arith.constant 0 : index
    %c1408 = arith.constant 1408 : index
    %143 = vector.load %arg2[%c0_81, %c1408] : memref<32x2048xf32, #tpu.memory_space<vmem>>, vector<32x128xf32>
    %c0_82 = arith.constant 0 : index
    %c1408_83 = arith.constant 1408 : index
    %144 = vector.load %arg3[%c0_82, %c1408_83] : memref<1x2048xf32, #tpu.memory_space<vmem>>, vector<1x128xf32>
    %cst_84 = arith.constant dense<0.000000e+00> : vector<8x128xf32>
    %145 = tpu.matmul %10, %143, %cst_84 {dimension_numbers = #tpu.dot_dimension_numbers<[1], [0], [0], [1], [0, 0, 1, 1], [], []>} : vector<8x32xf32>, vector<32x128xf32>, vector<8x128xf32> -> vector<8x128xf32>
    %146 = vector.broadcast %144 : vector<1x128xf32> to vector<8x128xf32>
    %147 = arith.addf %145, %146 : vector<8x128xf32>
    %cst_85 = arith.constant 2.500000e-01 : f32
    %148 = vector.broadcast %cst_85 : f32 to vector<8x128xf32>
    %149 = arith.mulf %147, %148 : vector<8x128xf32>
    %cst_86 = arith.constant 0.000000e+00 : f32
    %150 = vector.broadcast %cst_86 : f32 to vector<8x128xf32>
    %151 = arith.cmpf oge, %149, %150 : vector<8x128xf32>
    %cst_87 = arith.constant 2.000000e-01 : f32
    %152 = vector.broadcast %cst_87 : f32 to vector<8x128xf32>
    %153 = arith.mulf %152, %149 : vector<8x128xf32>
    %154 = arith.select %151, %149, %153 : vector<8x128xi1>, vector<8x128xf32>
    %c0_88 = arith.constant 0 : index
    %c1536 = arith.constant 1536 : index
    %155 = vector.load %arg2[%c0_88, %c1536] : memref<32x2048xf32, #tpu.memory_space<vmem>>, vector<32x128xf32>
    %c0_89 = arith.constant 0 : index
    %c1536_90 = arith.constant 1536 : index
    %156 = vector.load %arg3[%c0_89, %c1536_90] : memref<1x2048xf32, #tpu.memory_space<vmem>>, vector<1x128xf32>
    %cst_91 = arith.constant dense<0.000000e+00> : vector<8x128xf32>
    %157 = tpu.matmul %10, %155, %cst_91 {dimension_numbers = #tpu.dot_dimension_numbers<[1], [0], [0], [1], [0, 0, 1, 1], [], []>} : vector<8x32xf32>, vector<32x128xf32>, vector<8x128xf32> -> vector<8x128xf32>
    %158 = vector.broadcast %156 : vector<1x128xf32> to vector<8x128xf32>
    %159 = arith.addf %157, %158 : vector<8x128xf32>
    %cst_92 = arith.constant 2.500000e-01 : f32
    %160 = vector.broadcast %cst_92 : f32 to vector<8x128xf32>
    %161 = arith.mulf %159, %160 : vector<8x128xf32>
    %cst_93 = arith.constant 0.000000e+00 : f32
    %162 = vector.broadcast %cst_93 : f32 to vector<8x128xf32>
    %163 = arith.cmpf oge, %161, %162 : vector<8x128xf32>
    %cst_94 = arith.constant 2.000000e-01 : f32
    %164 = vector.broadcast %cst_94 : f32 to vector<8x128xf32>
    %165 = arith.mulf %164, %161 : vector<8x128xf32>
    %166 = arith.select %163, %161, %165 : vector<8x128xi1>, vector<8x128xf32>
    %c0_95 = arith.constant 0 : index
    %c1664 = arith.constant 1664 : index
    %167 = vector.load %arg2[%c0_95, %c1664] : memref<32x2048xf32, #tpu.memory_space<vmem>>, vector<32x128xf32>
    %c0_96 = arith.constant 0 : index
    %c1664_97 = arith.constant 1664 : index
    %168 = vector.load %arg3[%c0_96, %c1664_97] : memref<1x2048xf32, #tpu.memory_space<vmem>>, vector<1x128xf32>
    %cst_98 = arith.constant dense<0.000000e+00> : vector<8x128xf32>
    %169 = tpu.matmul %10, %167, %cst_98 {dimension_numbers = #tpu.dot_dimension_numbers<[1], [0], [0], [1], [0, 0, 1, 1], [], []>} : vector<8x32xf32>, vector<32x128xf32>, vector<8x128xf32> -> vector<8x128xf32>
    %170 = vector.broadcast %168 : vector<1x128xf32> to vector<8x128xf32>
    %171 = arith.addf %169, %170 : vector<8x128xf32>
    %cst_99 = arith.constant 2.500000e-01 : f32
    %172 = vector.broadcast %cst_99 : f32 to vector<8x128xf32>
    %173 = arith.mulf %171, %172 : vector<8x128xf32>
    %cst_100 = arith.constant 0.000000e+00 : f32
    %174 = vector.broadcast %cst_100 : f32 to vector<8x128xf32>
    %175 = arith.cmpf oge, %173, %174 : vector<8x128xf32>
    %cst_101 = arith.constant 2.000000e-01 : f32
    %176 = vector.broadcast %cst_101 : f32 to vector<8x128xf32>
    %177 = arith.mulf %176, %173 : vector<8x128xf32>
    %178 = arith.select %175, %173, %177 : vector<8x128xi1>, vector<8x128xf32>
    %c0_102 = arith.constant 0 : index
    %c1792 = arith.constant 1792 : index
    %179 = vector.load %arg2[%c0_102, %c1792] : memref<32x2048xf32, #tpu.memory_space<vmem>>, vector<32x128xf32>
    %c0_103 = arith.constant 0 : index
    %c1792_104 = arith.constant 1792 : index
    %180 = vector.load %arg3[%c0_103, %c1792_104] : memref<1x2048xf32, #tpu.memory_space<vmem>>, vector<1x128xf32>
    %cst_105 = arith.constant dense<0.000000e+00> : vector<8x128xf32>
    %181 = tpu.matmul %10, %179, %cst_105 {dimension_numbers = #tpu.dot_dimension_numbers<[1], [0], [0], [1], [0, 0, 1, 1], [], []>} : vector<8x32xf32>, vector<32x128xf32>, vector<8x128xf32> -> vector<8x128xf32>
    %182 = vector.broadcast %180 : vector<1x128xf32> to vector<8x128xf32>
    %183 = arith.addf %181, %182 : vector<8x128xf32>
    %cst_106 = arith.constant 2.500000e-01 : f32
    %184 = vector.broadcast %cst_106 : f32 to vector<8x128xf32>
    %185 = arith.mulf %183, %184 : vector<8x128xf32>
    %cst_107 = arith.constant 0.000000e+00 : f32
    %186 = vector.broadcast %cst_107 : f32 to vector<8x128xf32>
    %187 = arith.cmpf oge, %185, %186 : vector<8x128xf32>
    %cst_108 = arith.constant 2.000000e-01 : f32
    %188 = vector.broadcast %cst_108 : f32 to vector<8x128xf32>
    %189 = arith.mulf %188, %185 : vector<8x128xf32>
    %190 = arith.select %187, %185, %189 : vector<8x128xi1>, vector<8x128xf32>
    %c0_109 = arith.constant 0 : index
    %c1920 = arith.constant 1920 : index
    %191 = vector.load %arg2[%c0_109, %c1920] : memref<32x2048xf32, #tpu.memory_space<vmem>>, vector<32x128xf32>
    %c0_110 = arith.constant 0 : index
    %c1920_111 = arith.constant 1920 : index
    %192 = vector.load %arg3[%c0_110, %c1920_111] : memref<1x2048xf32, #tpu.memory_space<vmem>>, vector<1x128xf32>
    %cst_112 = arith.constant dense<0.000000e+00> : vector<8x128xf32>
    %193 = tpu.matmul %10, %191, %cst_112 {dimension_numbers = #tpu.dot_dimension_numbers<[1], [0], [0], [1], [0, 0, 1, 1], [], []>} : vector<8x32xf32>, vector<32x128xf32>, vector<8x128xf32> -> vector<8x128xf32>
    %194 = vector.broadcast %192 : vector<1x128xf32> to vector<8x128xf32>
    %195 = arith.addf %193, %194 : vector<8x128xf32>
    %cst_113 = arith.constant 2.500000e-01 : f32
    %196 = vector.broadcast %cst_113 : f32 to vector<8x128xf32>
    %197 = arith.mulf %195, %196 : vector<8x128xf32>
    %cst_114 = arith.constant 0.000000e+00 : f32
    %198 = vector.broadcast %cst_114 : f32 to vector<8x128xf32>
    %199 = arith.cmpf oge, %197, %198 : vector<8x128xf32>
    %cst_115 = arith.constant 2.000000e-01 : f32
    %200 = vector.broadcast %cst_115 : f32 to vector<8x128xf32>
    %201 = arith.mulf %200, %197 : vector<8x128xf32>
    %202 = arith.select %199, %197, %201 : vector<8x128xi1>, vector<8x128xf32>
    %cst_116 = arith.constant 0.000000e+00 : f32
    %203 = vector.broadcast %cst_116 : f32 to vector<8x128xf32>
    %204 = tpu.concatenate %203, %203, %203, %203, %203, %22, %34, %46, %203, %70, %82, %94, %203, %118, %130, %142 in 0 : vector<8x128xf32>, vector<8x128xf32>, vector<8x128xf32>, vector<8x128xf32>, vector<8x128xf32>, vector<8x128xf32>, vector<8x128xf32>, vector<8x128xf32>, vector<8x128xf32>, vector<8x128xf32>, vector<8x128xf32>, vector<8x128xf32>, vector<8x128xf32>, vector<8x128xf32>, vector<8x128xf32>, vector<8x128xf32> -> vector<128x128xf32>
    %c0_117 = arith.constant 0 : index
    %c0_118 = arith.constant 0 : index
    %205 = vector.load %arg4[%c0_117, %c0_118] : memref<1152x128xf32, #tpu.memory_space<vmem>>, vector<128x128xf32>
    %cst_119 = arith.constant dense<0.000000e+00> : vector<128x128xf32>
    %206 = tpu.matmul %204, %205, %cst_119 {dimension_numbers = #tpu.dot_dimension_numbers<[1], [0], [0], [1], [0, 0, 1, 1], [], []>} : vector<128x128xf32>, vector<128x128xf32>, vector<128x128xf32> -> vector<128x128xf32>
    %c0_120 = arith.constant 0 : index
    %c0_121 = arith.constant 0 : index
    %207 = vector.load %arg9[%c0_120, %c0_121] : memref<128x128xf32, #tpu.memory_space<vmem>>, vector<128x128xf32>
    tpu.vector_store %arg9[%c0_120, %c0_121], %206 {strides = array<i32>} : memref<128x128xf32, #tpu.memory_space<vmem>>, vector<128x128xf32>,
    %208 = tpu.concatenate %203, %203, %203, %203, %22, %34, %46, %58, %70, %82, %94, %106, %118, %130, %142, %154 in 0 : vector<8x128xf32>, vector<8x128xf32>, vector<8x128xf32>, vector<8x128xf32>, vector<8x128xf32>, vector<8x128xf32>, vector<8x128xf32>, vector<8x128xf32>, vector<8x128xf32>, vector<8x128xf32>, vector<8x128xf32>, vector<8x128xf32>, vector<8x128xf32>, vector<8x128xf32>, vector<8x128xf32>, vector<8x128xf32> -> vector<128x128xf32>
    %c128_122 = arith.constant 128 : index
    %c0_123 = arith.constant 0 : index
    %209 = vector.load %arg4[%c128_122, %c0_123] : memref<1152x128xf32, #tpu.memory_space<vmem>>, vector<128x128xf32>
    %cst_124 = arith.constant dense<0.000000e+00> : vector<128x128xf32>
    %210 = tpu.matmul %208, %209, %cst_124 {dimension_numbers = #tpu.dot_dimension_numbers<[1], [0], [0], [1], [0, 0, 1, 1], [], []>} : vector<128x128xf32>, vector<128x128xf32>, vector<128x128xf32> -> vector<128x128xf32>
    %c0_125 = arith.constant 0 : index
    %c0_126 = arith.constant 0 : index
    %211 = vector.load %arg9[%c0_125, %c0_126] : memref<128x128xf32, #tpu.memory_space<vmem>>, vector<128x128xf32>
    %212 = arith.addf %211, %210 : vector<128x128xf32>
    %c0_127 = arith.constant 0 : index
    %c0_128 = arith.constant 0 : index
    %213 = vector.load %arg9[%c0_127, %c0_128] : memref<128x128xf32, #tpu.memory_space<vmem>>, vector<128x128xf32>
    tpu.vector_store %arg9[%c0_127, %c0_128], %212 {strides = array<i32>} : memref<128x128xf32, #tpu.memory_space<vmem>>, vector<128x128xf32>,
    %214 = tpu.concatenate %203, %203, %203, %203, %34, %46, %58, %203, %82, %94, %106, %203, %130, %142, %154, %203 in 0 : vector<8x128xf32>, vector<8x128xf32>, vector<8x128xf32>, vector<8x128xf32>, vector<8x128xf32>, vector<8x128xf32>, vector<8x128xf32>, vector<8x128xf32>, vector<8x128xf32>, vector<8x128xf32>, vector<8x128xf32>, vector<8x128xf32>, vector<8x128xf32>, vector<8x128xf32>, vector<8x128xf32>, vector<8x128xf32> -> vector<128x128xf32>
    %c256_129 = arith.constant 256 : index
    %c0_130 = arith.constant 0 : index
    %215 = vector.load %arg4[%c256_129, %c0_130] : memref<1152x128xf32, #tpu.memory_space<vmem>>, vector<128x128xf32>
    %cst_131 = arith.constant dense<0.000000e+00> : vector<128x128xf32>
    %216 = tpu.matmul %214, %215, %cst_131 {dimension_numbers = #tpu.dot_dimension_numbers<[1], [0], [0], [1], [0, 0, 1, 1], [], []>} : vector<128x128xf32>, vector<128x128xf32>, vector<128x128xf32> -> vector<128x128xf32>
    %c0_132 = arith.constant 0 : index
    %c0_133 = arith.constant 0 : index
    %217 = vector.load %arg9[%c0_132, %c0_133] : memref<128x128xf32, #tpu.memory_space<vmem>>, vector<128x128xf32>
    %218 = arith.addf %217, %216 : vector<128x128xf32>
    %c0_134 = arith.constant 0 : index
    %c0_135 = arith.constant 0 : index
    %219 = vector.load %arg9[%c0_134, %c0_135] : memref<128x128xf32, #tpu.memory_space<vmem>>, vector<128x128xf32>
    tpu.vector_store %arg9[%c0_134, %c0_135], %218 {strides = array<i32>} : memref<128x128xf32, #tpu.memory_space<vmem>>, vector<128x128xf32>,
    %220 = tpu.concatenate %203, %22, %34, %46, %203, %70, %82, %94, %203, %118, %130, %142, %203, %166, %178, %190 in 0 : vector<8x128xf32>, vector<8x128xf32>, vector<8x128xf32>, vector<8x128xf32>, vector<8x128xf32>, vector<8x128xf32>, vector<8x128xf32>, vector<8x128xf32>, vector<8x128xf32>, vector<8x128xf32>, vector<8x128xf32>, vector<8x128xf32>, vector<8x128xf32>, vector<8x128xf32>, vector<8x128xf32>, vector<8x128xf32> -> vector<128x128xf32>
    %c384_136 = arith.constant 384 : index
    %c0_137 = arith.constant 0 : index
    %221 = vector.load %arg4[%c384_136, %c0_137] : memref<1152x128xf32, #tpu.memory_space<vmem>>, vector<128x128xf32>
    %cst_138 = arith.constant dense<0.000000e+00> : vector<128x128xf32>
    %222 = tpu.matmul %220, %221, %cst_138 {dimension_numbers = #tpu.dot_dimension_numbers<[1], [0], [0], [1], [0, 0, 1, 1], [], []>} : vector<128x128xf32>, vector<128x128xf32>, vector<128x128xf32> -> vector<128x128xf32>
    %c0_139 = arith.constant 0 : index
    %c0_140 = arith.constant 0 : index
    %223 = vector.load %arg9[%c0_139, %c0_140] : memref<128x128xf32, #tpu.memory_space<vmem>>, vector<128x128xf32>
    %224 = arith.addf %223, %222 : vector<128x128xf32>
    %c0_141 = arith.constant 0 : index
    %c0_142 = arith.constant 0 : index
    %225 = vector.load %arg9[%c0_141, %c0_142] : memref<128x128xf32, #tpu.memory_space<vmem>>, vector<128x128xf32>
    tpu.vector_store %arg9[%c0_141, %c0_142], %224 {strides = array<i32>} : memref<128x128xf32, #tpu.memory_space<vmem>>, vector<128x128xf32>,
    %226 = tpu.concatenate %22, %34, %46, %58, %70, %82, %94, %106, %118, %130, %142, %154, %166, %178, %190, %202 in 0 : vector<8x128xf32>, vector<8x128xf32>, vector<8x128xf32>, vector<8x128xf32>, vector<8x128xf32>, vector<8x128xf32>, vector<8x128xf32>, vector<8x128xf32>, vector<8x128xf32>, vector<8x128xf32>, vector<8x128xf32>, vector<8x128xf32>, vector<8x128xf32>, vector<8x128xf32>, vector<8x128xf32>, vector<8x128xf32> -> vector<128x128xf32>
    %c512_143 = arith.constant 512 : index
    %c0_144 = arith.constant 0 : index
    %227 = vector.load %arg4[%c512_143, %c0_144] : memref<1152x128xf32, #tpu.memory_space<vmem>>, vector<128x128xf32>
    %cst_145 = arith.constant dense<0.000000e+00> : vector<128x128xf32>
    %228 = tpu.matmul %226, %227, %cst_145 {dimension_numbers = #tpu.dot_dimension_numbers<[1], [0], [0], [1], [0, 0, 1, 1], [], []>} : vector<128x128xf32>, vector<128x128xf32>, vector<128x128xf32> -> vector<128x128xf32>
    %c0_146 = arith.constant 0 : index
    %c0_147 = arith.constant 0 : index
    %229 = vector.load %arg9[%c0_146, %c0_147] : memref<128x128xf32, #tpu.memory_space<vmem>>, vector<128x128xf32>
    %230 = arith.addf %229, %228 : vector<128x128xf32>
    %c0_148 = arith.constant 0 : index
    %c0_149 = arith.constant 0 : index
    %231 = vector.load %arg9[%c0_148, %c0_149] : memref<128x128xf32, #tpu.memory_space<vmem>>, vector<128x128xf32>
    tpu.vector_store %arg9[%c0_148, %c0_149], %230 {strides = array<i32>} : memref<128x128xf32, #tpu.memory_space<vmem>>, vector<128x128xf32>,
    %232 = tpu.concatenate %34, %46, %58, %203, %82, %94, %106, %203, %130, %142, %154, %203, %178, %190, %202, %203 in 0 : vector<8x128xf32>, vector<8x128xf32>, vector<8x128xf32>, vector<8x128xf32>, vector<8x128xf32>, vector<8x128xf32>, vector<8x128xf32>, vector<8x128xf32>, vector<8x128xf32>, vector<8x128xf32>, vector<8x128xf32>, vector<8x128xf32>, vector<8x128xf32>, vector<8x128xf32>, vector<8x128xf32>, vector<8x128xf32> -> vector<128x128xf32>
    %c640_150 = arith.constant 640 : index
    %c0_151 = arith.constant 0 : index
    %233 = vector.load %arg4[%c640_150, %c0_151] : memref<1152x128xf32, #tpu.memory_space<vmem>>, vector<128x128xf32>
    %cst_152 = arith.constant dense<0.000000e+00> : vector<128x128xf32>
    %234 = tpu.matmul %232, %233, %cst_152 {dimension_numbers = #tpu.dot_dimension_numbers<[1], [0], [0], [1], [0, 0, 1, 1], [], []>} : vector<128x128xf32>, vector<128x128xf32>, vector<128x128xf32> -> vector<128x128xf32>
    %c0_153 = arith.constant 0 : index
    %c0_154 = arith.constant 0 : index
    %235 = vector.load %arg9[%c0_153, %c0_154] : memref<128x128xf32, #tpu.memory_space<vmem>>, vector<128x128xf32>
    %236 = arith.addf %235, %234 : vector<128x128xf32>
    %c0_155 = arith.constant 0 : index
    %c0_156 = arith.constant 0 : index
    %237 = vector.load %arg9[%c0_155, %c0_156] : memref<128x128xf32, #tpu.memory_space<vmem>>, vector<128x128xf32>
    tpu.vector_store %arg9[%c0_155, %c0_156], %236 {strides = array<i32>} : memref<128x128xf32, #tpu.memory_space<vmem>>, vector<128x128xf32>,
    %238 = tpu.concatenate %203, %70, %82, %94, %203, %118, %130, %142, %203, %166, %178, %190, %203, %203, %203, %203 in 0 : vector<8x128xf32>, vector<8x128xf32>, vector<8x128xf32>, vector<8x128xf32>, vector<8x128xf32>, vector<8x128xf32>, vector<8x128xf32>, vector<8x128xf32>, vector<8x128xf32>, vector<8x128xf32>, vector<8x128xf32>, vector<8x128xf32>, vector<8x128xf32>, vector<8x128xf32>, vector<8x128xf32>, vector<8x128xf32> -> vector<128x128xf32>
    %c768_157 = arith.constant 768 : index
    %c0_158 = arith.constant 0 : index
    %239 = vector.load %arg4[%c768_157, %c0_158] : memref<1152x128xf32, #tpu.memory_space<vmem>>, vector<128x128xf32>
    %cst_159 = arith.constant dense<0.000000e+00> : vector<128x128xf32>
    %240 = tpu.matmul %238, %239, %cst_159 {dimension_numbers = #tpu.dot_dimension_numbers<[1], [0], [0], [1], [0, 0, 1, 1], [], []>} : vector<128x128xf32>, vector<128x128xf32>, vector<128x128xf32> -> vector<128x128xf32>
    %c0_160 = arith.constant 0 : index
    %c0_161 = arith.constant 0 : index
    %241 = vector.load %arg9[%c0_160, %c0_161] : memref<128x128xf32, #tpu.memory_space<vmem>>, vector<128x128xf32>
    %242 = arith.addf %241, %240 : vector<128x128xf32>
    %c0_162 = arith.constant 0 : index
    %c0_163 = arith.constant 0 : index
    %243 = vector.load %arg9[%c0_162, %c0_163] : memref<128x128xf32, #tpu.memory_space<vmem>>, vector<128x128xf32>
    tpu.vector_store %arg9[%c0_162, %c0_163], %242 {strides = array<i32>} : memref<128x128xf32, #tpu.memory_space<vmem>>, vector<128x128xf32>,
    %244 = tpu.concatenate %70, %82, %94, %106, %118, %130, %142, %154, %166, %178, %190, %202, %203, %203, %203, %203 in 0 : vector<8x128xf32>, vector<8x128xf32>, vector<8x128xf32>, vector<8x128xf32>, vector<8x128xf32>, vector<8x128xf32>, vector<8x128xf32>, vector<8x128xf32>, vector<8x128xf32>, vector<8x128xf32>, vector<8x128xf32>, vector<8x128xf32>, vector<8x128xf32>, vector<8x128xf32>, vector<8x128xf32>, vector<8x128xf32> -> vector<128x128xf32>
    %c896_164 = arith.constant 896 : index
    %c0_165 = arith.constant 0 : index
    %245 = vector.load %arg4[%c896_164, %c0_165] : memref<1152x128xf32, #tpu.memory_space<vmem>>, vector<128x128xf32>
    %cst_166 = arith.constant dense<0.000000e+00> : vector<128x128xf32>
    %246 = tpu.matmul %244, %245, %cst_166 {dimension_numbers = #tpu.dot_dimension_numbers<[1], [0], [0], [1], [0, 0, 1, 1], [], []>} : vector<128x128xf32>, vector<128x128xf32>, vector<128x128xf32> -> vector<128x128xf32>
    %c0_167 = arith.constant 0 : index
    %c0_168 = arith.constant 0 : index
    %247 = vector.load %arg9[%c0_167, %c0_168] : memref<128x128xf32, #tpu.memory_space<vmem>>, vector<128x128xf32>
    %248 = arith.addf %247, %246 : vector<128x128xf32>
    %c0_169 = arith.constant 0 : index
    %c0_170 = arith.constant 0 : index
    %249 = vector.load %arg9[%c0_169, %c0_170] : memref<128x128xf32, #tpu.memory_space<vmem>>, vector<128x128xf32>
    tpu.vector_store %arg9[%c0_169, %c0_170], %248 {strides = array<i32>} : memref<128x128xf32, #tpu.memory_space<vmem>>, vector<128x128xf32>,
    %250 = tpu.concatenate %82, %94, %106, %203, %130, %142, %154, %203, %178, %190, %202, %203, %203, %203, %203, %203 in 0 : vector<8x128xf32>, vector<8x128xf32>, vector<8x128xf32>, vector<8x128xf32>, vector<8x128xf32>, vector<8x128xf32>, vector<8x128xf32>, vector<8x128xf32>, vector<8x128xf32>, vector<8x128xf32>, vector<8x128xf32>, vector<8x128xf32>, vector<8x128xf32>, vector<8x128xf32>, vector<8x128xf32>, vector<8x128xf32> -> vector<128x128xf32>
    %c1024_171 = arith.constant 1024 : index
    %c0_172 = arith.constant 0 : index
    %251 = vector.load %arg4[%c1024_171, %c0_172] : memref<1152x128xf32, #tpu.memory_space<vmem>>, vector<128x128xf32>
    %cst_173 = arith.constant dense<0.000000e+00> : vector<128x128xf32>
    %252 = tpu.matmul %250, %251, %cst_173 {dimension_numbers = #tpu.dot_dimension_numbers<[1], [0], [0], [1], [0, 0, 1, 1], [], []>} : vector<128x128xf32>, vector<128x128xf32>, vector<128x128xf32> -> vector<128x128xf32>
    %c0_174 = arith.constant 0 : index
    %c0_175 = arith.constant 0 : index
    %253 = vector.load %arg9[%c0_174, %c0_175] : memref<128x128xf32, #tpu.memory_space<vmem>>, vector<128x128xf32>
    %254 = arith.addf %253, %252 : vector<128x128xf32>
    %c0_176 = arith.constant 0 : index
    %c0_177 = arith.constant 0 : index
    %255 = vector.load %arg9[%c0_176, %c0_177] : memref<128x128xf32, #tpu.memory_space<vmem>>, vector<128x128xf32>
    tpu.vector_store %arg9[%c0_176, %c0_177], %254 {strides = array<i32>} : memref<128x128xf32, #tpu.memory_space<vmem>>, vector<128x128xf32>,
    %c0_178 = arith.constant 0 : index
    %c0_179 = arith.constant 0 : index
    %256 = vector.load %arg9[%c0_178, %c0_179] : memref<128x128xf32, #tpu.memory_space<vmem>>, vector<128x128xf32>
    %c0_180 = arith.constant 0 : index
    %c0_181 = arith.constant 0 : index
    %257 = vector.load %arg5[%c0_180, %c0_181] : memref<1x128xf32, #tpu.memory_space<vmem>>, vector<1x128xf32>
    %258 = vector.broadcast %257 : vector<1x128xf32> to vector<128x128xf32>
    %259 = arith.addf %256, %258 : vector<128x128xf32>
    %cst_182 = arith.constant 0.0833333358 : f32
    %260 = vector.broadcast %cst_182 : f32 to vector<128x128xf32>
    %261 = arith.mulf %259, %260 : vector<128x128xf32>
    %cst_183 = arith.constant 0.000000e+00 : f32
    %262 = vector.broadcast %cst_183 : f32 to vector<128x128xf32>
    %263 = arith.cmpf oge, %261, %262 : vector<128x128xf32>
    %cst_184 = arith.constant 2.000000e-01 : f32
    %264 = vector.broadcast %cst_184 : f32 to vector<128x128xf32>
    %265 = arith.mulf %264, %261 : vector<128x128xf32>
    %266 = arith.select %263, %261, %265 : vector<128x128xi1>, vector<128x128xf32>
    %267 = arith.mulf %266, %266 : vector<128x128xf32>
    %cst_185 = arith.constant dense<0.000000e+00> : vector<128xf32>
    %268 = vector.multi_reduction <add>, %267, %cst_185 [1] : vector<128x128xf32> to vector<128xf32>
    %269 = vector.shape_cast %268 : vector<128xf32> to vector<128x1xf32>
    %cst_186 = arith.constant 3.125000e-02 : f32
    %270 = vector.broadcast %cst_186 : f32 to vector<128x1xf32>
    %271 = arith.mulf %269, %270 : vector<128x1xf32>
    %cst_187 = arith.constant 9.99999993E-9 : f32
    %272 = vector.broadcast %cst_187 : f32 to vector<128x1xf32>
    %273 = arith.addf %271, %272 : vector<128x1xf32>
    %274 = math.rsqrt %273 : vector<128x1xf32>
    %275 = vector.broadcast %274 : vector<128x1xf32> to vector<128x128xf32>
    %276 = arith.mulf %266, %275 : vector<128x128xf32>
    %c0_188 = arith.constant 0 : index
    %c0_189 = arith.constant 0 : index
    %277 = vector.load %arg6[%c0_188, %c0_189] : memref<128x128xf32, #tpu.memory_space<vmem>>, vector<128x128xf32>
    %cst_190 = arith.constant dense<0.000000e+00> : vector<128x128xf32>
    %278 = tpu.matmul %276, %277, %cst_190 {dimension_numbers = #tpu.dot_dimension_numbers<[1], [0], [0], [1], [0, 0, 1, 1], [], []>} : vector<128x128xf32>, vector<128x128xf32>, vector<128x128xf32> -> vector<128x128xf32>
    %c0_191 = arith.constant 0 : index
    %c0_192 = arith.constant 0 : index
    %279 = vector.load %arg7[%c0_191, %c0_192] : memref<1x128xf32, #tpu.memory_space<vmem>>, vector<1x128xf32>
    %280 = vector.broadcast %279 : vector<1x128xf32> to vector<128x128xf32>
    %281 = arith.addf %278, %280 : vector<128x128xf32>
    %cst_193 = arith.constant 2.500000e-01 : f32
    %282 = vector.broadcast %cst_193 : f32 to vector<128x128xf32>
    %283 = arith.mulf %281, %282 : vector<128x128xf32>
    %c0_194 = arith.constant 0 : index
    %c0_195 = arith.constant 0 : index
    %284 = vector.load %arg8[%c0_194, %c0_195] : memref<128x128xf32, #tpu.memory_space<vmem>>, vector<128x128xf32>
    tpu.vector_store %arg8[%c0_194, %c0_195], %283 {strides = array<i32>} : memref<128x128xf32, #tpu.memory_space<vmem>>, vector<128x128xf32>,
    return
  }
  func.func @transform_0(%arg0: i32) -> (i32, i32) {
    %c0_i32 = arith.constant 0 : i32
    %c0_i32_0 = arith.constant 0 : i32
    return %arg0, %c0_i32 : i32, i32
  }
  func.func @transform_1(%arg0: i32) -> (i32, i32) {
    %c0_i32 = arith.constant 0 : i32
    %c0_i32_0 = arith.constant 0 : i32
    %c0_i32_1 = arith.constant 0 : i32
    return %c0_i32, %c0_i32_0 : i32, i32
  }
  func.func @transform_2(%arg0: i32) -> (i32, i32) {
    %c0_i32 = arith.constant 0 : i32
    %c0_i32_0 = arith.constant 0 : i32
    %c0_i32_1 = arith.constant 0 : i32
    return %c0_i32, %c0_i32_0 : i32, i32
  }
  func.func @transform_3(%arg0: i32) -> (i32, i32) {
    %c0_i32 = arith.constant 0 : i32
    %c0_i32_0 = arith.constant 0 : i32
    %c0_i32_1 = arith.constant 0 : i32
    return %c0_i32, %c0_i32_0 : i32, i32
  }
  func.func @transform_4(%arg0: i32) -> (i32, i32) {
    %c0_i32 = arith.constant 0 : i32
    %c0_i32_0 = arith.constant 0 : i32
    %c0_i32_1 = arith.constant 0 : i32
    return %c0_i32, %c0_i32_0 : i32, i32
  }
  func.func @transform_5(%arg0: i32) -> (i32, i32) {
    %c0_i32 = arith.constant 0 : i32
    %c0_i32_0 = arith.constant 0 : i32
    %c0_i32_1 = arith.constant 0 : i32
    return %c0_i32, %c0_i32_0 : i32, i32
  }
  func.func @transform_6(%arg0: i32) -> (i32, i32) {
    %c0_i32 = arith.constant 0 : i32
    %c0_i32_0 = arith.constant 0 : i32
    %c0_i32_1 = arith.constant 0 : i32
    return %c0_i32, %c0_i32_0 : i32, i32
  }
  func.func @transform_7(%arg0: i32) -> (i32, i32) {
    %c0_i32 = arith.constant 0 : i32
    %c0_i32_0 = arith.constant 0 : i32
    return %arg0, %c0_i32 : i32, i32
  }
}

</mosaic_0001>

<llo_original>
// kernel: tpu_custom_call.1
$region0: #{tpu_custom_call.1}
  #allocation0 [shape = 'u32[]', space=smem, size = 0x4, offset = 0x4, fixed_abs, tag = 'smem constant byte address 0x4 - core index']
  #allocation1 [shape = 'u32[144,128]{1,0:T(1,128)}', space=vmem, size = 0x12000, scoped, tag = 'internal scratch']
  #allocation2 [shape = 'f32[128,128]{1,0:T(8,128)}', space=vmem, size = 0x10000, scoped, tag = 'scratch operand']
  %s0 = inlined_call_operand.hbm [shape: f32[16,32], index: 0, kind: input, shape index: {}]
  %s1 = inlined_call_operand.hbm [shape: f32[32,2048], index: 1, kind: input, shape index: {}]
  %s2 = inlined_call_operand.hbm [shape: f32[1,2048], index: 2, kind: input, shape index: {}]
  %s3 = inlined_call_operand.hbm [shape: f32[1152,128], index: 3, kind: input, shape index: {}]
  %s4 = inlined_call_operand.vmem [shape: f32[1,128], index: 4, kind: input, shape index: {}]
  %s5 = inlined_call_operand.hbm [shape: f32[128,128], index: 5, kind: input, shape index: {}]
  %s6 = inlined_call_operand.vmem [shape: f32[1,128], index: 6, kind: input, shape index: {}]
  %s7 = inlined_call_operand.hbm [shape: f32[256,128], index: 7, kind: output, shape index: {}]
  %s8 = sld [smem:[#allocation0]]
  $region81: #{tpu_custom_call.1} parent=0
    _
  %s10 = ssub.s32 1, %s8
  %s11 = scalar_select 0, %s10, %s8
  $region1: #{tpu_custom_call.1} parent=0
    #allocation3 [shape = 'u8[8192]{0}', space=vmem, size = 0x2000, scoped, tag = 'input window, operand 0']
    #allocation4 [shape = 's32[2]{0}', space=sflag, size = 0x8, scoped, tag = 'scoped memory for tpu_custom_call.1']
    #allocation5 [shape = 's32[2]{0}', space=sflag, size = 0x8, scoped, tag = 'scoped memory for tpu_custom_call.1']
    #allocation6 [shape = 'u8[262144]{0}', space=vmem, size = 0x40000, scoped, tag = 'input window, operand 1, single buffered']
    #allocation7 [shape = 's32[1]{0}', space=sflag, size = 0x4, scoped, tag = 'scoped memory for tpu_custom_call.1']
    #allocation8 [shape = 'u8[8192]{0}', space=vmem, size = 0x2000, scoped, tag = 'input window, operand 2, single buffered']
    #allocation9 [shape = 'u8[589824]{0}', space=vmem, size = 0x90000, scoped, tag = 'input window, operand 3, single buffered']
    #allocation10 [shape = 's32[1]{0}', space=sflag, size = 0x4, scoped, tag = 'scoped memory for tpu_custom_call.1']
    #allocation11 [shape = 'u8[65536]{0}', space=vmem, size = 0x10000, scoped, tag = 'input window, operand 5, single buffered']
    #allocation12 [shape = 'u8[131072]{0}', space=vmem, size = 0x20000, scoped, tag = 'output window, operand 0']
    %12 = vsyncpa [#allocation4], 0
    %s13 = scalar_lea.sflag [#allocation4], 1
    %14 = vsyncpa %s13, 0
    %15 = vsyncpa [#allocation7], 0
    %16 = vsyncpa [#allocation10], 0
    %17 = vsyncpa [#allocation5], 0
    %s18 = scalar_lea.sflag [#allocation5], 1
    %19 = vsyncpa %s18, 0
    loop: start=0, step=1, limit=4
    $region2: #{tpu_custom_call.1} parent=1 // loop_pre_header
      _
    $region3: #{tpu_custom_call.1} parent=1 // loop_header
      %s21 = sphi 0, %s25
      %p22 = scmp.ge.s32.totalorder %s21, 4
      %s31 = sphi 0, %s33
      %s34 = sphi 0, %s31
      %s35 = sphi 0, %s34
      %s51 = sphi 0, %s35
      %s55 = sphi 0, %s55
      %s57 = sphi 0, %s55
      %s58 = sphi 0, %s57
      %s72 = sphi 0, %s58
      %s76 = sphi 0, %s76
      %s78 = sphi 0, %s76
      %s79 = sphi 0, %s78
      %s93 = sphi 0, %s79
      %s97 = sphi 0, %s97
      %s99 = sphi 0, %s97
      %s100 = sphi 0, %s99
      %s114 = sphi 0, %s100
      %s118 = sphi 0, %s118
      %s120 = sphi 0, %s118
      %s121 = sphi 0, %s120
      %s135 = sphi 0, %s121
      %s139 = sphi 0, %s139
      %s141 = sphi 0, %s139
      %s142 = sphi 0, %s141
      %s156 = sphi 0, %s142
      %s160 = sphi 0, %s160
      %s162 = sphi 0, %s160
      %s163 = sphi 0, %s162
      %s177 = sphi 0, %s163
      %s183 = sphi 0, %s185
      %s186 = sphi 0, %s183
      %s187 = sphi 0, %s186
      %s203 = sphi 0, %s187
    $region4: #{tpu_custom_call.1} parent=1 // loop_header_branch
      %24 = sbr.rel (%p22) target = $region8
    $region5: #{tpu_custom_call.1} parent=1 // loop_body
      %s26 = ssub.s32 %s21, 1
      %s27 = ssub.s32 %s21, 2
      %s28 = sadd.s32 %s21, 1
      %s29 = ssub.s32 %s21, %s28
      %p30 = scmp.eq.s32.totalorder %s29, 0
      %s32 = sadd.s32 %s31, 1
      %s33 = scalar_select %p30, %s31, %s32
      %p36 = pneg %p30
      %p37 = scmp.eq.s32.totalorder %s21, 1
      %p38 = por %p36, %p37
      %p39 = scmp.ne.s32.totalorder %s31, %s34
      %p40 = scmp.eq.s32.totalorder %s21, 0
      %p41 = por %p39, %p40
      %p42 = scmp.ne.s32.totalorder %s31, %s34
      %p43 = scmp.eq.s32.totalorder %s26, 1
      %p44 = por %p42, %p43
      %p45 = scmp.ne.s32.totalorder %s34, %s35
      %p46 = scmp.eq.s32.totalorder %s26, 0
      %p47 = por %p45, %p46
      %p48 = scmp.ne.s32.totalorder %s34, %s35
      %p49 = scmp.eq.s32.totalorder %s27, 1
      %p50 = por %p48, %p49
      %p52 = scmp.ne.s32.totalorder %s35, %s51
      %p53 = scmp.eq.s32.totalorder %s27, 0
      %p54 = por %p52, %p53
      %s56 = sadd.s32 %s55, 1
      %p59 = scmp.eq.s32.totalorder %s21, 1
      %p60 = scmp.ne.s32.totalorder %s55, %s57
      %p61 = scmp.eq.s32.totalorder %s21, 0
      %p62 = por %p60, %p61
      %p63 = scmp.ne.s32.totalorder %s55, %s57
      %p64 = scmp.eq.s32.totalorder %s26, 1
      %p65 = por %p63, %p64
      %p66 = scmp.ne.s32.totalorder %s57, %s58
      %p67 = scmp.eq.s32.totalorder %s26, 0
      %p68 = por %p66, %p67
      %p69 = scmp.ne.s32.totalorder %s57, %s58
      %p70 = scmp.eq.s32.totalorder %s27, 1
      %p71 = por %p69, %p70
      %p73 = scmp.ne.s32.totalorder %s58, %s72
      %p74 = scmp.eq.s32.totalorder %s27, 0
      %p75 = por %p73, %p74
      %s77 = sadd.s32 %s76, 1
      %p80 = scmp.eq.s32.totalorder %s21, 1
      %p81 = scmp.ne.s32.totalorder %s76, %s78
      %p82 = scmp.eq.s32.totalorder %s21, 0
      %p83 = por %p81, %p82
      %p84 = scmp.ne.s32.totalorder %s76, %s78
      %p85 = scmp.eq.s32.totalorder %s26, 1
      %p86 = por %p84, %p85
      %p87 = scmp.ne.s32.totalorder %s78, %s79
      %p88 = scmp.eq.s32.totalorder %s26, 0
      %p89 = por %p87, %p88
      %p90 = scmp.ne.s32.totalorder %s78, %s79
      %p91 = scmp.eq.s32.totalorder %s27, 1
      %p92 = por %p90, %p91
      %p94 = scmp.ne.s32.totalorder %s79, %s93
      %p95 = scmp.eq.s32.totalorder %s27, 0
      %p96 = por %p94, %p95
      %s98 = sadd.s32 %s97, 1
      %p101 = scmp.eq.s32.totalorder %s21, 1
      %p102 = scmp.ne.s32.totalorder %s97, %s99
      %p103 = scmp.eq.s32.totalorder %s21, 0
      %p104 = por %p102, %p103
      %p105 = scmp.ne.s32.totalorder %s97, %s99
      %p106 = scmp.eq.s32.totalorder %s26, 1
      %p107 = por %p105, %p106
      %p108 = scmp.ne.s32.totalorder %s99, %s100
      %p109 = scmp.eq.s32.totalorder %s26, 0
      %p110 = por %p108, %p109
      %p111 = scmp.ne.s32.totalorder %s99, %s100
      %p112 = scmp.eq.s32.totalorder %s27, 1
      %p113 = por %p111, %p112
      %p115 = scmp.ne.s32.totalorder %s100, %s114
      %p116 = scmp.eq.s32.totalorder %s27, 0
      %p117 = por %p115, %p116
      %s119 = sadd.s32 %s118, 1
      %p122 = scmp.eq.s32.totalorder %s21, 1
      %p123 = scmp.ne.s32.totalorder %s118, %s120
      %p124 = scmp.eq.s32.totalorder %s21, 0
      %p125 = por %p123, %p124
      %p126 = scmp.ne.s32.totalorder %s118, %s120
      %p127 = scmp.eq.s32.totalorder %s26, 1
      %p128 = por %p126, %p127
      %p129 = scmp.ne.s32.totalorder %s120, %s121
      %p130 = scmp.eq.s32.totalorder %s26, 0
      %p131 = por %p129, %p130
      %p132 = scmp.ne.s32.totalorder %s120, %s121
      %p133 = scmp.eq.s32.totalorder %s27, 1
      %p134 = por %p132, %p133
      %p136 = scmp.ne.s32.totalorder %s121, %s135
      %p137 = scmp.eq.s32.totalorder %s27, 0
      %p138 = por %p136, %p137
      %s140 = sadd.s32 %s139, 1
      %p143 = scmp.eq.s32.totalorder %s21, 1
      %p144 = scmp.ne.s32.totalorder %s139, %s141
      %p145 = scmp.eq.s32.totalorder %s21, 0
      %p146 = por %p144, %p145
      %p147 = scmp.ne.s32.totalorder %s139, %s141
      %p148 = scmp.eq.s32.totalorder %s26, 1
      %p149 = por %p147, %p148
      %p150 = scmp.ne.s32.totalorder %s141, %s142
      %p151 = scmp.eq.s32.totalorder %s26, 0
      %p152 = por %p150, %p151
      %p153 = scmp.ne.s32.totalorder %s141, %s142
      %p154 = scmp.eq.s32.totalorder %s27, 1
      %p155 = por %p153, %p154
      %p157 = scmp.ne.s32.totalorder %s142, %s156
      %p158 = scmp.eq.s32.totalorder %s27, 0
      %p159 = por %p157, %p158
      %s161 = sadd.s32 %s160, 1
      %p164 = scmp.eq.s32.totalorder %s21, 1
      %p165 = scmp.ne.s32.totalorder %s160, %s162
      %p166 = scmp.eq.s32.totalorder %s21, 0
      %p167 = por %p165, %p166
      %p168 = scmp.ne.s32.totalorder %s160, %s162
      %p169 = scmp.eq.s32.totalorder %s26, 1
      %p170 = por %p168, %p169
      %p171 = scmp.ne.s32.totalorder %s162, %s163
      %p172 = scmp.eq.s32.totalorder %s26, 0
      %p173 = por %p171, %p172
      %p174 = scmp.ne.s32.totalorder %s162, %s163
      %p175 = scmp.eq.s32.totalorder %s27, 1
      %p176 = por %p174, %p175
      %p178 = scmp.ne.s32.totalorder %s163, %s177
      %p179 = scmp.eq.s32.totalorder %s27, 0
      %p180 = por %p178, %p179
      %s181 = ssub.s32 %s21, %s28
      %p182 = scmp.eq.s32.totalorder %s181, 0
      %s184 = sadd.s32 %s183, 1
      %s185 = scalar_select %p182, %s183, %s184
      %p188 = pneg %p182
      %p189 = scmp.eq.s32.totalorder %s21, 1
      %p190 = por %p188, %p189
      %p191 = scmp.ne.s32.totalorder %s183, %s186
      %p192 = scmp.eq.s32.totalorder %s21, 0
      %p193 = por %p191, %p192
      %p194 = scmp.ne.s32.totalorder %s183, %s186
      %p195 = scmp.eq.s32.totalorder %s26, 1
      %p196 = por %p194, %p195
      %p197 = scmp.ne.s32.totalorder %s186, %s187
      %p198 = scmp.eq.s32.totalorder %s26, 0
      %p199 = por %p197, %p198
      %p200 = scmp.ne.s32.totalorder %s186, %s187
      %p201 = scmp.eq.s32.totalorder %s27, 1
      %p202 = por %p200, %p201
      %p204 = scmp.ne.s32.totalorder %s187, %s203
      %p205 = scmp.eq.s32.totalorder %s27, 0
      %p206 = por %p204, %p205
      %p207 = scmp.le.s32.totalorder 1, %s21
      %p208 = scmp.lt.s32.totalorder %s21, 3
      %p209 = pnand %p207, %p208
      %p210 = pneg %p209
      // Predicated region
      $region9: #{tpu_custom_call.1} parent=5 // pred_check
        _
      $region10: #{tpu_custom_call.1} parent=5 // pred_check_branch
        %212 = sbr.rel (%p209) target = $region12
      $region11: #{tpu_custom_call.1} parent=5 // pred_region
        %s213 = ssub.s32 %s21, 1
        // Predicated region
        $region13: #{tpu_custom_call.1} parent=11 // pred_check
          %p214 = pneg %p68
        $region14: #{tpu_custom_call.1} parent=11 // pred_check_branch
          %216 = sbr.rel (%p214) target = $region16
        $region15: #{tpu_custom_call.1} parent=11 // pred_region
          %s218 = ssub.s32 8192, 8192
          %219 = vsyncadd [#allocation7], %s218
          %s220 = sshll.u32 [#allocation6], 4
          %s221 = int_to_ptr.vmem [resolvable:$true] %s220
          %226 = dma.hbm_to_vmem [thread:$0]  %s1, 8192, %s221, [#allocation7], 2048, 2048, 128
        $region16: #{tpu_custom_call.1} parent=11 // pred_fallthru
          _
        // Predicated region
        $region17: #{tpu_custom_call.1} parent=11 // pred_check
          %p227 = pneg %p89
        $region18: #{tpu_custom_call.1} parent=11 // pred_check_branch
          %229 = sbr.rel (%p227) target = $region20
        $region19: #{tpu_custom_call.1} parent=11 // pred_region
          %s231 = ssub.s32 256, 256
          %232 = vsyncadd [#allocation7], %s231
          %s234 = sshll.u32 [#allocation8], 4
          %s235 = int_to_ptr.vmem [resolvable:$true] %s234
          %237 = dma.hbm_to_vmem [thread:$0]  %s2, 256, %s235, [#allocation7]
        $region20: #{tpu_custom_call.1} parent=11 // pred_fallthru
          _
        // Predicated region
        $region21: #{tpu_custom_call.1} parent=11 // pred_check
          %p238 = pneg %p110
        $region22: #{tpu_custom_call.1} parent=11 // pred_check_branch
          %240 = sbr.rel (%p238) target = $region24
        $region23: #{tpu_custom_call.1} parent=11 // pred_region
          %s242 = ssub.s32 18432, 18432
          %243 = vsyncadd [#allocation10], %s242
          %s244 = sshll.u32 [#allocation9], 4
          %s245 = int_to_ptr.vmem [resolvable:$true] %s244
          %250 = dma.hbm_to_vmem [thread:$0]  %s3, 18432, %s245, [#allocation10], 128, 128, 8
        $region24: #{tpu_custom_call.1} parent=11 // pred_fallthru
          _
        // Predicated region
        $region25: #{tpu_custom_call.1} parent=11 // pred_check
          %p251 = pneg %p131
        $region26: #{tpu_custom_call.1} parent=11 // pred_check_branch
          %253 = sbr.rel (%p251) target = $region28
        $region27: #{tpu_custom_call.1} parent=11 // pred_region
          _
        $region28: #{tpu_custom_call.1} parent=11 // pred_fallthru
          _
        // Predicated region
        $region29: #{tpu_custom_call.1} parent=11 // pred_check
          %p254 = pneg %p152
        $region30: #{tpu_custom_call.1} parent=11 // pred_check_branch
          %256 = sbr.rel (%p254) target = $region32
        $region31: #{tpu_custom_call.1} parent=11 // pred_region
          %s258 = ssub.s32 2048, 2048
          %259 = vsyncadd [#allocation10], %s258
          %s260 = sshll.u32 [#allocation11], 4
          %s261 = int_to_ptr.vmem [resolvable:$true] %s260
          %266 = dma.hbm_to_vmem [thread:$0]  %s5, 2048, %s261, [#allocation10], 128, 128, 8
        $region32: #{tpu_custom_call.1} parent=11 // pred_fallthru
          _
        // Predicated region
        $region33: #{tpu_custom_call.1} parent=11 // pred_check
          %p267 = pneg %p173
        $region34: #{tpu_custom_call.1} parent=11 // pred_check_branch
          %269 = sbr.rel (%p267) target = $region36
        $region35: #{tpu_custom_call.1} parent=11 // pred_region
          _
        $region36: #{tpu_custom_call.1} parent=11 // pred_fallthru
          _
      $region12: #{tpu_custom_call.1} parent=5 // pred_fallthru
        _
      %p270 = scmp.lt.s32.totalorder %s21, 2
      // Predicated region
      $region37: #{tpu_custom_call.1} parent=5 // pred_check
        %p271 = pneg %p270
      $region38: #{tpu_custom_call.1} parent=5 // pred_check_branch
        %273 = sbr.rel (%p271) target = $region40
      $region39: #{tpu_custom_call.1} parent=5 // pred_region
        // Predicated region
        $region41: #{tpu_custom_call.1} parent=39 // pred_check
          %p274 = pneg %p41
        $region42: #{tpu_custom_call.1} parent=39 // pred_check_branch
          %276 = sbr.rel (%p274) target = $region44
        $region43: #{tpu_custom_call.1} parent=39 // pred_region
          %s277 = sand.u32 %s31, 1
          %s278 = scalar_lea.sflag [#allocation4], %s277
          %s279 = sand.u32 %s31, 1
          %s280 = smul.addr %s279, 8
          %s281 = scalar_lea.vmem [#allocation3], %s280
          %s283 = ssub.s32 128, 128
          %284 = vsyncadd %s278, %s283
          %s285 = smul.addr %s21, 128
          %s286 = scalar_lea.hbm %s0, %s285
          %s288 = sshll.u32 %s281, 4
          %s289 = int_to_ptr.vmem [resolvable:$true] %s288
          %291 = dma.hbm_to_vmem [thread:$0]  %s286, 128, %s289, %s278
        $region44: #{tpu_custom_call.1} parent=39 // pred_fallthru
          _
      $region40: #{tpu_custom_call.1} parent=5 // pred_fallthru
        _
      %p292 = scmp.le.s32.totalorder 1, %s21
      %p293 = scmp.lt.s32.totalorder %s21, 3
      %p294 = pnand %p292, %p293
      %p295 = pneg %p294
      // Predicated region
      $region45: #{tpu_custom_call.1} parent=5 // pred_check
        _
      $region46: #{tpu_custom_call.1} parent=5 // pred_check_branch
        %297 = sbr.rel (%p294) target = $region48
      $region47: #{tpu_custom_call.1} parent=5 // pred_region
        %s298 = ssub.s32 %s21, 1
        %s299 = sand.u32 %s34, 1
        %s300 = scalar_lea.sflag [#allocation4], %s299
        %s301 = sand.u32 %s34, 1
        %s302 = smul.addr %s301, 8
        %s303 = scalar_lea.vmem [#allocation3], %s302
        // Predicated region
        $region49: #{tpu_custom_call.1} parent=47 // pred_check
          %p304 = pneg %p47
        $region50: #{tpu_custom_call.1} parent=47 // pred_check_branch
          %306 = sbr.rel (%p304) target = $region52
        $region51: #{tpu_custom_call.1} parent=47 // pred_region
          %307 = dma.done %s300, 128
        $region52: #{tpu_custom_call.1} parent=47 // pred_fallthru
          _
        // Predicated region
        $region53: #{tpu_custom_call.1} parent=47 // pred_check
          %p308 = pneg %p68
        $region54: #{tpu_custom_call.1} parent=47 // pred_check_branch
          %310 = sbr.rel (%p308) target = $region56
        $region55: #{tpu_custom_call.1} parent=47 // pred_region
          %311 = dma.done [#allocation7], 8192
        $region56: #{tpu_custom_call.1} parent=47 // pred_fallthru
          _
        // Predicated region
        $region57: #{tpu_custom_call.1} parent=47 // pred_check
          %p312 = pneg %p89
        $region58: #{tpu_custom_call.1} parent=47 // pred_check_branch
          %314 = sbr.rel (%p312) target = $region60
        $region59: #{tpu_custom_call.1} parent=47 // pred_region
          %315 = dma.done [#allocation7], 256
        $region60: #{tpu_custom_call.1} parent=47 // pred_fallthru
          _
        // Predicated region
        $region61: #{tpu_custom_call.1} parent=47 // pred_check
          %p316 = pneg %p110
        $region62: #{tpu_custom_call.1} parent=47 // pred_check_branch
          %318 = sbr.rel (%p316) target = $region64
        $region63: #{tpu_custom_call.1} parent=47 // pred_region
          %319 = dma.done [#allocation10], 18432
        $region64: #{tpu_custom_call.1} parent=47 // pred_fallthru
          _
        // Predicated region
        $region65: #{tpu_custom_call.1} parent=47 // pred_check
          %p320 = pneg %p152
        $region66: #{tpu_custom_call.1} parent=47 // pred_check_branch
          %322 = sbr.rel (%p320) target = $region68
        $region67: #{tpu_custom_call.1} parent=47 // pred_region
          %323 = dma.done [#allocation10], 2048
        $region68: #{tpu_custom_call.1} parent=47 // pred_fallthru
          _
        %s324 = sand.u32 %s34, 1
        %s325 = scalar_lea.sflag [#allocation4], %s324
        %s326 = sand.u32 %s34, 1
        %s327 = smul.addr %s326, 8
        %s328 = scalar_lea.vmem [#allocation3], %s327
        %p329 = pneg %p47
        %p330 = pneg %p44
        %p331 = pneg %p68
        %p332 = pneg %p65
        %p333 = pneg %p89
        %p334 = pneg %p86
        %p335 = pneg %p110
        %p336 = pneg %p107
        %p337 = pneg %p131
        %p338 = pneg %p128
        %p339 = pneg %p152
        %p340 = pneg %p149
        %p341 = pneg %p173
        %p342 = pneg %p170
        %p343 = pneg %p199
        %p344 = pneg %p196
        %s345 = sand.u32 %s186, 1
        %s346 = scalar_lea.sflag [#allocation5], %s345
        %s347 = sand.u32 %s186, 1
        %s348 = smul.addr %s347, 128
        %s349 = scalar_lea.vmem [#allocation12], %s348
        %s350 = smul.u32 16, %s26
        %v351 = vld [vmem:[%s303] sm:$0xff]
        %v352 = vmul.f32 %v351, %v351
        %vm353 = vcmask 261120
        %v354 = vsel %vm353, %v352, 0.0
        %355 = vadd.xlane.f32.xlu0 %v354
        %v356 = vpop.xlane.xlu0 %355
        %v357 = vrcp.pop 32.0
        %v358 = vmul.f32 %v356, %v357
        %v359 = vadd.f32 %v358, 1e-08
        %v360 = vrsqrt.pop %v359
        %v361 = vmul.f32 %v351, %v360
        %v362 = vld [vmem:[#allocation6] sm:$0xff]
        %v363 = vld [vmem:[#allocation6 + $0x80] sm:$0xff]
        %v364 = vld [vmem:[#allocation6 + $0x100] sm:$0xff]
        %v365 = vld [vmem:[#allocation6 + $0x180] sm:$0xff]
        %v366 = vld [vmem:[#allocation8] sm:$0x1]
        %v368 = vlaneseq
        %v369 = vshrl.u32 %v368, 7
        %v370 = vsub.s32 0, %v369
        %v371 = vrot.slane %v366, %v370
        %v374 = vsel %vm353, %v361, 0
        %376 = vmatprep.subr.mxu0 0.0
        %377 = vmatpush1.msra.mxu0 %v362
        %378 = vmatprep.subr.mxu0 0.0
        %379 = vmatpush1.msra.mxu0 %v363
        %380 = vmatprep.subr.mxu0 0.0
        %381 = vmatpush1.msra.mxu0 %v364
        %382 = vmatprep.subr.mxu0 0.0
        %383 = vmatpush1.msra.mxu0 %v365
        %384 = vmatprep.subr.mxu0 0.0
        %385 = vmatpush1.msra.mxu0 0.0
        %386 = vmatprep.subr.mxu0 0.0
        %387 = vmatpush1.msra.mxu0 0.0
        %388 = vmatprep.subr.mxu0 0.0
        %389 = vmatpush1.msra.mxu0 0.0
        %390 = vmatprep.subr.mxu0 0.0
        %391 = vmatpush1.msra.mxu0 0.0
        %392 = vmatprep.subr.mxu0 0.0
        %393 = vmatpush1.msra.mxu0 0.0
        %394 = vmatprep.subr.mxu0 0.0
        %395 = vmatpush1.msra.mxu0 0.0
        %396 = vmatprep.subr.mxu0 0.0
        %397 = vmatpush1.msra.mxu0 0.0
        %398 = vmatprep.subr.mxu0 0.0
        %399 = vmatpush1.msra.mxu0 0.0
        %400 = vmatprep.subr.mxu0 0.0
        %401 = vmatpush1.msra.mxu0 0.0
        %402 = vmatprep.subr.mxu0 0.0
        %403 = vmatpush1.msra.mxu0 0.0
        %404 = vmatprep.subr.mxu0 0.0
        %405 = vmatpush1.msra.mxu0 0.0
        %406 = vmatprep.subr.mxu0 0.0
        %407 = vmatpush1.msra.mxu0 0.0
        %408 = vmatprep.subr.mxu0 0.0
        %409 = vmatpush1.msra.mxu0 0.0
        %410 = vmatprep.subr.mxu0 0.0
        %411 = vmatpush1.msra.mxu0 0.0
        %412 = vmatprep.subr.mxu0 0.0
        %413 = vmatpush1.msra.mxu0 0.0
        %414 = vmatprep.subr.mxu0 0.0
        %415 = vmatpush1.msra.mxu0 0.0
        %416 = vmatprep.subr.mxu0 0.0
        %417 = vmatpush1.msra.mxu0 0.0
        %418 = vmatprep.subr.mxu0 0.0
        %419 = vmatpush1.msra.mxu0 0.0
        %420 = vmatprep.subr.mxu0 0.0
        %421 = vmatpush1.msra.mxu0 0.0
        %422 = vmatprep.subr.mxu0 0.0
        %423 = vmatpush1.msra.mxu0 0.0
        %424 = vmatprep.subr.mxu0 0.0
        %425 = vmatpush1.msra.mxu0 0.0
        %426 = vmatprep.subr.mxu0 0.0
        %427 = vmatpush1.msra.mxu0 0.0
        %428 = vmatprep.subr.mxu0 0.0
        %429 = vmatpush1.msra.mxu0 0.0
        %430 = vmatprep.subr.mxu0 0.0
        %431 = vmatpush1.msra.mxu0 0.0
        %432 = vmatprep.subr.mxu0 0.0
        %433 = vmatpush1.msra.mxu0 0.0
        %434 = vmatprep.subr.mxu0 0.0
        %435 = vmatpush1.msra.mxu0 0.0
        %436 = vmatprep.subr.mxu0 0.0
        %437 = vmatpush1.msra.mxu0 0.0
        %438 = vmatprep.subr.mxu0 0.0
        %439 = vmatpush1.msra.mxu0 0.0
        %440 = vmatprep.mubr.f32.mxu0 0.0
        %441 = vmatmul.mubr.f32.gmra.mrb[0].mxu0 %v374
        %v442 = vpop.f32.mrb[0].mxu0
        %v443 = vadd.f32 %v371, %v442
        %v444 = vpop.f32.mrb[0].mxu0
        %445 = vdwg.mxu0
        %v446 = vmul.f32 %v443, 0.25
        %vm447 = vcmp.ge.f32.partialorder %v446, 0.0
        %v448 = vmul.f32 %v446, 0.2
        %v449 = vsel %vm447, %v446, %v448
        %v450 = vld [vmem:[#allocation6 + $0x8] sm:$0xff]
        %v451 = vld [vmem:[#allocation6 + $0x88] sm:$0xff]
        %v452 = vld [vmem:[#allocation6 + $0x108] sm:$0xff]
        %v453 = vld [vmem:[#allocation6 + $0x188] sm:$0xff]
        %v454 = vld [vmem:[#allocation8 + $0x1] sm:$0x1]
        %v456 = vlaneseq
        %v457 = vshrl.u32 %v456, 7
        %v458 = vsub.s32 0, %v457
        %v459 = vrot.slane %v454, %v458
        %461 = vmatprep.subr.mxu0 0.0
        %462 = vmatpush1.msra.mxu0 %v450
        %463 = vmatprep.subr.mxu0 0.0
        %464 = vmatpush1.msra.mxu0 %v451
        %465 = vmatprep.subr.mxu0 0.0
        %466 = vmatpush1.msra.mxu0 %v452
        %467 = vmatprep.subr.mxu0 0.0
        %468 = vmatpush1.msra.mxu0 %v453
        %469 = vmatprep.subr.mxu0 0.0
        %470 = vmatpush1.msra.mxu0 0.0
        %471 = vmatprep.subr.mxu0 0.0
        %472 = vmatpush1.msra.mxu0 0.0
        %473 = vmatprep.subr.mxu0 0.0
        %474 = vmatpush1.msra.mxu0 0.0
        %475 = vmatprep.subr.mxu0 0.0
        %476 = vmatpush1.msra.mxu0 0.0
        %477 = vmatprep.subr.mxu0 0.0
        %478 = vmatpush1.msra.mxu0 0.0
        %479 = vmatprep.subr.mxu0 0.0
        %480 = vmatpush1.msra.mxu0 0.0
        %481 = vmatprep.subr.mxu0 0.0
        %482 = vmatpush1.msra.mxu0 0.0
        %483 = vmatprep.subr.mxu0 0.0
        %484 = vmatpush1.msra.mxu0 0.0
        %485 = vmatprep.subr.mxu0 0.0
        %486 = vmatpush1.msra.mxu0 0.0
        %487 = vmatprep.subr.mxu0 0.0
        %488 = vmatpush1.msra.mxu0 0.0
        %489 = vmatprep.subr.mxu0 0.0
        %490 = vmatpush1.msra.mxu0 0.0
        %491 = vmatprep.subr.mxu0 0.0
        %492 = vmatpush1.msra.mxu0 0.0
        %493 = vmatprep.subr.mxu0 0.0
        %494 = vmatpush1.msra.mxu0 0.0
        %495 = vmatprep.subr.mxu0 0.0
        %496 = vmatpush1.msra.mxu0 0.0
        %497 = vmatprep.subr.mxu0 0.0
        %498 = vmatpush1.msra.mxu0 0.0
        %499 = vmatprep.subr.mxu0 0.0
        %500 = vmatpush1.msra.mxu0 0.0
        %501 = vmatprep.subr.mxu0 0.0
        %502 = vmatpush1.msra.mxu0 0.0
        %503 = vmatprep.subr.mxu0 0.0
        %504 = vmatpush1.msra.mxu0 0.0
        %505 = vmatprep.subr.mxu0 0.0
        %506 = vmatpush1.msra.mxu0 0.0
        %507 = vmatprep.subr.mxu0 0.0
        %508 = vmatpush1.msra.mxu0 0.0
        %509 = vmatprep.subr.mxu0 0.0
        %510 = vmatpush1.msra.mxu0 0.0
        %511 = vmatprep.subr.mxu0 0.0
        %512 = vmatpush1.msra.mxu0 0.0
        %513 = vmatprep.subr.mxu0 0.0
        %514 = vmatpush1.msra.mxu0 0.0
        %515 = vmatprep.subr.mxu0 0.0
        %516 = vmatpush1.msra.mxu0 0.0
        %517 = vmatprep.subr.mxu0 0.0
        %518 = vmatpush1.msra.mxu0 0.0
        %519 = vmatprep.subr.mxu0 0.0
        %520 = vmatpush1.msra.mxu0 0.0
        %521 = vmatprep.subr.mxu0 0.0
        %522 = vmatpush1.msra.mxu0 0.0
        %523 = vmatprep.subr.mxu0 0.0
        %524 = vmatpush1.msra.mxu0 0.0
        %525 = vmatprep.mubr.f32.mxu0 0.0
        %526 = vmatmul.mubr.f32.gmra.mrb[0].mxu0 %v374
        %v527 = vpop.f32.mrb[0].mxu0
        %v528 = vadd.f32 %v459, %v527
        %v529 = vpop.f32.mrb[0].mxu0
        %530 = vdwg.mxu0
        %v531 = vmul.f32 %v528, 0.25
        %vm532 = vcmp.ge.f32.partialorder %v531, 0.0
        %v533 = vmul.f32 %v531, 0.2
        %v534 = vsel %vm532, %v531, %v533
        %v535 = vld [vmem:[#allocation6 + $0x10] sm:$0xff]
        %v536 = vld [vmem:[#allocation6 + $0x90] sm:$0xff]
        %v537 = vld [vmem:[#allocation6 + $0x110] sm:$0xff]
        %v538 = vld [vmem:[#allocation6 + $0x190] sm:$0xff]
        %v539 = vld [vmem:[#allocation8 + $0x2] sm:$0x1]
        %v541 = vlaneseq
        %v542 = vshrl.u32 %v541, 7
        %v543 = vsub.s32 0, %v542
        %v544 = vrot.slane %v539, %v543
        %546 = vmatprep.subr.mxu0 0.0
        %547 = vmatpush1.msra.mxu0 %v535
        %548 = vmatprep.subr.mxu0 0.0
        %549 = vmatpush1.msra.mxu0 %v536
        %550 = vmatprep.subr.mxu0 0.0
        %551 = vmatpush1.msra.mxu0 %v537
        %552 = vmatprep.subr.mxu0 0.0
        %553 = vmatpush1.msra.mxu0 %v538
        %554 = vmatprep.subr.mxu0 0.0
        %555 = vmatpush1.msra.mxu0 0.0
        %556 = vmatprep.subr.mxu0 0.0
        %557 = vmatpush1.msra.mxu0 0.0
        %558 = vmatprep.subr.mxu0 0.0
        %559 = vmatpush1.msra.mxu0 0.0
        %560 = vmatprep.subr.mxu0 0.0
        %561 = vmatpush1.msra.mxu0 0.0
        %562 = vmatprep.subr.mxu0 0.0
        %563 = vmatpush1.msra.mxu0 0.0
        %564 = vmatprep.subr.mxu0 0.0
        %565 = vmatpush1.msra.mxu0 0.0
        %566 = vmatprep.subr.mxu0 0.0
        %567 = vmatpush1.msra.mxu0 0.0
        %568 = vmatprep.subr.mxu0 0.0
        %569 = vmatpush1.msra.mxu0 0.0
        %570 = vmatprep.subr.mxu0 0.0
        %571 = vmatpush1.msra.mxu0 0.0
        %572 = vmatprep.subr.mxu0 0.0
        %573 = vmatpush1.msra.mxu0 0.0
        %574 = vmatprep.subr.mxu0 0.0
        %575 = vmatpush1.msra.mxu0 0.0
        %576 = vmatprep.subr.mxu0 0.0
        %577 = vmatpush1.msra.mxu0 0.0
        %578 = vmatprep.subr.mxu0 0.0
        %579 = vmatpush1.msra.mxu0 0.0
        %580 = vmatprep.subr.mxu0 0.0
        %581 = vmatpush1.msra.mxu0 0.0
        %582 = vmatprep.subr.mxu0 0.0
        %583 = vmatpush1.msra.mxu0 0.0
        %584 = vmatprep.subr.mxu0 0.0
        %585 = vmatpush1.msra.mxu0 0.0
        %586 = vmatprep.subr.mxu0 0.0
        %587 = vmatpush1.msra.mxu0 0.0
        %588 = vmatprep.subr.mxu0 0.0
        %589 = vmatpush1.msra.mxu0 0.0
        %590 = vmatprep.subr.mxu0 0.0
        %591 = vmatpush1.msra.mxu0 0.0
        %592 = vmatprep.subr.mxu0 0.0
        %593 = vmatpush1.msra.mxu0 0.0
        %594 = vmatprep.subr.mxu0 0.0
        %595 = vmatpush1.msra.mxu0 0.0
        %596 = vmatprep.subr.mxu0 0.0
        %597 = vmatpush1.msra.mxu0 0.0
        %598 = vmatprep.subr.mxu0 0.0
        %599 = vmatpush1.msra.mxu0 0.0
        %600 = vmatprep.subr.mxu0 0.0
        %601 = vmatpush1.msra.mxu0 0.0
        %602 = vmatprep.subr.mxu0 0.0
        %603 = vmatpush1.msra.mxu0 0.0
        %604 = vmatprep.subr.mxu0 0.0
        %605 = vmatpush1.msra.mxu0 0.0
        %606 = vmatprep.subr.mxu0 0.0
        %607 = vmatpush1.msra.mxu0 0.0
        %608 = vmatprep.subr.mxu0 0.0
        %609 = vmatpush1.msra.mxu0 0.0
        %610 = vmatprep.mubr.f32.mxu0 0.0
        %611 = vmatmul.mubr.f32.gmra.mrb[0].mxu0 %v374
        %v612 = vpop.f32.mrb[0].mxu0
        %v613 = vadd.f32 %v544, %v612
        %v614 = vpop.f32.mrb[0].mxu0
        %615 = vdwg.mxu0
        %v616 = vmul.f32 %v613, 0.25
        %vm617 = vcmp.ge.f32.partialorder %v616, 0.0
        %v618 = vmul.f32 %v616, 0.2
        %v619 = vsel %vm617, %v616, %v618
        %v620 = vld [vmem:[#allocation6 + $0x18] sm:$0xff]
        %v621 = vld [vmem:[#allocation6 + $0x98] sm:$0xff]
        %v622 = vld [vmem:[#allocation6 + $0x118] sm:$0xff]
        %v623 = vld [vmem:[#allocation6 + $0x198] sm:$0xff]
        %v624 = vld [vmem:[#allocation8 + $0x3] sm:$0x1]
        %v626 = vlaneseq
        %v627 = vshrl.u32 %v626, 7
        %v628 = vsub.s32 0, %v627
        %v629 = vrot.slane %v624, %v628
        %631 = vmatprep.subr.mxu0 0.0
        %632 = vmatpush1.msra.mxu0 %v620
        %633 = vmatprep.subr.mxu0 0.0
        %634 = vmatpush1.msra.mxu0 %v621
        %635 = vmatprep.subr.mxu0 0.0
        %636 = vmatpush1.msra.mxu0 %v622
        %637 = vmatprep.subr.mxu0 0.0
        %638 = vmatpush1.msra.mxu0 %v623
        %639 = vmatprep.subr.mxu0 0.0
        %640 = vmatpush1.msra.mxu0 0.0
        %641 = vmatprep.subr.mxu0 0.0
        %642 = vmatpush1.msra.mxu0 0.0
        %643 = vmatprep.subr.mxu0 0.0
        %644 = vmatpush1.msra.mxu0 0.0
        %645 = vmatprep.subr.mxu0 0.0
        %646 = vmatpush1.msra.mxu0 0.0
        %647 = vmatprep.subr.mxu0 0.0
        %648 = vmatpush1.msra.mxu0 0.0
        %649 = vmatprep.subr.mxu0 0.0
        %650 = vmatpush1.msra.mxu0 0.0
        %651 = vmatprep.subr.mxu0 0.0
        %652 = vmatpush1.msra.mxu0 0.0
        %653 = vmatprep.subr.mxu0 0.0
        %654 = vmatpush1.msra.mxu0 0.0
        %655 = vmatprep.subr.mxu0 0.0
        %656 = vmatpush1.msra.mxu0 0.0
        %657 = vmatprep.subr.mxu0 0.0
        %658 = vmatpush1.msra.mxu0 0.0
        %659 = vmatprep.subr.mxu0 0.0
        %660 = vmatpush1.msra.mxu0 0.0
        %661 = vmatprep.subr.mxu0 0.0
        %662 = vmatpush1.msra.mxu0 0.0
        %663 = vmatprep.subr.mxu0 0.0
        %664 = vmatpush1.msra.mxu0 0.0
        %665 = vmatprep.subr.mxu0 0.0
        %666 = vmatpush1.msra.mxu0 0.0
        %667 = vmatprep.subr.mxu0 0.0
        %668 = vmatpush1.msra.mxu0 0.0
        %669 = vmatprep.subr.mxu0 0.0
        %670 = vmatpush1.msra.mxu0 0.0
        %671 = vmatprep.subr.mxu0 0.0
        %672 = vmatpush1.msra.mxu0 0.0
        %673 = vmatprep.subr.mxu0 0.0
        %674 = vmatpush1.msra.mxu0 0.0
        %675 = vmatprep.subr.mxu0 0.0
        %676 = vmatpush1.msra.mxu0 0.0
        %677 = vmatprep.subr.mxu0 0.0
        %678 = vmatpush1.msra.mxu0 0.0
        %679 = vmatprep.subr.mxu0 0.0
        %680 = vmatpush1.msra.mxu0 0.0
        %681 = vmatprep.subr.mxu0 0.0
        %682 = vmatpush1.msra.mxu0 0.0
        %683 = vmatprep.subr.mxu0 0.0
        %684 = vmatpush1.msra.mxu0 0.0
        %685 = vmatprep.subr.mxu0 0.0
        %686 = vmatpush1.msra.mxu0 0.0
        %687 = vmatprep.subr.mxu0 0.0
        %688 = vmatpush1.msra.mxu0 0.0
        %689 = vmatprep.subr.mxu0 0.0
        %690 = vmatpush1.msra.mxu0 0.0
        %691 = vmatprep.subr.mxu0 0.0
        %692 = vmatpush1.msra.mxu0 0.0
        %693 = vmatprep.subr.mxu0 0.0
        %694 = vmatpush1.msra.mxu0 0.0
        %695 = vmatprep.mubr.f32.mxu0 0.0
        %696 = vmatmul.mubr.f32.gmra.mrb[0].mxu0 %v374
        %v697 = vpop.f32.mrb[0].mxu0
        %v698 = vadd.f32 %v629, %v697
        %v699 = vpop.f32.mrb[0].mxu0
        %700 = vdwg.mxu0
        %v701 = vmul.f32 %v698, 0.25
        %vm702 = vcmp.ge.f32.partialorder %v701, 0.0
        %v703 = vmul.f32 %v701, 0.2
        %v704 = vsel %vm702, %v701, %v703
        %v705 = vld [vmem:[#allocation6 + $0x20] sm:$0xff]
        %v706 = vld [vmem:[#allocation6 + $0xa0] sm:$0xff]
        %v707 = vld [vmem:[#allocation6 + $0x120] sm:$0xff]
        %v708 = vld [vmem:[#allocation6 + $0x1a0] sm:$0xff]
        %v709 = vld [vmem:[#allocation8 + $0x4] sm:$0x1]
        %v711 = vlaneseq
        %v712 = vshrl.u32 %v711, 7
        %v713 = vsub.s32 0, %v712
        %v714 = vrot.slane %v709, %v713
        %716 = vmatprep.subr.mxu0 0.0
        %717 = vmatpush1.msra.mxu0 %v705
        %718 = vmatprep.subr.mxu0 0.0
        %719 = vmatpush1.msra.mxu0 %v706
        %720 = vmatprep.subr.mxu0 0.0
        %721 = vmatpush1.msra.mxu0 %v707
        %722 = vmatprep.subr.mxu0 0.0
        %723 = vmatpush1.msra.mxu0 %v708
        %724 = vmatprep.subr.mxu0 0.0
        %725 = vmatpush1.msra.mxu0 0.0
        %726 = vmatprep.subr.mxu0 0.0
        %727 = vmatpush1.msra.mxu0 0.0
        %728 = vmatprep.subr.mxu0 0.0
        %729 = vmatpush1.msra.mxu0 0.0
        %730 = vmatprep.subr.mxu0 0.0
        %731 = vmatpush1.msra.mxu0 0.0
        %732 = vmatprep.subr.mxu0 0.0
        %733 = vmatpush1.msra.mxu0 0.0
        %734 = vmatprep.subr.mxu0 0.0
        %735 = vmatpush1.msra.mxu0 0.0
        %736 = vmatprep.subr.mxu0 0.0
        %737 = vmatpush1.msra.mxu0 0.0
        %738 = vmatprep.subr.mxu0 0.0
        %739 = vmatpush1.msra.mxu0 0.0
        %740 = vmatprep.subr.mxu0 0.0
        %741 = vmatpush1.msra.mxu0 0.0
        %742 = vmatprep.subr.mxu0 0.0
        %743 = vmatpush1.msra.mxu0 0.0
        %744 = vmatprep.subr.mxu0 0.0
        %745 = vmatpush1.msra.mxu0 0.0
        %746 = vmatprep.subr.mxu0 0.0
        %747 = vmatpush1.msra.mxu0 0.0
        %748 = vmatprep.subr.mxu0 0.0
        %749 = vmatpush1.msra.mxu0 0.0
        %750 = vmatprep.subr.mxu0 0.0
        %751 = vmatpush1.msra.mxu0 0.0
        %752 = vmatprep.subr.mxu0 0.0
        %753 = vmatpush1.msra.mxu0 0.0
        %754 = vmatprep.subr.mxu0 0.0
        %755 = vmatpush1.msra.mxu0 0.0
        %756 = vmatprep.subr.mxu0 0.0
        %757 = vmatpush1.msra.mxu0 0.0
        %758 = vmatprep.subr.mxu0 0.0
        %759 = vmatpush1.msra.mxu0 0.0
        %760 = vmatprep.subr.mxu0 0.0
        %761 = vmatpush1.msra.mxu0 0.0
        %762 = vmatprep.subr.mxu0 0.0
        %763 = vmatpush1.msra.mxu0 0.0
        %764 = vmatprep.subr.mxu0 0.0
        %765 = vmatpush1.msra.mxu0 0.0
        %766 = vmatprep.subr.mxu0 0.0
        %767 = vmatpush1.msra.mxu0 0.0
        %768 = vmatprep.subr.mxu0 0.0
        %769 = vmatpush1.msra.mxu0 0.0
        %770 = vmatprep.subr.mxu0 0.0
        %771 = vmatpush1.msra.mxu0 0.0
        %772 = vmatprep.subr.mxu0 0.0
        %773 = vmatpush1.msra.mxu0 0.0
        %774 = vmatprep.subr.mxu0 0.0
        %775 = vmatpush1.msra.mxu0 0.0
        %776 = vmatprep.subr.mxu0 0.0
        %777 = vmatpush1.msra.mxu0 0.0
        %778 = vmatprep.subr.mxu0 0.0
        %779 = vmatpush1.msra.mxu0 0.0
        %780 = vmatprep.mubr.f32.mxu0 0.0
        %781 = vmatmul.mubr.f32.gmra.mrb[0].mxu0 %v374
        %v782 = vpop.f32.mrb[0].mxu0
        %v783 = vadd.f32 %v714, %v782
        %v784 = vpop.f32.mrb[0].mxu0
        %785 = vdwg.mxu0
        %v786 = vmul.f32 %v783, 0.25
        %vm787 = vcmp.ge.f32.partialorder %v786, 0.0
        %v788 = vmul.f32 %v786, 0.2
        %v789 = vsel %vm787, %v786, %v788
        %v790 = vld [vmem:[#allocation6 + $0x28] sm:$0xff]
        %v791 = vld [vmem:[#allocation6 + $0xa8] sm:$0xff]
        %v792 = vld [vmem:[#allocation6 + $0x128] sm:$0xff]
        %v793 = vld [vmem:[#allocation6 + $0x1a8] sm:$0xff]
        %v794 = vld [vmem:[#allocation8 + $0x5] sm:$0x1]
        %v796 = vlaneseq
        %v797 = vshrl.u32 %v796, 7
        %v798 = vsub.s32 0, %v797
        %v799 = vrot.slane %v794, %v798
        %801 = vmatprep.subr.mxu0 0.0
        %802 = vmatpush1.msra.mxu0 %v790
        %803 = vmatprep.subr.mxu0 0.0
        %804 = vmatpush1.msra.mxu0 %v791
        %805 = vmatprep.subr.mxu0 0.0
        %806 = vmatpush1.msra.mxu0 %v792
        %807 = vmatprep.subr.mxu0 0.0
        %808 = vmatpush1.msra.mxu0 %v793
        %809 = vmatprep.subr.mxu0 0.0
        %810 = vmatpush1.msra.mxu0 0.0
        %811 = vmatprep.subr.mxu0 0.0
        %812 = vmatpush1.msra.mxu0 0.0
        %813 = vmatprep.subr.mxu0 0.0
        %814 = vmatpush1.msra.mxu0 0.0
        %815 = vmatprep.subr.mxu0 0.0
        %816 = vmatpush1.msra.mxu0 0.0
        %817 = vmatprep.subr.mxu0 0.0
        %818 = vmatpush1.msra.mxu0 0.0
        %819 = vmatprep.subr.mxu0 0.0
        %820 = vmatpush1.msra.mxu0 0.0
        %821 = vmatprep.subr.mxu0 0.0
        %822 = vmatpush1.msra.mxu0 0.0
        %823 = vmatprep.subr.mxu0 0.0
        %824 = vmatpush1.msra.mxu0 0.0
        %825 = vmatprep.subr.mxu0 0.0
        %826 = vmatpush1.msra.mxu0 0.0
        %827 = vmatprep.subr.mxu0 0.0
        %828 = vmatpush1.msra.mxu0 0.0
        %829 = vmatprep.subr.mxu0 0.0
        %830 = vmatpush1.msra.mxu0 0.0
        %831 = vmatprep.subr.mxu0 0.0
        %832 = vmatpush1.msra.mxu0 0.0
        %833 = vmatprep.subr.mxu0 0.0
        %834 = vmatpush1.msra.mxu0 0.0
        %835 = vmatprep.subr.mxu0 0.0
        %836 = vmatpush1.msra.mxu0 0.0
        %837 = vmatprep.subr.mxu0 0.0
        %838 = vmatpush1.msra.mxu0 0.0
        %839 = vmatprep.subr.mxu0 0.0
        %840 = vmatpush1.msra.mxu0 0.0
        %841 = vmatprep.subr.mxu0 0.0
        %842 = vmatpush1.msra.mxu0 0.0
        %843 = vmatprep.subr.mxu0 0.0
        %844 = vmatpush1.msra.mxu0 0.0
        %845 = vmatprep.subr.mxu0 0.0
        %846 = vmatpush1.msra.mxu0 0.0
        %847 = vmatprep.subr.mxu0 0.0
        %848 = vmatpush1.msra.mxu0 0.0
        %849 = vmatprep.subr.mxu0 0.0
        %850 = vmatpush1.msra.mxu0 0.0
        %851 = vmatprep.subr.mxu0 0.0
        %852 = vmatpush1.msra.mxu0 0.0
        %853 = vmatprep.subr.mxu0 0.0
        %854 = vmatpush1.msra.mxu0 0.0
        %855 = vmatprep.subr.mxu0 0.0
        %856 = vmatpush1.msra.mxu0 0.0
        %857 = vmatprep.subr.mxu0 0.0
        %858 = vmatpush1.msra.mxu0 0.0
        %859 = vmatprep.subr.mxu0 0.0
        %860 = vmatpush1.msra.mxu0 0.0
        %861 = vmatprep.subr.mxu0 0.0
        %862 = vmatpush1.msra.mxu0 0.0
        %863 = vmatprep.subr.mxu0 0.0
        %864 = vmatpush1.msra.mxu0 0.0
        %865 = vmatprep.mubr.f32.mxu0 0.0
        %866 = vmatmul.mubr.f32.gmra.mrb[0].mxu0 %v374
        %v867 = vpop.f32.mrb[0].mxu0
        %v868 = vadd.f32 %v799, %v867
        %v869 = vpop.f32.mrb[0].mxu0
        %870 = vdwg.mxu0
        %v871 = vmul.f32 %v868, 0.25
        %vm872 = vcmp.ge.f32.partialorder %v871, 0.0
        %v873 = vmul.f32 %v871, 0.2
        %v874 = vsel %vm872, %v871, %v873
        %v875 = vld [vmem:[#allocation6 + $0x30] sm:$0xff]
        %v876 = vld [vmem:[#allocation6 + $0xb0] sm:$0xff]
        %v877 = vld [vmem:[#allocation6 + $0x130] sm:$0xff]
        %v878 = vld [vmem:[#allocation6 + $0x1b0] sm:$0xff]
        %v879 = vld [vmem:[#allocation8 + $0x6] sm:$0x1]
        %v881 = vlaneseq
        %v882 = vshrl.u32 %v881, 7
        %v883 = vsub.s32 0, %v882
        %v884 = vrot.slane %v879, %v883
        %886 = vmatprep.subr.mxu0 0.0
        %887 = vmatpush1.msra.mxu0 %v875
        %888 = vmatprep.subr.mxu0 0.0
        %889 = vmatpush1.msra.mxu0 %v876
        %890 = vmatprep.subr.mxu0 0.0
        %891 = vmatpush1.msra.mxu0 %v877
        %892 = vmatprep.subr.mxu0 0.0
        %893 = vmatpush1.msra.mxu0 %v878
        %894 = vmatprep.subr.mxu0 0.0
        %895 = vmatpush1.msra.mxu0 0.0
        %896 = vmatprep.subr.mxu0 0.0
        %897 = vmatpush1.msra.mxu0 0.0
        %898 = vmatprep.subr.mxu0 0.0
        %899 = vmatpush1.msra.mxu0 0.0
        %900 = vmatprep.subr.mxu0 0.0
        %901 = vmatpush1.msra.mxu0 0.0
        %902 = vmatprep.subr.mxu0 0.0
        %903 = vmatpush1.msra.mxu0 0.0
        %904 = vmatprep.subr.mxu0 0.0
        %905 = vmatpush1.msra.mxu0 0.0
        %906 = vmatprep.subr.mxu0 0.0
        %907 = vmatpush1.msra.mxu0 0.0
        %908 = vmatprep.subr.mxu0 0.0
        %909 = vmatpush1.msra.mxu0 0.0
        %910 = vmatprep.subr.mxu0 0.0
        %911 = vmatpush1.msra.mxu0 0.0
        %912 = vmatprep.subr.mxu0 0.0
        %913 = vmatpush1.msra.mxu0 0.0
        %914 = vmatprep.subr.mxu0 0.0
        %915 = vmatpush1.msra.mxu0 0.0
        %916 = vmatprep.subr.mxu0 0.0
        %917 = vmatpush1.msra.mxu0 0.0
        %918 = vmatprep.subr.mxu0 0.0
        %919 = vmatpush1.msra.mxu0 0.0
        %920 = vmatprep.subr.mxu0 0.0
        %921 = vmatpush1.msra.mxu0 0.0
        %922 = vmatprep.subr.mxu0 0.0
        %923 = vmatpush1.msra.mxu0 0.0
        %924 = vmatprep.subr.mxu0 0.0
        %925 = vmatpush1.msra.mxu0 0.0
        %926 = vmatprep.subr.mxu0 0.0
        %927 = vmatpush1.msra.mxu0 0.0
        %928 = vmatprep.subr.mxu0 0.0
        %929 = vmatpush1.msra.mxu0 0.0
        %930 = vmatprep.subr.mxu0 0.0
        %931 = vmatpush1.msra.mxu0 0.0
        %932 = vmatprep.subr.mxu0 0.0
        %933 = vmatpush1.msra.mxu0 0.0
        %934 = vmatprep.subr.mxu0 0.0
        %935 = vmatpush1.msra.mxu0 0.0
        %936 = vmatprep.subr.mxu0 0.0
        %937 = vmatpush1.msra.mxu0 0.0
        %938 = vmatprep.subr.mxu0 0.0
        %939 = vmatpush1.msra.mxu0 0.0
        %940 = vmatprep.subr.mxu0 0.0
        %941 = vmatpush1.msra.mxu0 0.0
        %942 = vmatprep.subr.mxu0 0.0
        %943 = vmatpush1.msra.mxu0 0.0
        %944 = vmatprep.subr.mxu0 0.0
        %945 = vmatpush1.msra.mxu0 0.0
        %946 = vmatprep.subr.mxu0 0.0
        %947 = vmatpush1.msra.mxu0 0.0
        %948 = vmatprep.subr.mxu0 0.0
        %949 = vmatpush1.msra.mxu0 0.0
        %950 = vmatprep.mubr.f32.mxu0 0.0
        %951 = vmatmul.mubr.f32.gmra.mrb[0].mxu0 %v374
        %v952 = vpop.f32.mrb[0].mxu0
        %v953 = vadd.f32 %v884, %v952
        %v954 = vpop.f32.mrb[0].mxu0
        %955 = vdwg.mxu0
        %v956 = vmul.f32 %v953, 0.25
        %vm957 = vcmp.ge.f32.partialorder %v956, 0.0
        %v958 = vmul.f32 %v956, 0.2
        %v959 = vsel %vm957, %v956, %v958
        %v960 = vld [vmem:[#allocation6 + $0x38] sm:$0xff]
        %v961 = vld [vmem:[#allocation6 + $0xb8] sm:$0xff]
        %v962 = vld [vmem:[#allocation6 + $0x138] sm:$0xff]
        %v963 = vld [vmem:[#allocation6 + $0x1b8] sm:$0xff]
        %v964 = vld [vmem:[#allocation8 + $0x7] sm:$0x1]
        %v966 = vlaneseq
        %v967 = vshrl.u32 %v966, 7
        %v968 = vsub.s32 0, %v967
        %v969 = vrot.slane %v964, %v968
        %971 = vmatprep.subr.mxu0 0.0
        %972 = vmatpush1.msra.mxu0 %v960
        %973 = vmatprep.subr.mxu0 0.0
        %974 = vmatpush1.msra.mxu0 %v961
        %975 = vmatprep.subr.mxu0 0.0
        %976 = vmatpush1.msra.mxu0 %v962
        %977 = vmatprep.subr.mxu0 0.0
        %978 = vmatpush1.msra.mxu0 %v963
        %979 = vmatprep.subr.mxu0 0.0
        %980 = vmatpush1.msra.mxu0 0.0
        %981 = vmatprep.subr.mxu0 0.0
        %982 = vmatpush1.msra.mxu0 0.0
        %983 = vmatprep.subr.mxu0 0.0
        %984 = vmatpush1.msra.mxu0 0.0
        %985 = vmatprep.subr.mxu0 0.0
        %986 = vmatpush1.msra.mxu0 0.0
        %987 = vmatprep.subr.mxu0 0.0
        %988 = vmatpush1.msra.mxu0 0.0
        %989 = vmatprep.subr.mxu0 0.0
        %990 = vmatpush1.msra.mxu0 0.0
        %991 = vmatprep.subr.mxu0 0.0
        %992 = vmatpush1.msra.mxu0 0.0
        %993 = vmatprep.subr.mxu0 0.0
        %994 = vmatpush1.msra.mxu0 0.0
        %995 = vmatprep.subr.mxu0 0.0
        %996 = vmatpush1.msra.mxu0 0.0
        %997 = vmatprep.subr.mxu0 0.0
        %998 = vmatpush1.msra.mxu0 0.0
        %999 = vmatprep.subr.mxu0 0.0
        %1000 = vmatpush1.msra.mxu0 0.0
        %1001 = vmatprep.subr.mxu0 0.0
        %1002 = vmatpush1.msra.mxu0 0.0
        %1003 = vmatprep.subr.mxu0 0.0
        %1004 = vmatpush1.msra.mxu0 0.0
        %1005 = vmatprep.subr.mxu0 0.0
        %1006 = vmatpush1.msra.mxu0 0.0
        %1007 = vmatprep.subr.mxu0 0.0
        %1008 = vmatpush1.msra.mxu0 0.0
        %1009 = vmatprep.subr.mxu0 0.0
        %1010 = vmatpush1.msra.mxu0 0.0
        %1011 = vmatprep.subr.mxu0 0.0
        %1012 = vmatpush1.msra.mxu0 0.0
        %1013 = vmatprep.subr.mxu0 0.0
        %1014 = vmatpush1.msra.mxu0 0.0
        %1015 = vmatprep.subr.mxu0 0.0
        %1016 = vmatpush1.msra.mxu0 0.0
        %1017 = vmatprep.subr.mxu0 0.0
        %1018 = vmatpush1.msra.mxu0 0.0
        %1019 = vmatprep.subr.mxu0 0.0
        %1020 = vmatpush1.msra.mxu0 0.0
        %1021 = vmatprep.subr.mxu0 0.0
        %1022 = vmatpush1.msra.mxu0 0.0
        %1023 = vmatprep.subr.mxu0 0.0
        %1024 = vmatpush1.msra.mxu0 0.0
        %1025 = vmatprep.subr.mxu0 0.0
        %1026 = vmatpush1.msra.mxu0 0.0
        %1027 = vmatprep.subr.mxu0 0.0
        %1028 = vmatpush1.msra.mxu0 0.0
        %1029 = vmatprep.subr.mxu0 0.0
        %1030 = vmatpush1.msra.mxu0 0.0
        %1031 = vmatprep.subr.mxu0 0.0
        %1032 = vmatpush1.msra.mxu0 0.0
        %1033 = vmatprep.subr.mxu0 0.0
        %1034 = vmatpush1.msra.mxu0 0.0
        %1035 = vmatprep.mubr.f32.mxu0 0.0
        %1036 = vmatmul.mubr.f32.gmra.mrb[0].mxu0 %v374
        %v1037 = vpop.f32.mrb[0].mxu0
        %v1038 = vadd.f32 %v969, %v1037
        %v1039 = vpop.f32.mrb[0].mxu0
        %1040 = vdwg.mxu0
        %v1041 = vmul.f32 %v1038, 0.25
        %vm1042 = vcmp.ge.f32.partialorder %v1041, 0.0
        %v1043 = vmul.f32 %v1041, 0.2
        %v1044 = vsel %vm1042, %v1041, %v1043
        %v1045 = vld [vmem:[#allocation6 + $0x40] sm:$0xff]
        %v1046 = vld [vmem:[#allocation6 + $0xc0] sm:$0xff]
        %v1047 = vld [vmem:[#allocation6 + $0x140] sm:$0xff]
        %v1048 = vld [vmem:[#allocation6 + $0x1c0] sm:$0xff]
        %v1049 = vld [vmem:[#allocation8 + $0x8] sm:$0x1]
        %v1051 = vlaneseq
        %v1052 = vshrl.u32 %v1051, 7
        %v1053 = vsub.s32 0, %v1052
        %v1054 = vrot.slane %v1049, %v1053
        %1056 = vmatprep.subr.mxu0 0.0
        %1057 = vmatpush1.msra.mxu0 %v1045
        %1058 = vmatprep.subr.mxu0 0.0
        %1059 = vmatpush1.msra.mxu0 %v1046
        %1060 = vmatprep.subr.mxu0 0.0
        %1061 = vmatpush1.msra.mxu0 %v1047
        %1062 = vmatprep.subr.mxu0 0.0
        %1063 = vmatpush1.msra.mxu0 %v1048
        %1064 = vmatprep.subr.mxu0 0.0
        %1065 = vmatpush1.msra.mxu0 0.0
        %1066 = vmatprep.subr.mxu0 0.0
        %1067 = vmatpush1.msra.mxu0 0.0
        %1068 = vmatprep.subr.mxu0 0.0
        %1069 = vmatpush1.msra.mxu0 0.0
        %1070 = vmatprep.subr.mxu0 0.0
        %1071 = vmatpush1.msra.mxu0 0.0
        %1072 = vmatprep.subr.mxu0 0.0
        %1073 = vmatpush1.msra.mxu0 0.0
        %1074 = vmatprep.subr.mxu0 0.0
        %1075 = vmatpush1.msra.mxu0 0.0
        %1076 = vmatprep.subr.mxu0 0.0
        %1077 = vmatpush1.msra.mxu0 0.0
        %1078 = vmatprep.subr.mxu0 0.0
        %1079 = vmatpush1.msra.mxu0 0.0
        %1080 = vmatprep.subr.mxu0 0.0
        %1081 = vmatpush1.msra.mxu0 0.0
        %1082 = vmatprep.subr.mxu0 0.0
        %1083 = vmatpush1.msra.mxu0 0.0
        %1084 = vmatprep.subr.mxu0 0.0
        %1085 = vmatpush1.msra.mxu0 0.0
        %1086 = vmatprep.subr.mxu0 0.0
        %1087 = vmatpush1.msra.mxu0 0.0
        %1088 = vmatprep.subr.mxu0 0.0
        %1089 = vmatpush1.msra.mxu0 0.0
        %1090 = vmatprep.subr.mxu0 0.0
        %1091 = vmatpush1.msra.mxu0 0.0
        %1092 = vmatprep.subr.mxu0 0.0
        %1093 = vmatpush1.msra.mxu0 0.0
        %1094 = vmatprep.subr.mxu0 0.0
        %1095 = vmatpush1.msra.mxu0 0.0
        %1096 = vmatprep.subr.mxu0 0.0
        %1097 = vmatpush1.msra.mxu0 0.0
        %1098 = vmatprep.subr.mxu0 0.0
        %1099 = vmatpush1.msra.mxu0 0.0
        %1100 = vmatprep.subr.mxu0 0.0
        %1101 = vmatpush1.msra.mxu0 0.0
        %1102 = vmatprep.subr.mxu0 0.0
        %1103 = vmatpush1.msra.mxu0 0.0
        %1104 = vmatprep.subr.mxu0 0.0
        %1105 = vmatpush1.msra.mxu0 0.0
        %1106 = vmatprep.subr.mxu0 0.0
        %1107 = vmatpush1.msra.mxu0 0.0
        %1108 = vmatprep.subr.mxu0 0.0
        %1109 = vmatpush1.msra.mxu0 0.0
        %1110 = vmatprep.subr.mxu0 0.0
        %1111 = vmatpush1.msra.mxu0 0.0
        %1112 = vmatprep.subr.mxu0 0.0
        %1113 = vmatpush1.msra.mxu0 0.0
        %1114 = vmatprep.subr.mxu0 0.0
        %1115 = vmatpush1.msra.mxu0 0.0
        %1116 = vmatprep.subr.mxu0 0.0
        %1117 = vmatpush1.msra.mxu0 0.0
        %1118 = vmatprep.subr.mxu0 0.0
        %1119 = vmatpush1.msra.mxu0 0.0
        %1120 = vmatprep.mubr.f32.mxu0 0.0
        %1121 = vmatmul.mubr.f32.gmra.mrb[0].mxu0 %v374
        %v1122 = vpop.f32.mrb[0].mxu0
        %v1123 = vadd.f32 %v1054, %v1122
        %v1124 = vpop.f32.mrb[0].mxu0
        %1125 = vdwg.mxu0
        %v1126 = vmul.f32 %v1123, 0.25
        %vm1127 = vcmp.ge.f32.partialorder %v1126, 0.0
        %v1128 = vmul.f32 %v1126, 0.2
        %v1129 = vsel %vm1127, %v1126, %v1128
        %v1130 = vld [vmem:[#allocation6 + $0x48] sm:$0xff]
        %v1131 = vld [vmem:[#allocation6 + $0xc8] sm:$0xff]
        %v1132 = vld [vmem:[#allocation6 + $0x148] sm:$0xff]
        %v1133 = vld [vmem:[#allocation6 + $0x1c8] sm:$0xff]
        %v1134 = vld [vmem:[#allocation8 + $0x9] sm:$0x1]
        %v1136 = vlaneseq
        %v1137 = vshrl.u32 %v1136, 7
        %v1138 = vsub.s32 0, %v1137
        %v1139 = vrot.slane %v1134, %v1138
        %1141 = vmatprep.subr.mxu0 0.0
        %1142 = vmatpush1.msra.mxu0 %v1130
        %1143 = vmatprep.subr.mxu0 0.0
        %1144 = vmatpush1.msra.mxu0 %v1131
        %1145 = vmatprep.subr.mxu0 0.0
        %1146 = vmatpush1.msra.mxu0 %v1132
        %1147 = vmatprep.subr.mxu0 0.0
        %1148 = vmatpush1.msra.mxu0 %v1133
        %1149 = vmatprep.subr.mxu0 0.0
        %1150 = vmatpush1.msra.mxu0 0.0
        %1151 = vmatprep.subr.mxu0 0.0
        %1152 = vmatpush1.msra.mxu0 0.0
        %1153 = vmatprep.subr.mxu0 0.0
        %1154 = vmatpush1.msra.mxu0 0.0
        %1155 = vmatprep.subr.mxu0 0.0
        %1156 = vmatpush1.msra.mxu0 0.0
        %1157 = vmatprep.subr.mxu0 0.0
        %1158 = vmatpush1.msra.mxu0 0.0
        %1159 = vmatprep.subr.mxu0 0.0
        %1160 = vmatpush1.msra.mxu0 0.0
        %1161 = vmatprep.subr.mxu0 0.0
        %1162 = vmatpush1.msra.mxu0 0.0
        %1163 = vmatprep.subr.mxu0 0.0
        %1164 = vmatpush1.msra.mxu0 0.0
        %1165 = vmatprep.subr.mxu0 0.0
        %1166 = vmatpush1.msra.mxu0 0.0
        %1167 = vmatprep.subr.mxu0 0.0
        %1168 = vmatpush1.msra.mxu0 0.0
        %1169 = vmatprep.subr.mxu0 0.0
        %1170 = vmatpush1.msra.mxu0 0.0
        %1171 = vmatprep.subr.mxu0 0.0
        %1172 = vmatpush1.msra.mxu0 0.0
        %1173 = vmatprep.subr.mxu0 0.0
        %1174 = vmatpush1.msra.mxu0 0.0
        %1175 = vmatprep.subr.mxu0 0.0
        %1176 = vmatpush1.msra.mxu0 0.0
        %1177 = vmatprep.subr.mxu0 0.0
        %1178 = vmatpush1.msra.mxu0 0.0
        %1179 = vmatprep.subr.mxu0 0.0
        %1180 = vmatpush1.msra.mxu0 0.0
        %1181 = vmatprep.subr.mxu0 0.0
        %1182 = vmatpush1.msra.mxu0 0.0
        %1183 = vmatprep.subr.mxu0 0.0
        %1184 = vmatpush1.msra.mxu0 0.0
        %1185 = vmatprep.subr.mxu0 0.0
        %1186 = vmatpush1.msra.mxu0 0.0
        %1187 = vmatprep.subr.mxu0 0.0
        %1188 = vmatpush1.msra.mxu0 0.0
        %1189 = vmatprep.subr.mxu0 0.0
        %1190 = vmatpush1.msra.mxu0 0.0
        %1191 = vmatprep.subr.mxu0 0.0
        %1192 = vmatpush1.msra.mxu0 0.0
        %1193 = vmatprep.subr.mxu0 0.0
        %1194 = vmatpush1.msra.mxu0 0.0
        %1195 = vmatprep.subr.mxu0 0.0
        %1196 = vmatpush1.msra.mxu0 0.0
        %1197 = vmatprep.subr.mxu0 0.0
        %1198 = vmatpush1.msra.mxu0 0.0
        %1199 = vmatprep.subr.mxu0 0.0
        %1200 = vmatpush1.msra.mxu0 0.0
        %1201 = vmatprep.subr.mxu0 0.0
        %1202 = vmatpush1.msra.mxu0 0.0
        %1203 = vmatprep.subr.mxu0 0.0
        %1204 = vmatpush1.msra.mxu0 0.0
        %1205 = vmatprep.mubr.f32.mxu0 0.0
        %1206 = vmatmul.mubr.f32.gmra.mrb[0].mxu0 %v374
        %v1207 = vpop.f32.mrb[0].mxu0
        %v1208 = vadd.f32 %v1139, %v1207
        %v1209 = vpop.f32.mrb[0].mxu0
        %1210 = vdwg.mxu0
        %v1211 = vmul.f32 %v1208, 0.25
        %vm1212 = vcmp.ge.f32.partialorder %v1211, 0.0
        %v1213 = vmul.f32 %v1211, 0.2
        %v1214 = vsel %vm1212, %v1211, %v1213
        %v1215 = vld [vmem:[#allocation6 + $0x50] sm:$0xff]
        %v1216 = vld [vmem:[#allocation6 + $0xd0] sm:$0xff]
        %v1217 = vld [vmem:[#allocation6 + $0x150] sm:$0xff]
        %v1218 = vld [vmem:[#allocation6 + $0x1d0] sm:$0xff]
        %v1219 = vld [vmem:[#allocation8 + $0xa] sm:$0x1]
        %v1221 = vlaneseq
        %v1222 = vshrl.u32 %v1221, 7
        %v1223 = vsub.s32 0, %v1222
        %v1224 = vrot.slane %v1219, %v1223
        %1226 = vmatprep.subr.mxu0 0.0
        %1227 = vmatpush1.msra.mxu0 %v1215
        %1228 = vmatprep.subr.mxu0 0.0
        %1229 = vmatpush1.msra.mxu0 %v1216
        %1230 = vmatprep.subr.mxu0 0.0
        %1231 = vmatpush1.msra.mxu0 %v1217
        %1232 = vmatprep.subr.mxu0 0.0
        %1233 = vmatpush1.msra.mxu0 %v1218
        %1234 = vmatprep.subr.mxu0 0.0
        %1235 = vmatpush1.msra.mxu0 0.0
        %1236 = vmatprep.subr.mxu0 0.0
        %1237 = vmatpush1.msra.mxu0 0.0
        %1238 = vmatprep.subr.mxu0 0.0
        %1239 = vmatpush1.msra.mxu0 0.0
        %1240 = vmatprep.subr.mxu0 0.0
        %1241 = vmatpush1.msra.mxu0 0.0
        %1242 = vmatprep.subr.mxu0 0.0
        %1243 = vmatpush1.msra.mxu0 0.0
        %1244 = vmatprep.subr.mxu0 0.0
        %1245 = vmatpush1.msra.mxu0 0.0
        %1246 = vmatprep.subr.mxu0 0.0
        %1247 = vmatpush1.msra.mxu0 0.0
        %1248 = vmatprep.subr.mxu0 0.0
        %1249 = vmatpush1.msra.mxu0 0.0
        %1250 = vmatprep.subr.mxu0 0.0
        %1251 = vmatpush1.msra.mxu0 0.0
        %1252 = vmatprep.subr.mxu0 0.0
        %1253 = vmatpush1.msra.mxu0 0.0
        %1254 = vmatprep.subr.mxu0 0.0
        %1255 = vmatpush1.msra.mxu0 0.0
        %1256 = vmatprep.subr.mxu0 0.0
        %1257 = vmatpush1.msra.mxu0 0.0
        %1258 = vmatprep.subr.mxu0 0.0
        %1259 = vmatpush1.msra.mxu0 0.0
        %1260 = vmatprep.subr.mxu0 0.0
        %1261 = vmatpush1.msra.mxu0 0.0
        %1262 = vmatprep.subr.mxu0 0.0
        %1263 = vmatpush1.msra.mxu0 0.0
        %1264 = vmatprep.subr.mxu0 0.0
        %1265 = vmatpush1.msra.mxu0 0.0
        %1266 = vmatprep.subr.mxu0 0.0
        %1267 = vmatpush1.msra.mxu0 0.0
        %1268 = vmatprep.subr.mxu0 0.0
        %1269 = vmatpush1.msra.mxu0 0.0
        %1270 = vmatprep.subr.mxu0 0.0
        %1271 = vmatpush1.msra.mxu0 0.0
        %1272 = vmatprep.subr.mxu0 0.0
        %1273 = vmatpush1.msra.mxu0 0.0
        %1274 = vmatprep.subr.mxu0 0.0
        %1275 = vmatpush1.msra.mxu0 0.0
        %1276 = vmatprep.subr.mxu0 0.0
        %1277 = vmatpush1.msra.mxu0 0.0
        %1278 = vmatprep.subr.mxu0 0.0
        %1279 = vmatpush1.msra.mxu0 0.0
        %1280 = vmatprep.subr.mxu0 0.0
        %1281 = vmatpush1.msra.mxu0 0.0
        %1282 = vmatprep.subr.mxu0 0.0
        %1283 = vmatpush1.msra.mxu0 0.0
        %1284 = vmatprep.subr.mxu0 0.0
        %1285 = vmatpush1.msra.mxu0 0.0
        %1286 = vmatprep.subr.mxu0 0.0
        %1287 = vmatpush1.msra.mxu0 0.0
        %1288 = vmatprep.subr.mxu0 0.0
        %1289 = vmatpush1.msra.mxu0 0.0
        %1290 = vmatprep.mubr.f32.mxu0 0.0
        %1291 = vmatmul.mubr.f32.gmra.mrb[0].mxu0 %v374
        %v1292 = vpop.f32.mrb[0].mxu0
        %v1293 = vadd.f32 %v1224, %v1292
        %v1294 = vpop.f32.mrb[0].mxu0
        %1295 = vdwg.mxu0
        %v1296 = vmul.f32 %v1293, 0.25
        %vm1297 = vcmp.ge.f32.partialorder %v1296, 0.0
        %v1298 = vmul.f32 %v1296, 0.2
        %v1299 = vsel %vm1297, %v1296, %v1298
        %v1300 = vld [vmem:[#allocation6 + $0x58] sm:$0xff]
        %v1301 = vld [vmem:[#allocation6 + $0xd8] sm:$0xff]
        %v1302 = vld [vmem:[#allocation6 + $0x158] sm:$0xff]
        %v1303 = vld [vmem:[#allocation6 + $0x1d8] sm:$0xff]
        %v1304 = vld [vmem:[#allocation8 + $0xb] sm:$0x1]
        %v1306 = vlaneseq
        %v1307 = vshrl.u32 %v1306, 7
        %v1308 = vsub.s32 0, %v1307
        %v1309 = vrot.slane %v1304, %v1308
        %1311 = vmatprep.subr.mxu0 0.0
        %1312 = vmatpush1.msra.mxu0 %v1300
        %1313 = vmatprep.subr.mxu0 0.0
        %1314 = vmatpush1.msra.mxu0 %v1301
        %1315 = vmatprep.subr.mxu0 0.0
        %1316 = vmatpush1.msra.mxu0 %v1302
        %1317 = vmatprep.subr.mxu0 0.0
        %1318 = vmatpush1.msra.mxu0 %v1303
        %1319 = vmatprep.subr.mxu0 0.0
        %1320 = vmatpush1.msra.mxu0 0.0
        %1321 = vmatprep.subr.mxu0 0.0
        %1322 = vmatpush1.msra.mxu0 0.0
        %1323 = vmatprep.subr.mxu0 0.0
        %1324 = vmatpush1.msra.mxu0 0.0
        %1325 = vmatprep.subr.mxu0 0.0
        %1326 = vmatpush1.msra.mxu0 0.0
        %1327 = vmatprep.subr.mxu0 0.0
        %1328 = vmatpush1.msra.mxu0 0.0
        %1329 = vmatprep.subr.mxu0 0.0
        %1330 = vmatpush1.msra.mxu0 0.0
        %1331 = vmatprep.subr.mxu0 0.0
        %1332 = vmatpush1.msra.mxu0 0.0
        %1333 = vmatprep.subr.mxu0 0.0
        %1334 = vmatpush1.msra.mxu0 0.0
        %1335 = vmatprep.subr.mxu0 0.0
        %1336 = vmatpush1.msra.mxu0 0.0
        %1337 = vmatprep.subr.mxu0 0.0
        %1338 = vmatpush1.msra.mxu0 0.0
        %1339 = vmatprep.subr.mxu0 0.0
        %1340 = vmatpush1.msra.mxu0 0.0
        %1341 = vmatprep.subr.mxu0 0.0
        %1342 = vmatpush1.msra.mxu0 0.0
        %1343 = vmatprep.subr.mxu0 0.0
        %1344 = vmatpush1.msra.mxu0 0.0
        %1345 = vmatprep.subr.mxu0 0.0
        %1346 = vmatpush1.msra.mxu0 0.0
        %1347 = vmatprep.subr.mxu0 0.0
        %1348 = vmatpush1.msra.mxu0 0.0
        %1349 = vmatprep.subr.mxu0 0.0
        %1350 = vmatpush1.msra.mxu0 0.0
        %1351 = vmatprep.subr.mxu0 0.0
        %1352 = vmatpush1.msra.mxu0 0.0
        %1353 = vmatprep.subr.mxu0 0.0
        %1354 = vmatpush1.msra.mxu0 0.0
        %1355 = vmatprep.subr.mxu0 0.0
        %1356 = vmatpush1.msra.mxu0 0.0
        %1357 = vmatprep.subr.mxu0 0.0
        %1358 = vmatpush1.msra.mxu0 0.0
        %1359 = vmatprep.subr.mxu0 0.0
        %1360 = vmatpush1.msra.mxu0 0.0
        %1361 = vmatprep.subr.mxu0 0.0
        %1362 = vmatpush1.msra.mxu0 0.0
        %1363 = vmatprep.subr.mxu0 0.0
        %1364 = vmatpush1.msra.mxu0 0.0
        %1365 = vmatprep.subr.mxu0 0.0
        %1366 = vmatpush1.msra.mxu0 0.0
        %1367 = vmatprep.subr.mxu0 0.0
        %1368 = vmatpush1.msra.mxu0 0.0
        %1369 = vmatprep.subr.mxu0 0.0
        %1370 = vmatpush1.msra.mxu0 0.0
        %1371 = vmatprep.subr.mxu0 0.0
        %1372 = vmatpush1.msra.mxu0 0.0
        %1373 = vmatprep.subr.mxu0 0.0
        %1374 = vmatpush1.msra.mxu0 0.0
        %1375 = vmatprep.mubr.f32.mxu0 0.0
        %1376 = vmatmul.mubr.f32.gmra.mrb[0].mxu0 %v374
        %v1377 = vpop.f32.mrb[0].mxu0
        %v1378 = vadd.f32 %v1309, %v1377
        %v1379 = vpop.f32.mrb[0].mxu0
        %1380 = vdwg.mxu0
        %v1381 = vmul.f32 %v1378, 0.25
        %vm1382 = vcmp.ge.f32.partialorder %v1381, 0.0
        %v1383 = vmul.f32 %v1381, 0.2
        %v1384 = vsel %vm1382, %v1381, %v1383
        %v1385 = vld [vmem:[#allocation6 + $0x60] sm:$0xff]
        %v1386 = vld [vmem:[#allocation6 + $0xe0] sm:$0xff]
        %v1387 = vld [vmem:[#allocation6 + $0x160] sm:$0xff]
        %v1388 = vld [vmem:[#allocation6 + $0x1e0] sm:$0xff]
        %v1389 = vld [vmem:[#allocation8 + $0xc] sm:$0x1]
        %v1391 = vlaneseq
        %v1392 = vshrl.u32 %v1391, 7
        %v1393 = vsub.s32 0, %v1392
        %v1394 = vrot.slane %v1389, %v1393
        %1396 = vmatprep.subr.mxu0 0.0
        %1397 = vmatpush1.msra.mxu0 %v1385
        %1398 = vmatprep.subr.mxu0 0.0
        %1399 = vmatpush1.msra.mxu0 %v1386
        %1400 = vmatprep.subr.mxu0 0.0
        %1401 = vmatpush1.msra.mxu0 %v1387
        %1402 = vmatprep.subr.mxu0 0.0
        %1403 = vmatpush1.msra.mxu0 %v1388
        %1404 = vmatprep.subr.mxu0 0.0
        %1405 = vmatpush1.msra.mxu0 0.0
        %1406 = vmatprep.subr.mxu0 0.0
        %1407 = vmatpush1.msra.mxu0 0.0
        %1408 = vmatprep.subr.mxu0 0.0
        %1409 = vmatpush1.msra.mxu0 0.0
        %1410 = vmatprep.subr.mxu0 0.0
        %1411 = vmatpush1.msra.mxu0 0.0
        %1412 = vmatprep.subr.mxu0 0.0
        %1413 = vmatpush1.msra.mxu0 0.0
        %1414 = vmatprep.subr.mxu0 0.0
        %1415 = vmatpush1.msra.mxu0 0.0
        %1416 = vmatprep.subr.mxu0 0.0
        %1417 = vmatpush1.msra.mxu0 0.0
        %1418 = vmatprep.subr.mxu0 0.0
        %1419 = vmatpush1.msra.mxu0 0.0
        %1420 = vmatprep.subr.mxu0 0.0
        %1421 = vmatpush1.msra.mxu0 0.0
        %1422 = vmatprep.subr.mxu0 0.0
        %1423 = vmatpush1.msra.mxu0 0.0
        %1424 = vmatprep.subr.mxu0 0.0
        %1425 = vmatpush1.msra.mxu0 0.0
        %1426 = vmatprep.subr.mxu0 0.0
        %1427 = vmatpush1.msra.mxu0 0.0
        %1428 = vmatprep.subr.mxu0 0.0
        %1429 = vmatpush1.msra.mxu0 0.0
        %1430 = vmatprep.subr.mxu0 0.0
        %1431 = vmatpush1.msra.mxu0 0.0
        %1432 = vmatprep.subr.mxu0 0.0
        %1433 = vmatpush1.msra.mxu0 0.0
        %1434 = vmatprep.subr.mxu0 0.0
        %1435 = vmatpush1.msra.mxu0 0.0
        %1436 = vmatprep.subr.mxu0 0.0
        %1437 = vmatpush1.msra.mxu0 0.0
        %1438 = vmatprep.subr.mxu0 0.0
        %1439 = vmatpush1.msra.mxu0 0.0
        %1440 = vmatprep.subr.mxu0 0.0
        %1441 = vmatpush1.msra.mxu0 0.0
        %1442 = vmatprep.subr.mxu0 0.0
        %1443 = vmatpush1.msra.mxu0 0.0
        %1444 = vmatprep.subr.mxu0 0.0
        %1445 = vmatpush1.msra.mxu0 0.0
        %1446 = vmatprep.subr.mxu0 0.0
        %1447 = vmatpush1.msra.mxu0 0.0
        %1448 = vmatprep.subr.mxu0 0.0
        %1449 = vmatpush1.msra.mxu0 0.0
        %1450 = vmatprep.subr.mxu0 0.0
        %1451 = vmatpush1.msra.mxu0 0.0
        %1452 = vmatprep.subr.mxu0 0.0
        %1453 = vmatpush1.msra.mxu0 0.0
        %1454 = vmatprep.subr.mxu0 0.0
        %1455 = vmatpush1.msra.mxu0 0.0
        %1456 = vmatprep.subr.mxu0 0.0
        %1457 = vmatpush1.msra.mxu0 0.0
        %1458 = vmatprep.subr.mxu0 0.0
        %1459 = vmatpush1.msra.mxu0 0.0
        %1460 = vmatprep.mubr.f32.mxu0 0.0
        %1461 = vmatmul.mubr.f32.gmra.mrb[0].mxu0 %v374
        %v1462 = vpop.f32.mrb[0].mxu0
        %v1463 = vadd.f32 %v1394, %v1462
        %v1464 = vpop.f32.mrb[0].mxu0
        %1465 = vdwg.mxu0
        %v1466 = vmul.f32 %v1463, 0.25
        %vm1467 = vcmp.ge.f32.partialorder %v1466, 0.0
        %v1468 = vmul.f32 %v1466, 0.2
        %v1469 = vsel %vm1467, %v1466, %v1468
        %v1470 = vld [vmem:[#allocation6 + $0x68] sm:$0xff]
        %v1471 = vld [vmem:[#allocation6 + $0xe8] sm:$0xff]
        %v1472 = vld [vmem:[#allocation6 + $0x168] sm:$0xff]
        %v1473 = vld [vmem:[#allocation6 + $0x1e8] sm:$0xff]
        %v1474 = vld [vmem:[#allocation8 + $0xd] sm:$0x1]
        %v1476 = vlaneseq
        %v1477 = vshrl.u32 %v1476, 7
        %v1478 = vsub.s32 0, %v1477
        %v1479 = vrot.slane %v1474, %v1478
        %1481 = vmatprep.subr.mxu0 0.0
        %1482 = vmatpush1.msra.mxu0 %v1470
        %1483 = vmatprep.subr.mxu0 0.0
        %1484 = vmatpush1.msra.mxu0 %v1471
        %1485 = vmatprep.subr.mxu0 0.0
        %1486 = vmatpush1.msra.mxu0 %v1472
        %1487 = vmatprep.subr.mxu0 0.0
        %1488 = vmatpush1.msra.mxu0 %v1473
        %1489 = vmatprep.subr.mxu0 0.0
        %1490 = vmatpush1.msra.mxu0 0.0
        %1491 = vmatprep.subr.mxu0 0.0
        %1492 = vmatpush1.msra.mxu0 0.0
        %1493 = vmatprep.subr.mxu0 0.0
        %1494 = vmatpush1.msra.mxu0 0.0
        %1495 = vmatprep.subr.mxu0 0.0
        %1496 = vmatpush1.msra.mxu0 0.0
        %1497 = vmatprep.subr.mxu0 0.0
        %1498 = vmatpush1.msra.mxu0 0.0
        %1499 = vmatprep.subr.mxu0 0.0
        %1500 = vmatpush1.msra.mxu0 0.0
        %1501 = vmatprep.subr.mxu0 0.0
        %1502 = vmatpush1.msra.mxu0 0.0
        %1503 = vmatprep.subr.mxu0 0.0
        %1504 = vmatpush1.msra.mxu0 0.0
        %1505 = vmatprep.subr.mxu0 0.0
        %1506 = vmatpush1.msra.mxu0 0.0
        %1507 = vmatprep.subr.mxu0 0.0
        %1508 = vmatpush1.msra.mxu0 0.0
        %1509 = vmatprep.subr.mxu0 0.0
        %1510 = vmatpush1.msra.mxu0 0.0
        %1511 = vmatprep.subr.mxu0 0.0
        %1512 = vmatpush1.msra.mxu0 0.0
        %1513 = vmatprep.subr.mxu0 0.0
        %1514 = vmatpush1.msra.mxu0 0.0
        %1515 = vmatprep.subr.mxu0 0.0
        %1516 = vmatpush1.msra.mxu0 0.0
        %1517 = vmatprep.subr.mxu0 0.0
        %1518 = vmatpush1.msra.mxu0 0.0
        %1519 = vmatprep.subr.mxu0 0.0
        %1520 = vmatpush1.msra.mxu0 0.0
        %1521 = vmatprep.subr.mxu0 0.0
        %1522 = vmatpush1.msra.mxu0 0.0
        %1523 = vmatprep.subr.mxu0 0.0
        %1524 = vmatpush1.msra.mxu0 0.0
        %1525 = vmatprep.subr.mxu0 0.0
        %1526 = vmatpush1.msra.mxu0 0.0
        %1527 = vmatprep.subr.mxu0 0.0
        %1528 = vmatpush1.msra.mxu0 0.0
        %1529 = vmatprep.subr.mxu0 0.0
        %1530 = vmatpush1.msra.mxu0 0.0
        %1531 = vmatprep.subr.mxu0 0.0
        %1532 = vmatpush1.msra.mxu0 0.0
        %1533 = vmatprep.subr.mxu0 0.0
        %1534 = vmatpush1.msra.mxu0 0.0
        %1535 = vmatprep.subr.mxu0 0.0
        %1536 = vmatpush1.msra.mxu0 0.0
        %1537 = vmatprep.subr.mxu0 0.0
        %1538 = vmatpush1.msra.mxu0 0.0
        %1539 = vmatprep.subr.mxu0 0.0
        %1540 = vmatpush1.msra.mxu0 0.0
        %1541 = vmatprep.subr.mxu0 0.0
        %1542 = vmatpush1.msra.mxu0 0.0
        %1543 = vmatprep.subr.mxu0 0.0
        %1544 = vmatpush1.msra.mxu0 0.0
        %1545 = vmatprep.mubr.f32.mxu0 0.0
        %1546 = vmatmul.mubr.f32.gmra.mrb[0].mxu0 %v374
        %v1547 = vpop.f32.mrb[0].mxu0
        %v1548 = vadd.f32 %v1479, %v1547
        %v1549 = vpop.f32.mrb[0].mxu0
        %1550 = vdwg.mxu0
        %v1551 = vmul.f32 %v1548, 0.25
        %vm1552 = vcmp.ge.f32.partialorder %v1551, 0.0
        %v1553 = vmul.f32 %v1551, 0.2
        %v1554 = vsel %vm1552, %v1551, %v1553
        %v1555 = vld [vmem:[#allocation6 + $0x70] sm:$0xff]
        %v1556 = vld [vmem:[#allocation6 + $0xf0] sm:$0xff]
        %v1557 = vld [vmem:[#allocation6 + $0x170] sm:$0xff]
        %v1558 = vld [vmem:[#allocation6 + $0x1f0] sm:$0xff]
        %v1559 = vld [vmem:[#allocation8 + $0xe] sm:$0x1]
        %v1561 = vlaneseq
        %v1562 = vshrl.u32 %v1561, 7
        %v1563 = vsub.s32 0, %v1562
        %v1564 = vrot.slane %v1559, %v1563
        %1566 = vmatprep.subr.mxu0 0.0
        %1567 = vmatpush1.msra.mxu0 %v1555
        %1568 = vmatprep.subr.mxu0 0.0
        %1569 = vmatpush1.msra.mxu0 %v1556
        %1570 = vmatprep.subr.mxu0 0.0
        %1571 = vmatpush1.msra.mxu0 %v1557
        %1572 = vmatprep.subr.mxu0 0.0
        %1573 = vmatpush1.msra.mxu0 %v1558
        %1574 = vmatprep.subr.mxu0 0.0
        %1575 = vmatpush1.msra.mxu0 0.0
        %1576 = vmatprep.subr.mxu0 0.0
        %1577 = vmatpush1.msra.mxu0 0.0
        %1578 = vmatprep.subr.mxu0 0.0
        %1579 = vmatpush1.msra.mxu0 0.0
        %1580 = vmatprep.subr.mxu0 0.0
        %1581 = vmatpush1.msra.mxu0 0.0
        %1582 = vmatprep.subr.mxu0 0.0
        %1583 = vmatpush1.msra.mxu0 0.0
        %1584 = vmatprep.subr.mxu0 0.0
        %1585 = vmatpush1.msra.mxu0 0.0
        %1586 = vmatprep.subr.mxu0 0.0
        %1587 = vmatpush1.msra.mxu0 0.0
        %1588 = vmatprep.subr.mxu0 0.0
        %1589 = vmatpush1.msra.mxu0 0.0
        %1590 = vmatprep.subr.mxu0 0.0
        %1591 = vmatpush1.msra.mxu0 0.0
        %1592 = vmatprep.subr.mxu0 0.0
        %1593 = vmatpush1.msra.mxu0 0.0
        %1594 = vmatprep.subr.mxu0 0.0
        %1595 = vmatpush1.msra.mxu0 0.0
        %1596 = vmatprep.subr.mxu0 0.0
        %1597 = vmatpush1.msra.mxu0 0.0
        %1598 = vmatprep.subr.mxu0 0.0
        %1599 = vmatpush1.msra.mxu0 0.0
        %1600 = vmatprep.subr.mxu0 0.0
        %1601 = vmatpush1.msra.mxu0 0.0
        %1602 = vmatprep.subr.mxu0 0.0
        %1603 = vmatpush1.msra.mxu0 0.0
        %1604 = vmatprep.subr.mxu0 0.0
        %1605 = vmatpush1.msra.mxu0 0.0
        %1606 = vmatprep.subr.mxu0 0.0
        %1607 = vmatpush1.msra.mxu0 0.0
        %1608 = vmatprep.subr.mxu0 0.0
        %1609 = vmatpush1.msra.mxu0 0.0
        %1610 = vmatprep.subr.mxu0 0.0
        %1611 = vmatpush1.msra.mxu0 0.0
        %1612 = vmatprep.subr.mxu0 0.0
        %1613 = vmatpush1.msra.mxu0 0.0
        %1614 = vmatprep.subr.mxu0 0.0
        %1615 = vmatpush1.msra.mxu0 0.0
        %1616 = vmatprep.subr.mxu0 0.0
        %1617 = vmatpush1.msra.mxu0 0.0
        %1618 = vmatprep.subr.mxu0 0.0
        %1619 = vmatpush1.msra.mxu0 0.0
        %1620 = vmatprep.subr.mxu0 0.0
        %1621 = vmatpush1.msra.mxu0 0.0
        %1622 = vmatprep.subr.mxu0 0.0
        %1623 = vmatpush1.msra.mxu0 0.0
        %1624 = vmatprep.subr.mxu0 0.0
        %1625 = vmatpush1.msra.mxu0 0.0
        %1626 = vmatprep.subr.mxu0 0.0
        %1627 = vmatpush1.msra.mxu0 0.0
        %1628 = vmatprep.subr.mxu0 0.0
        %1629 = vmatpush1.msra.mxu0 0.0
        %1630 = vmatprep.mubr.f32.mxu0 0.0
        %1631 = vmatmul.mubr.f32.gmra.mrb[0].mxu0 %v374
        %v1632 = vpop.f32.mrb[0].mxu0
        %v1633 = vadd.f32 %v1564, %v1632
        %v1634 = vpop.f32.mrb[0].mxu0
        %1635 = vdwg.mxu0
        %v1636 = vmul.f32 %v1633, 0.25
        %vm1637 = vcmp.ge.f32.partialorder %v1636, 0.0
        %v1638 = vmul.f32 %v1636, 0.2
        %v1639 = vsel %vm1637, %v1636, %v1638
        %v1640 = vld [vmem:[#allocation6 + $0x78] sm:$0xff]
        %v1641 = vld [vmem:[#allocation6 + $0xf8] sm:$0xff]
        %v1642 = vld [vmem:[#allocation6 + $0x178] sm:$0xff]
        %v1643 = vld [vmem:[#allocation6 + $0x1f8] sm:$0xff]
        %v1644 = vld [vmem:[#allocation8 + $0xf] sm:$0x1]
        %v1646 = vlaneseq
        %v1647 = vshrl.u32 %v1646, 7
        %v1648 = vsub.s32 0, %v1647
        %v1649 = vrot.slane %v1644, %v1648
        %1651 = vmatprep.subr.mxu0 0.0
        %1652 = vmatpush1.msra.mxu0 %v1640
        %1653 = vmatprep.subr.mxu0 0.0
        %1654 = vmatpush1.msra.mxu0 %v1641
        %1655 = vmatprep.subr.mxu0 0.0
        %1656 = vmatpush1.msra.mxu0 %v1642
        %1657 = vmatprep.subr.mxu0 0.0
        %1658 = vmatpush1.msra.mxu0 %v1643
        %1659 = vmatprep.subr.mxu0 0.0
        %1660 = vmatpush1.msra.mxu0 0.0
        %1661 = vmatprep.subr.mxu0 0.0
        %1662 = vmatpush1.msra.mxu0 0.0
        %1663 = vmatprep.subr.mxu0 0.0
        %1664 = vmatpush1.msra.mxu0 0.0
        %1665 = vmatprep.subr.mxu0 0.0
        %1666 = vmatpush1.msra.mxu0 0.0
        %1667 = vmatprep.subr.mxu0 0.0
        %1668 = vmatpush1.msra.mxu0 0.0
        %1669 = vmatprep.subr.mxu0 0.0
        %1670 = vmatpush1.msra.mxu0 0.0
        %1671 = vmatprep.subr.mxu0 0.0
        %1672 = vmatpush1.msra.mxu0 0.0
        %1673 = vmatprep.subr.mxu0 0.0
        %1674 = vmatpush1.msra.mxu0 0.0
        %1675 = vmatprep.subr.mxu0 0.0
        %1676 = vmatpush1.msra.mxu0 0.0
        %1677 = vmatprep.subr.mxu0 0.0
        %1678 = vmatpush1.msra.mxu0 0.0
        %1679 = vmatprep.subr.mxu0 0.0
        %1680 = vmatpush1.msra.mxu0 0.0
        %1681 = vmatprep.subr.mxu0 0.0
        %1682 = vmatpush1.msra.mxu0 0.0
        %1683 = vmatprep.subr.mxu0 0.0
        %1684 = vmatpush1.msra.mxu0 0.0
        %1685 = vmatprep.subr.mxu0 0.0
        %1686 = vmatpush1.msra.mxu0 0.0
        %1687 = vmatprep.subr.mxu0 0.0
        %1688 = vmatpush1.msra.mxu0 0.0
        %1689 = vmatprep.subr.mxu0 0.0
        %1690 = vmatpush1.msra.mxu0 0.0
        %1691 = vmatprep.subr.mxu0 0.0
        %1692 = vmatpush1.msra.mxu0 0.0
        %1693 = vmatprep.subr.mxu0 0.0
        %1694 = vmatpush1.msra.mxu0 0.0
        %1695 = vmatprep.subr.mxu0 0.0
        %1696 = vmatpush1.msra.mxu0 0.0
        %1697 = vmatprep.subr.mxu0 0.0
        %1698 = vmatpush1.msra.mxu0 0.0
        %1699 = vmatprep.subr.mxu0 0.0
        %1700 = vmatpush1.msra.mxu0 0.0
        %1701 = vmatprep.subr.mxu0 0.0
        %1702 = vmatpush1.msra.mxu0 0.0
        %1703 = vmatprep.subr.mxu0 0.0
        %1704 = vmatpush1.msra.mxu0 0.0
        %1705 = vmatprep.subr.mxu0 0.0
        %1706 = vmatpush1.msra.mxu0 0.0
        %1707 = vmatprep.subr.mxu0 0.0
        %1708 = vmatpush1.msra.mxu0 0.0
        %1709 = vmatprep.subr.mxu0 0.0
        %1710 = vmatpush1.msra.mxu0 0.0
        %1711 = vmatprep.subr.mxu0 0.0
        %1712 = vmatpush1.msra.mxu0 0.0
        %1713 = vmatprep.subr.mxu0 0.0
        %1714 = vmatpush1.msra.mxu0 0.0
        %1715 = vmatprep.mubr.f32.mxu0 0.0
        %1716 = vmatmul.mubr.f32.gmra.mrb[0].mxu0 %v374
        %v1717 = vpop.f32.mrb[0].mxu0
        %v1718 = vadd.f32 %v1649, %v1717
        %v1719 = vpop.f32.mrb[0].mxu0
        %1720 = vdwg.mxu0
        %v1721 = vmul.f32 %v1718, 0.25
        %vm1722 = vcmp.ge.f32.partialorder %v1721, 0.0
        %v1723 = vmul.f32 %v1721, 0.2
        %v1724 = vsel %vm1722, %v1721, %v1723
        %v1725 = vld [vmem:[#allocation9] sm:$0xff]
        %v1726 = vld [vmem:[#allocation9 + $0x8] sm:$0xff]
        %v1727 = vld [vmem:[#allocation9 + $0x10] sm:$0xff]
        %v1728 = vld [vmem:[#allocation9 + $0x18] sm:$0xff]
        %v1729 = vld [vmem:[#allocation9 + $0x20] sm:$0xff]
        %v1730 = vld [vmem:[#allocation9 + $0x28] sm:$0xff]
        %v1731 = vld [vmem:[#allocation9 + $0x30] sm:$0xff]
        %v1732 = vld [vmem:[#allocation9 + $0x38] sm:$0xff]
        %v1733 = vld [vmem:[#allocation9 + $0x40] sm:$0xff]
        %v1734 = vld [vmem:[#allocation9 + $0x48] sm:$0xff]
        %v1735 = vld [vmem:[#allocation9 + $0x50] sm:$0xff]
        %v1736 = vld [vmem:[#allocation9 + $0x58] sm:$0xff]
        %v1737 = vld [vmem:[#allocation9 + $0x60] sm:$0xff]
        %v1738 = vld [vmem:[#allocation9 + $0x68] sm:$0xff]
        %v1739 = vld [vmem:[#allocation9 + $0x70] sm:$0xff]
        %v1740 = vld [vmem:[#allocation9 + $0x78] sm:$0xff]
        %1741 = vmatprep.subr.mxu0 0.0
        %1742 = vmatpush1.msra.mxu0 %v1725
        %1743 = vmatprep.subr.mxu0 0.0
        %1744 = vmatpush1.msra.mxu0 %v1726
        %1745 = vmatprep.subr.mxu0 0.0
        %1746 = vmatpush1.msra.mxu0 %v1727
        %1747 = vmatprep.subr.mxu0 0.0
        %1748 = vmatpush1.msra.mxu0 %v1728
        %1749 = vmatprep.subr.mxu0 0.0
        %1750 = vmatpush1.msra.mxu0 %v1729
        %1751 = vmatprep.subr.mxu0 0.0
        %1752 = vmatpush1.msra.mxu0 %v1730
        %1753 = vmatprep.subr.mxu0 0.0
        %1754 = vmatpush1.msra.mxu0 %v1731
        %1755 = vmatprep.subr.mxu0 0.0
        %1756 = vmatpush1.msra.mxu0 %v1732
        %1757 = vmatprep.subr.mxu0 0.0
        %1758 = vmatpush1.msra.mxu0 %v1733
        %1759 = vmatprep.subr.mxu0 0.0
        %1760 = vmatpush1.msra.mxu0 %v1734
        %1761 = vmatprep.subr.mxu0 0.0
        %1762 = vmatpush1.msra.mxu0 %v1735
        %1763 = vmatprep.subr.mxu0 0.0
        %1764 = vmatpush1.msra.mxu0 %v1736
        %1765 = vmatprep.subr.mxu0 0.0
        %1766 = vmatpush1.msra.mxu0 %v1737
        %1767 = vmatprep.subr.mxu0 0.0
        %1768 = vmatpush1.msra.mxu0 %v1738
        %1769 = vmatprep.subr.mxu0 0.0
        %1770 = vmatpush1.msra.mxu0 %v1739
        %1771 = vmatprep.subr.mxu0 0.0
        %1772 = vmatpush1.msra.mxu0 %v1740
        %1773 = vmatprep.subr.mxu0 0.0
        %1774 = vmatpush1.msra.mxu0 0.0
        %1775 = vmatprep.subr.mxu0 0.0
        %1776 = vmatpush1.msra.mxu0 0.0
        %1777 = vmatprep.subr.mxu0 0.0
        %1778 = vmatpush1.msra.mxu0 0.0
        %1779 = vmatprep.subr.mxu0 0.0
        %1780 = vmatpush1.msra.mxu0 0.0
        %1781 = vmatprep.subr.mxu0 0.0
        %1782 = vmatpush1.msra.mxu0 0.0
        %1783 = vmatprep.subr.mxu0 0.0
        %1784 = vmatpush1.msra.mxu0 0.0
        %1785 = vmatprep.subr.mxu0 0.0
        %1786 = vmatpush1.msra.mxu0 0.0
        %1787 = vmatprep.subr.mxu0 0.0
        %1788 = vmatpush1.msra.mxu0 0.0
        %1789 = vmatprep.subr.mxu0 0.0
        %1790 = vmatpush1.msra.mxu0 0.0
        %1791 = vmatprep.subr.mxu0 0.0
        %1792 = vmatpush1.msra.mxu0 0.0
        %1793 = vmatprep.subr.mxu0 0.0
        %1794 = vmatpush1.msra.mxu0 0.0
        %1795 = vmatprep.subr.mxu0 0.0
        %1796 = vmatpush1.msra.mxu0 0.0
        %1797 = vmatprep.subr.mxu0 0.0
        %1798 = vmatpush1.msra.mxu0 0.0
        %1799 = vmatprep.subr.mxu0 0.0
        %1800 = vmatpush1.msra.mxu0 0.0
        %1801 = vmatprep.subr.mxu0 0.0
        %1802 = vmatpush1.msra.mxu0 0.0
        %1803 = vmatprep.subr.mxu0 0.0
        %1804 = vmatpush1.msra.mxu0 0.0
        %1805 = vmatprep.mubr.f32.mxu0 0.0
        %1806 = vmatmul.mubr.f32.gmra.mrb[0].mxu0 0.0
        %v1807 = vpop.f32.mrb[0].mxu0
        %v1808 = vadd.f32 0.0, %v1807
        %v1809 = vpop.f32.mrb[0].mxu0
        %1810 = vmatprep.mubr.f32.mxu0 0.0
        %1811 = vmatmul.mubr.f32.gmra.mrb[0].mxu0 0.0
        %v1812 = vpop.f32.mrb[0].mxu0
        %v1813 = vadd.f32 0.0, %v1812
        %v1814 = vpop.f32.mrb[0].mxu0
        %1815 = vmatprep.mubr.f32.mxu0 0.0
        %1816 = vmatmul.mubr.f32.gmra.mrb[0].mxu0 0.0
        %v1817 = vpop.f32.mrb[0].mxu0
        %v1818 = vadd.f32 0.0, %v1817
        %v1819 = vpop.f32.mrb[0].mxu0
        %1820 = vmatprep.mubr.f32.mxu0 0.0
        %1821 = vmatmul.mubr.f32.gmra.mrb[0].mxu0 0.0
        %v1822 = vpop.f32.mrb[0].mxu0
        %v1823 = vadd.f32 0.0, %v1822
        %v1824 = vpop.f32.mrb[0].mxu0
        %1825 = vmatprep.mubr.f32.mxu0 0.0
        %1826 = vmatmul.mubr.f32.gmra.mrb[0].mxu0 0.0
        %v1827 = vpop.f32.mrb[0].mxu0
        %v1828 = vadd.f32 0.0, %v1827
        %v1829 = vpop.f32.mrb[0].mxu0
        %1830 = vmatprep.mubr.f32.mxu0 0.0
        %1831 = vmatmul.mubr.f32.gmra.mrb[0].mxu0 %v449
        %v1832 = vpop.f32.mrb[0].mxu0
        %v1833 = vadd.f32 0.0, %v1832
        %v1834 = vpop.f32.mrb[0].mxu0
        %1835 = vmatprep.mubr.f32.mxu0 0.0
        %1836 = vmatmul.mubr.f32.gmra.mrb[0].mxu0 %v534
        %v1837 = vpop.f32.mrb[0].mxu0
        %v1838 = vadd.f32 0.0, %v1837
        %v1839 = vpop.f32.mrb[0].mxu0
        %1840 = vmatprep.mubr.f32.mxu0 0.0
        %1841 = vmatmul.mubr.f32.gmra.mrb[0].mxu0 %v619
        %v1842 = vpop.f32.mrb[0].mxu0
        %v1843 = vadd.f32 0.0, %v1842
        %v1844 = vpop.f32.mrb[0].mxu0
        %1845 = vmatprep.mubr.f32.mxu0 0.0
        %1846 = vmatmul.mubr.f32.gmra.mrb[0].mxu0 0.0
        %v1847 = vpop.f32.mrb[0].mxu0
        %v1848 = vadd.f32 0.0, %v1847
        %v1849 = vpop.f32.mrb[0].mxu0
        %1850 = vmatprep.mubr.f32.mxu0 0.0
        %1851 = vmatmul.mubr.f32.gmra.mrb[0].mxu0 %v789
        %v1852 = vpop.f32.mrb[0].mxu0
        %v1853 = vadd.f32 0.0, %v1852
        %v1854 = vpop.f32.mrb[0].mxu0
        %1855 = vmatprep.mubr.f32.mxu0 0.0
        %1856 = vmatmul.mubr.f32.gmra.mrb[0].mxu0 %v874
        %v1857 = vpop.f32.mrb[0].mxu0
        %v1858 = vadd.f32 0.0, %v1857
        %v1859 = vpop.f32.mrb[0].mxu0
        %1860 = vmatprep.mubr.f32.mxu0 0.0
        %1861 = vmatmul.mubr.f32.gmra.mrb[0].mxu0 %v959
        %v1862 = vpop.f32.mrb[0].mxu0
        %v1863 = vadd.f32 0.0, %v1862
        %v1864 = vpop.f32.mrb[0].mxu0
        %1865 = vmatprep.mubr.f32.mxu0 0.0
        %1866 = vmatmul.mubr.f32.gmra.mrb[0].mxu0 0.0
        %v1867 = vpop.f32.mrb[0].mxu0
        %v1868 = vadd.f32 0.0, %v1867
        %v1869 = vpop.f32.mrb[0].mxu0
        %1870 = vmatprep.mubr.f32.mxu0 0.0
        %1871 = vmatmul.mubr.f32.gmra.mrb[0].mxu0 %v1129
        %v1872 = vpop.f32.mrb[0].mxu0
        %v1873 = vadd.f32 0.0, %v1872
        %v1874 = vpop.f32.mrb[0].mxu0
        %1875 = vmatprep.mubr.f32.mxu0 0.0
        %1876 = vmatmul.mubr.f32.gmra.mrb[0].mxu0 %v1214
        %v1877 = vpop.f32.mrb[0].mxu0
        %v1878 = vadd.f32 0.0, %v1877
        %v1879 = vpop.f32.mrb[0].mxu0
        %1880 = vmatprep.mubr.f32.mxu0 0.0
        %1881 = vmatmul.mubr.f32.gmra.mrb[0].mxu0 %v1299
        %v1882 = vpop.f32.mrb[0].mxu0
        %v1883 = vadd.f32 0.0, %v1882
        %v1884 = vpop.f32.mrb[0].mxu0
        %1885 = vdwg.mxu0
        %1886 = vst [vmem:[#allocation2] sm:$0xff] %v1808
        %1887 = vst [vmem:[#allocation2 + $0x8] sm:$0xff] %v1813
        %1888 = vst [vmem:[#allocation2 + $0x10] sm:$0xff] %v1818
        %1889 = vst [vmem:[#allocation2 + $0x18] sm:$0xff] %v1823
        %1890 = vst [vmem:[#allocation2 + $0x20] sm:$0xff] %v1828
        %1891 = vst [vmem:[#allocation2 + $0x28] sm:$0xff] %v1833
        %1892 = vst [vmem:[#allocation2 + $0x30] sm:$0xff] %v1838
        %1893 = vst [vmem:[#allocation2 + $0x38] sm:$0xff] %v1843
        %1894 = vst [vmem:[#allocation2 + $0x40] sm:$0xff] %v1848
        %1895 = vst [vmem:[#allocation2 + $0x48] sm:$0xff] %v1853
        %1896 = vst [vmem:[#allocation2 + $0x50] sm:$0xff] %v1858
        %1897 = vst [vmem:[#allocation2 + $0x58] sm:$0xff] %v1863
        %1898 = vst [vmem:[#allocation2 + $0x60] sm:$0xff] %v1868
        %1899 = vst [vmem:[#allocation2 + $0x68] sm:$0xff] %v1873
        %1900 = vst [vmem:[#allocation2 + $0x70] sm:$0xff] %v1878
        %1901 = vst [vmem:[#allocation2 + $0x78] sm:$0xff] %v1883
        %v1902 = vld [vmem:[#allocation9 + $0x80] sm:$0xff]
        %v1903 = vld [vmem:[#allocation9 + $0x88] sm:$0xff]
        %v1904 = vld [vmem:[#allocation9 + $0x90] sm:$0xff]
        %v1905 = vld [vmem:[#allocation9 + $0x98] sm:$0xff]
        %v1906 = vld [vmem:[#allocation9 + $0xa0] sm:$0xff]
        %v1907 = vld [vmem:[#allocation9 + $0xa8] sm:$0xff]
        %v1908 = vld [vmem:[#allocation9 + $0xb0] sm:$0xff]
        %v1909 = vld [vmem:[#allocation9 + $0xb8] sm:$0xff]
        %v1910 = vld [vmem:[#allocation9 + $0xc0] sm:$0xff]
        %v1911 = vld [vmem:[#allocation9 + $0xc8] sm:$0xff]
        %v1912 = vld [vmem:[#allocation9 + $0xd0] sm:$0xff]
        %v1913 = vld [vmem:[#allocation9 + $0xd8] sm:$0xff]
        %v1914 = vld [vmem:[#allocation9 + $0xe0] sm:$0xff]
        %v1915 = vld [vmem:[#allocation9 + $0xe8] sm:$0xff]
        %v1916 = vld [vmem:[#allocation9 + $0xf0] sm:$0xff]
        %v1917 = vld [vmem:[#allocation9 + $0xf8] sm:$0xff]
        %1918 = vmatprep.subr.mxu0 0.0
        %1919 = vmatpush1.msra.mxu0 %v1902
        %1920 = vmatprep.subr.mxu0 0.0
        %1921 = vmatpush1.msra.mxu0 %v1903
        %1922 = vmatprep.subr.mxu0 0.0
        %1923 = vmatpush1.msra.mxu0 %v1904
        %1924 = vmatprep.subr.mxu0 0.0
        %1925 = vmatpush1.msra.mxu0 %v1905
        %1926 = vmatprep.subr.mxu0 0.0
        %1927 = vmatpush1.msra.mxu0 %v1906
        %1928 = vmatprep.subr.mxu0 0.0
        %1929 = vmatpush1.msra.mxu0 %v1907
        %1930 = vmatprep.subr.mxu0 0.0
        %1931 = vmatpush1.msra.mxu0 %v1908
        %1932 = vmatprep.subr.mxu0 0.0
        %1933 = vmatpush1.msra.mxu0 %v1909
        %1934 = vmatprep.subr.mxu0 0.0
        %1935 = vmatpush1.msra.mxu0 %v1910
        %1936 = vmatprep.subr.mxu0 0.0
        %1937 = vmatpush1.msra.mxu0 %v1911
        %1938 = vmatprep.subr.mxu0 0.0
        %1939 = vmatpush1.msra.mxu0 %v1912
        %1940 = vmatprep.subr.mxu0 0.0
        %1941 = vmatpush1.msra.mxu0 %v1913
        %1942 = vmatprep.subr.mxu0 0.0
        %1943 = vmatpush1.msra.mxu0 %v1914
        %1944 = vmatprep.subr.mxu0 0.0
        %1945 = vmatpush1.msra.mxu0 %v1915
        %1946 = vmatprep.subr.mxu0 0.0
        %1947 = vmatpush1.msra.mxu0 %v1916
        %1948 = vmatprep.subr.mxu0 0.0
        %1949 = vmatpush1.msra.mxu0 %v1917
        %1950 = vmatprep.subr.mxu0 0.0
        %1951 = vmatpush1.msra.mxu0 0.0
        %1952 = vmatprep.subr.mxu0 0.0
        %1953 = vmatpush1.msra.mxu0 0.0
        %1954 = vmatprep.subr.mxu0 0.0
        %1955 = vmatpush1.msra.mxu0 0.0
        %1956 = vmatprep.subr.mxu0 0.0
        %1957 = vmatpush1.msra.mxu0 0.0
        %1958 = vmatprep.subr.mxu0 0.0
        %1959 = vmatpush1.msra.mxu0 0.0
        %1960 = vmatprep.subr.mxu0 0.0
        %1961 = vmatpush1.msra.mxu0 0.0
        %1962 = vmatprep.subr.mxu0 0.0
        %1963 = vmatpush1.msra.mxu0 0.0
        %1964 = vmatprep.subr.mxu0 0.0
        %1965 = vmatpush1.msra.mxu0 0.0
        %1966 = vmatprep.subr.mxu0 0.0
        %1967 = vmatpush1.msra.mxu0 0.0
        %1968 = vmatprep.subr.mxu0 0.0
        %1969 = vmatpush1.msra.mxu0 0.0
        %1970 = vmatprep.subr.mxu0 0.0
        %1971 = vmatpush1.msra.mxu0 0.0
        %1972 = vmatprep.subr.mxu0 0.0
        %1973 = vmatpush1.msra.mxu0 0.0
        %1974 = vmatprep.subr.mxu0 0.0
        %1975 = vmatpush1.msra.mxu0 0.0
        %1976 = vmatprep.subr.mxu0 0.0
        %1977 = vmatpush1.msra.mxu0 0.0
        %1978 = vmatprep.subr.mxu0 0.0
        %1979 = vmatpush1.msra.mxu0 0.0
        %1980 = vmatprep.subr.mxu0 0.0
        %1981 = vmatpush1.msra.mxu0 0.0
        %1982 = vmatprep.mubr.f32.mxu0 0.0
        %1983 = vmatmul.mubr.f32.gmra.mrb[0].mxu0 0.0
        %v1984 = vpop.f32.mrb[0].mxu0
        %v1985 = vadd.f32 0.0, %v1984
        %v1986 = vpop.f32.mrb[0].mxu0
        %1987 = vmatprep.mubr.f32.mxu0 0.0
        %1988 = vmatmul.mubr.f32.gmra.mrb[0].mxu0 0.0
        %v1989 = vpop.f32.mrb[0].mxu0
        %v1990 = vadd.f32 0.0, %v1989
        %v1991 = vpop.f32.mrb[0].mxu0
        %1992 = vmatprep.mubr.f32.mxu0 0.0
        %1993 = vmatmul.mubr.f32.gmra.mrb[0].mxu0 0.0
        %v1994 = vpop.f32.mrb[0].mxu0
        %v1995 = vadd.f32 0.0, %v1994
        %v1996 = vpop.f32.mrb[0].mxu0
        %1997 = vmatprep.mubr.f32.mxu0 0.0
        %1998 = vmatmul.mubr.f32.gmra.mrb[0].mxu0 0.0
        %v1999 = vpop.f32.mrb[0].mxu0
        %v2000 = vadd.f32 0.0, %v1999
        %v2001 = vpop.f32.mrb[0].mxu0
        %2002 = vmatprep.mubr.f32.mxu0 0.0
        %2003 = vmatmul.mubr.f32.gmra.mrb[0].mxu0 %v449
        %v2004 = vpop.f32.mrb[0].mxu0
        %v2005 = vadd.f32 0.0, %v2004
        %v2006 = vpop.f32.mrb[0].mxu0
        %2007 = vmatprep.mubr.f32.mxu0 0.0
        %2008 = vmatmul.mubr.f32.gmra.mrb[0].mxu0 %v534
        %v2009 = vpop.f32.mrb[0].mxu0
        %v2010 = vadd.f32 0.0, %v2009
        %v2011 = vpop.f32.mrb[0].mxu0
        %2012 = vmatprep.mubr.f32.mxu0 0.0
        %2013 = vmatmul.mubr.f32.gmra.mrb[0].mxu0 %v619
        %v2014 = vpop.f32.mrb[0].mxu0
        %v2015 = vadd.f32 0.0, %v2014
        %v2016 = vpop.f32.mrb[0].mxu0
        %2017 = vmatprep.mubr.f32.mxu0 0.0
        %2018 = vmatmul.mubr.f32.gmra.mrb[0].mxu0 %v704
        %v2019 = vpop.f32.mrb[0].mxu0
        %v2020 = vadd.f32 0.0, %v2019
        %v2021 = vpop.f32.mrb[0].mxu0
        %2022 = vmatprep.mubr.f32.mxu0 0.0
        %2023 = vmatmul.mubr.f32.gmra.mrb[0].mxu0 %v789
        %v2024 = vpop.f32.mrb[0].mxu0
        %v2025 = vadd.f32 0.0, %v2024
        %v2026 = vpop.f32.mrb[0].mxu0
        %2027 = vmatprep.mubr.f32.mxu0 0.0
        %2028 = vmatmul.mubr.f32.gmra.mrb[0].mxu0 %v874
        %v2029 = vpop.f32.mrb[0].mxu0
        %v2030 = vadd.f32 0.0, %v2029
        %v2031 = vpop.f32.mrb[0].mxu0
        %2032 = vmatprep.mubr.f32.mxu0 0.0
        %2033 = vmatmul.mubr.f32.gmra.mrb[0].mxu0 %v959
        %v2034 = vpop.f32.mrb[0].mxu0
        %v2035 = vadd.f32 0.0, %v2034
        %v2036 = vpop.f32.mrb[0].mxu0
        %2037 = vmatprep.mubr.f32.mxu0 0.0
        %2038 = vmatmul.mubr.f32.gmra.mrb[0].mxu0 %v1044
        %v2039 = vpop.f32.mrb[0].mxu0
        %v2040 = vadd.f32 0.0, %v2039
        %v2041 = vpop.f32.mrb[0].mxu0
        %2042 = vmatprep.mubr.f32.mxu0 0.0
        %2043 = vmatmul.mubr.f32.gmra.mrb[0].mxu0 %v1129
        %v2044 = vpop.f32.mrb[0].mxu0
        %v2045 = vadd.f32 0.0, %v2044
        %v2046 = vpop.f32.mrb[0].mxu0
        %2047 = vmatprep.mubr.f32.mxu0 0.0
        %2048 = vmatmul.mubr.f32.gmra.mrb[0].mxu0 %v1214
        %v2049 = vpop.f32.mrb[0].mxu0
        %v2050 = vadd.f32 0.0, %v2049
        %v2051 = vpop.f32.mrb[0].mxu0
        %2052 = vmatprep.mubr.f32.mxu0 0.0
        %2053 = vmatmul.mubr.f32.gmra.mrb[0].mxu0 %v1299
        %v2054 = vpop.f32.mrb[0].mxu0
        %v2055 = vadd.f32 0.0, %v2054
        %v2056 = vpop.f32.mrb[0].mxu0
        %2057 = vmatprep.mubr.f32.mxu0 0.0
        %2058 = vmatmul.mubr.f32.gmra.mrb[0].mxu0 %v1384
        %v2059 = vpop.f32.mrb[0].mxu0
        %v2060 = vadd.f32 0.0, %v2059
        %v2061 = vpop.f32.mrb[0].mxu0
        %2062 = vdwg.mxu0
        %v2063 = vld [vmem:[#allocation2] sm:$0xff]
        %v2064 = vld [vmem:[#allocation2 + $0x8] sm:$0xff]
        %v2065 = vld [vmem:[#allocation2 + $0x10] sm:$0xff]
        %v2066 = vld [vmem:[#allocation2 + $0x18] sm:$0xff]
        %v2067 = vld [vmem:[#allocation2 + $0x20] sm:$0xff]
        %v2068 = vld [vmem:[#allocation2 + $0x28] sm:$0xff]
        %v2069 = vld [vmem:[#allocation2 + $0x30] sm:$0xff]
        %v2070 = vld [vmem:[#allocation2 + $0x38] sm:$0xff]
        %v2071 = vld [vmem:[#allocation2 + $0x40] sm:$0xff]
        %v2072 = vld [vmem:[#allocation2 + $0x48] sm:$0xff]
        %v2073 = vld [vmem:[#allocation2 + $0x50] sm:$0xff]
        %v2074 = vld [vmem:[#allocation2 + $0x58] sm:$0xff]
        %v2075 = vld [vmem:[#allocation2 + $0x60] sm:$0xff]
        %v2076 = vld [vmem:[#allocation2 + $0x68] sm:$0xff]
        %v2077 = vld [vmem:[#allocation2 + $0x70] sm:$0xff]
        %v2078 = vld [vmem:[#allocation2 + $0x78] sm:$0xff]
        %v2079 = vadd.f32 %v2063, %v1985
        %v2080 = vadd.f32 %v2064, %v1990
        %v2081 = vadd.f32 %v2065, %v1995
        %v2082 = vadd.f32 %v2066, %v2000
        %v2083 = vadd.f32 %v2067, %v2005
        %v2084 = vadd.f32 %v2068, %v2010
        %v2085 = vadd.f32 %v2069, %v2015
        %v2086 = vadd.f32 %v2070, %v2020
        %v2087 = vadd.f32 %v2071, %v2025
        %v2088 = vadd.f32 %v2072, %v2030
        %v2089 = vadd.f32 %v2073, %v2035
        %v2090 = vadd.f32 %v2074, %v2040
        %v2091 = vadd.f32 %v2075, %v2045
        %v2092 = vadd.f32 %v2076, %v2050
        %v2093 = vadd.f32 %v2077, %v2055
        %v2094 = vadd.f32 %v2078, %v2060
        %2095 = vst [vmem:[#allocation2] sm:$0xff] %v2079
        %2096 = vst [vmem:[#allocation2 + $0x8] sm:$0xff] %v2080
        %2097 = vst [vmem:[#allocation2 + $0x10] sm:$0xff] %v2081
        %2098 = vst [vmem:[#allocation2 + $0x18] sm:$0xff] %v2082
        %2099 = vst [vmem:[#allocation2 + $0x20] sm:$0xff] %v2083
        %2100 = vst [vmem:[#allocation2 + $0x28] sm:$0xff] %v2084
        %2101 = vst [vmem:[#allocation2 + $0x30] sm:$0xff] %v2085
        %2102 = vst [vmem:[#allocation2 + $0x38] sm:$0xff] %v2086
        %2103 = vst [vmem:[#allocation2 + $0x40] sm:$0xff] %v2087
        %2104 = vst [vmem:[#allocation2 + $0x48] sm:$0xff] %v2088
        %2105 = vst [vmem:[#allocation2 + $0x50] sm:$0xff] %v2089
        %2106 = vst [vmem:[#allocation2 + $0x58] sm:$0xff] %v2090
        %2107 = vst [vmem:[#allocation2 + $0x60] sm:$0xff] %v2091
        %2108 = vst [vmem:[#allocation2 + $0x68] sm:$0xff] %v2092
        %2109 = vst [vmem:[#allocation2 + $0x70] sm:$0xff] %v2093
        %2110 = vst [vmem:[#allocation2 + $0x78] sm:$0xff] %v2094
        %v2111 = vld [vmem:[#allocation9 + $0x100] sm:$0xff]
        %v2112 = vld [vmem:[#allocation9 + $0x108] sm:$0xff]
        %v2113 = vld [vmem:[#allocation9 + $0x110] sm:$0xff]
        %v2114 = vld [vmem:[#allocation9 + $0x118] sm:$0xff]
        %v2115 = vld [vmem:[#allocation9 + $0x120] sm:$0xff]
        %v2116 = vld [vmem:[#allocation9 + $0x128] sm:$0xff]
        %v2117 = vld [vmem:[#allocation9 + $0x130] sm:$0xff]
        %v2118 = vld [vmem:[#allocation9 + $0x138] sm:$0xff]
        %v2119 = vld [vmem:[#allocation9 + $0x140] sm:$0xff]
        %v2120 = vld [vmem:[#allocation9 + $0x148] sm:$0xff]
        %v2121 = vld [vmem:[#allocation9 + $0x150] sm:$0xff]
        %v2122 = vld [vmem:[#allocation9 + $0x158] sm:$0xff]
        %v2123 = vld [vmem:[#allocation9 + $0x160] sm:$0xff]
        %v2124 = vld [vmem:[#allocation9 + $0x168] sm:$0xff]
        %v2125 = vld [vmem:[#allocation9 + $0x170] sm:$0xff]
        %v2126 = vld [vmem:[#allocation9 + $0x178] sm:$0xff]
        %2127 = vmatprep.subr.mxu0 0.0
        %2128 = vmatpush1.msra.mxu0 %v2111
        %2129 = vmatprep.subr.mxu0 0.0
        %2130 = vmatpush1.msra.mxu0 %v2112
        %2131 = vmatprep.subr.mxu0 0.0
        %2132 = vmatpush1.msra.mxu0 %v2113
        %2133 = vmatprep.subr.mxu0 0.0
        %2134 = vmatpush1.msra.mxu0 %v2114
        %2135 = vmatprep.subr.mxu0 0.0
        %2136 = vmatpush1.msra.mxu0 %v2115
        %2137 = vmatprep.subr.mxu0 0.0
        %2138 = vmatpush1.msra.mxu0 %v2116
        %2139 = vmatprep.subr.mxu0 0.0
        %2140 = vmatpush1.msra.mxu0 %v2117
        %2141 = vmatprep.subr.mxu0 0.0
        %2142 = vmatpush1.msra.mxu0 %v2118
        %2143 = vmatprep.subr.mxu0 0.0
        %2144 = vmatpush1.msra.mxu0 %v2119
        %2145 = vmatprep.subr.mxu0 0.0
        %2146 = vmatpush1.msra.mxu0 %v2120
        %2147 = vmatprep.subr.mxu0 0.0
        %2148 = vmatpush1.msra.mxu0 %v2121
        %2149 = vmatprep.subr.mxu0 0.0
        %2150 = vmatpush1.msra.mxu0 %v2122
        %2151 = vmatprep.subr.mxu0 0.0
        %2152 = vmatpush1.msra.mxu0 %v2123
        %2153 = vmatprep.subr.mxu0 0.0
        %2154 = vmatpush1.msra.mxu0 %v2124
        %2155 = vmatprep.subr.mxu0 0.0
        %2156 = vmatpush1.msra.mxu0 %v2125
        %2157 = vmatprep.subr.mxu0 0.0
        %2158 = vmatpush1.msra.mxu0 %v2126
        %2159 = vmatprep.subr.mxu0 0.0
        %2160 = vmatpush1.msra.mxu0 0.0
        %2161 = vmatprep.subr.mxu0 0.0
        %2162 = vmatpush1.msra.mxu0 0.0
        %2163 = vmatprep.subr.mxu0 0.0
        %2164 = vmatpush1.msra.mxu0 0.0
        %2165 = vmatprep.subr.mxu0 0.0
        %2166 = vmatpush1.msra.mxu0 0.0
        %2167 = vmatprep.subr.mxu0 0.0
        %2168 = vmatpush1.msra.mxu0 0.0
        %2169 = vmatprep.subr.mxu0 0.0
        %2170 = vmatpush1.msra.mxu0 0.0
        %2171 = vmatprep.subr.mxu0 0.0
        %2172 = vmatpush1.msra.mxu0 0.0
        %2173 = vmatprep.subr.mxu0 0.0
        %2174 = vmatpush1.msra.mxu0 0.0
        %2175 = vmatprep.subr.mxu0 0.0
        %2176 = vmatpush1.msra.mxu0 0.0
        %2177 = vmatprep.subr.mxu0 0.0
        %2178 = vmatpush1.msra.mxu0 0.0
        %2179 = vmatprep.subr.mxu0 0.0
        %2180 = vmatpush1.msra.mxu0 0.0
        %2181 = vmatprep.subr.mxu0 0.0
        %2182 = vmatpush1.msra.mxu0 0.0
        %2183 = vmatprep.subr.mxu0 0.0
        %2184 = vmatpush1.msra.mxu0 0.0
        %2185 = vmatprep.subr.mxu0 0.0
        %2186 = vmatpush1.msra.mxu0 0.0
        %2187 = vmatprep.subr.mxu0 0.0
        %2188 = vmatpush1.msra.mxu0 0.0
        %2189 = vmatprep.subr.mxu0 0.0
        %2190 = vmatpush1.msra.mxu0 0.0
        %2191 = vmatprep.mubr.f32.mxu0 0.0
        %2192 = vmatmul.mubr.f32.gmra.mrb[0].mxu0 0.0
        %v2193 = vpop.f32.mrb[0].mxu0
        %v2194 = vadd.f32 0.0, %v2193
        %v2195 = vpop.f32.mrb[0].mxu0
        %2196 = vmatprep.mubr.f32.mxu0 0.0
        %2197 = vmatmul.mubr.f32.gmra.mrb[0].mxu0 0.0
        %v2198 = vpop.f32.mrb[0].mxu0
        %v2199 = vadd.f32 0.0, %v2198
        %v2200 = vpop.f32.mrb[0].mxu0
        %2201 = vmatprep.mubr.f32.mxu0 0.0
        %2202 = vmatmul.mubr.f32.gmra.mrb[0].mxu0 0.0
        %v2203 = vpop.f32.mrb[0].mxu0
        %v2204 = vadd.f32 0.0, %v2203
        %v2205 = vpop.f32.mrb[0].mxu0
        %2206 = vmatprep.mubr.f32.mxu0 0.0
        %2207 = vmatmul.mubr.f32.gmra.mrb[0].mxu0 0.0
        %v2208 = vpop.f32.mrb[0].mxu0
        %v2209 = vadd.f32 0.0, %v2208
        %v2210 = vpop.f32.mrb[0].mxu0
        %2211 = vmatprep.mubr.f32.mxu0 0.0
        %2212 = vmatmul.mubr.f32.gmra.mrb[0].mxu0 %v534
        %v2213 = vpop.f32.mrb[0].mxu0
        %v2214 = vadd.f32 0.0, %v2213
        %v2215 = vpop.f32.mrb[0].mxu0
        %2216 = vmatprep.mubr.f32.mxu0 0.0
        %2217 = vmatmul.mubr.f32.gmra.mrb[0].mxu0 %v619
        %v2218 = vpop.f32.mrb[0].mxu0
        %v2219 = vadd.f32 0.0, %v2218
        %v2220 = vpop.f32.mrb[0].mxu0
        %2221 = vmatprep.mubr.f32.mxu0 0.0
        %2222 = vmatmul.mubr.f32.gmra.mrb[0].mxu0 %v704
        %v2223 = vpop.f32.mrb[0].mxu0
        %v2224 = vadd.f32 0.0, %v2223
        %v2225 = vpop.f32.mrb[0].mxu0
        %2226 = vmatprep.mubr.f32.mxu0 0.0
        %2227 = vmatmul.mubr.f32.gmra.mrb[0].mxu0 0.0
        %v2228 = vpop.f32.mrb[0].mxu0
        %v2229 = vadd.f32 0.0, %v2228
        %v2230 = vpop.f32.mrb[0].mxu0
        %2231 = vmatprep.mubr.f32.mxu0 0.0
        %2232 = vmatmul.mubr.f32.gmra.mrb[0].mxu0 %v874
        %v2233 = vpop.f32.mrb[0].mxu0
        %v2234 = vadd.f32 0.0, %v2233
        %v2235 = vpop.f32.mrb[0].mxu0
        %2236 = vmatprep.mubr.f32.mxu0 0.0
        %2237 = vmatmul.mubr.f32.gmra.mrb[0].mxu0 %v959
        %v2238 = vpop.f32.mrb[0].mxu0
        %v2239 = vadd.f32 0.0, %v2238
        %v2240 = vpop.f32.mrb[0].mxu0
        %2241 = vmatprep.mubr.f32.mxu0 0.0
        %2242 = vmatmul.mubr.f32.gmra.mrb[0].mxu0 %v1044
        %v2243 = vpop.f32.mrb[0].mxu0
        %v2244 = vadd.f32 0.0, %v2243
        %v2245 = vpop.f32.mrb[0].mxu0
        %2246 = vmatprep.mubr.f32.mxu0 0.0
        %2247 = vmatmul.mubr.f32.gmra.mrb[0].mxu0 0.0
        %v2248 = vpop.f32.mrb[0].mxu0
        %v2249 = vadd.f32 0.0, %v2248
        %v2250 = vpop.f32.mrb[0].mxu0
        %2251 = vmatprep.mubr.f32.mxu0 0.0
        %2252 = vmatmul.mubr.f32.gmra.mrb[0].mxu0 %v1214
        %v2253 = vpop.f32.mrb[0].mxu0
        %v2254 = vadd.f32 0.0, %v2253
        %v2255 = vpop.f32.mrb[0].mxu0
        %2256 = vmatprep.mubr.f32.mxu0 0.0
        %2257 = vmatmul.mubr.f32.gmra.mrb[0].mxu0 %v1299
        %v2258 = vpop.f32.mrb[0].mxu0
        %v2259 = vadd.f32 0.0, %v2258
        %v2260 = vpop.f32.mrb[0].mxu0
        %2261 = vmatprep.mubr.f32.mxu0 0.0
        %2262 = vmatmul.mubr.f32.gmra.mrb[0].mxu0 %v1384
        %v2263 = vpop.f32.mrb[0].mxu0
        %v2264 = vadd.f32 0.0, %v2263
        %v2265 = vpop.f32.mrb[0].mxu0
        %2266 = vmatprep.mubr.f32.mxu0 0.0
        %2267 = vmatmul.mubr.f32.gmra.mrb[0].mxu0 0.0
        %v2268 = vpop.f32.mrb[0].mxu0
        %v2269 = vadd.f32 0.0, %v2268
        %v2270 = vpop.f32.mrb[0].mxu0
        %2271 = vdwg.mxu0
        %v2272 = vld [vmem:[#allocation2] sm:$0xff]
        %v2273 = vld [vmem:[#allocation2 + $0x8] sm:$0xff]
        %v2274 = vld [vmem:[#allocation2 + $0x10] sm:$0xff]
        %v2275 = vld [vmem:[#allocation2 + $0x18] sm:$0xff]
        %v2276 = vld [vmem:[#allocation2 + $0x20] sm:$0xff]
        %v2277 = vld [vmem:[#allocation2 + $0x28] sm:$0xff]
        %v2278 = vld [vmem:[#allocation2 + $0x30] sm:$0xff]
        %v2279 = vld [vmem:[#allocation2 + $0x38] sm:$0xff]
        %v2280 = vld [vmem:[#allocation2 + $0x40] sm:$0xff]
        %v2281 = vld [vmem:[#allocation2 + $0x48] sm:$0xff]
        %v2282 = vld [vmem:[#allocation2 + $0x50] sm:$0xff]
        %v2283 = vld [vmem:[#allocation2 + $0x58] sm:$0xff]
        %v2284 = vld [vmem:[#allocation2 + $0x60] sm:$0xff]
        %v2285 = vld [vmem:[#allocation2 + $0x68] sm:$0xff]
        %v2286 = vld [vmem:[#allocation2 + $0x70] sm:$0xff]
        %v2287 = vld [vmem:[#allocation2 + $0x78] sm:$0xff]
        %v2288 = vadd.f32 %v2272, %v2194
        %v2289 = vadd.f32 %v2273, %v2199
        %v2290 = vadd.f32 %v2274, %v2204
        %v2291 = vadd.f32 %v2275, %v2209
        %v2292 = vadd.f32 %v2276, %v2214
        %v2293 = vadd.f32 %v2277, %v2219
        %v2294 = vadd.f32 %v2278, %v2224
        %v2295 = vadd.f32 %v2279, %v2229
        %v2296 = vadd.f32 %v2280, %v2234
        %v2297 = vadd.f32 %v2281, %v2239
        %v2298 = vadd.f32 %v2282, %v2244
        %v2299 = vadd.f32 %v2283, %v2249
        %v2300 = vadd.f32 %v2284, %v2254
        %v2301 = vadd.f32 %v2285, %v2259
        %v2302 = vadd.f32 %v2286, %v2264
        %v2303 = vadd.f32 %v2287, %v2269
        %2304 = vst [vmem:[#allocation2] sm:$0xff] %v2288
        %2305 = vst [vmem:[#allocation2 + $0x8] sm:$0xff] %v2289
        %2306 = vst [vmem:[#allocation2 + $0x10] sm:$0xff] %v2290
        %2307 = vst [vmem:[#allocation2 + $0x18] sm:$0xff] %v2291
        %2308 = vst [vmem:[#allocation2 + $0x20] sm:$0xff] %v2292
        %2309 = vst [vmem:[#allocation2 + $0x28] sm:$0xff] %v2293
        %2310 = vst [vmem:[#allocation2 + $0x30] sm:$0xff] %v2294
        %2311 = vst [vmem:[#allocation2 + $0x38] sm:$0xff] %v2295
        %2312 = vst [vmem:[#allocation2 + $0x40] sm:$0xff] %v2296
        %2313 = vst [vmem:[#allocation2 + $0x48] sm:$0xff] %v2297
        %2314 = vst [vmem:[#allocation2 + $0x50] sm:$0xff] %v2298
        %2315 = vst [vmem:[#allocation2 + $0x58] sm:$0xff] %v2299
        %2316 = vst [vmem:[#allocation2 + $0x60] sm:$0xff] %v2300
        %2317 = vst [vmem:[#allocation2 + $0x68] sm:$0xff] %v2301
        %2318 = vst [vmem:[#allocation2 + $0x70] sm:$0xff] %v2302
        %2319 = vst [vmem:[#allocation2 + $0x78] sm:$0xff] %v2303
        %v2320 = vld [vmem:[#allocation9 + $0x180] sm:$0xff]
        %v2321 = vld [vmem:[#allocation9 + $0x188] sm:$0xff]
        %v2322 = vld [vmem:[#allocation9 + $0x190] sm:$0xff]
        %v2323 = vld [vmem:[#allocation9 + $0x198] sm:$0xff]
        %v2324 = vld [vmem:[#allocation9 + $0x1a0] sm:$0xff]
        %v2325 = vld [vmem:[#allocation9 + $0x1a8] sm:$0xff]
        %v2326 = vld [vmem:[#allocation9 + $0x1b0] sm:$0xff]
        %v2327 = vld [vmem:[#allocation9 + $0x1b8] sm:$0xff]
        %v2328 = vld [vmem:[#allocation9 + $0x1c0] sm:$0xff]
        %v2329 = vld [vmem:[#allocation9 + $0x1c8] sm:$0xff]
        %v2330 = vld [vmem:[#allocation9 + $0x1d0] sm:$0xff]
        %v2331 = vld [vmem:[#allocation9 + $0x1d8] sm:$0xff]
        %v2332 = vld [vmem:[#allocation9 + $0x1e0] sm:$0xff]
        %v2333 = vld [vmem:[#allocation9 + $0x1e8] sm:$0xff]
        %v2334 = vld [vmem:[#allocation9 + $0x1f0] sm:$0xff]
        %v2335 = vld [vmem:[#allocation9 + $0x1f8] sm:$0xff]
        %2336 = vmatprep.subr.mxu0 0.0
        %2337 = vmatpush1.msra.mxu0 %v2320
        %2338 = vmatprep.subr.mxu0 0.0
        %2339 = vmatpush1.msra.mxu0 %v2321
        %2340 = vmatprep.subr.mxu0 0.0
        %2341 = vmatpush1.msra.mxu0 %v2322
        %2342 = vmatprep.subr.mxu0 0.0
        %2343 = vmatpush1.msra.mxu0 %v2323
        %2344 = vmatprep.subr.mxu0 0.0
        %2345 = vmatpush1.msra.mxu0 %v2324
        %2346 = vmatprep.subr.mxu0 0.0
        %2347 = vmatpush1.msra.mxu0 %v2325
        %2348 = vmatprep.subr.mxu0 0.0
        %2349 = vmatpush1.msra.mxu0 %v2326
        %2350 = vmatprep.subr.mxu0 0.0
        %2351 = vmatpush1.msra.mxu0 %v2327
        %2352 = vmatprep.subr.mxu0 0.0
        %2353 = vmatpush1.msra.mxu0 %v2328
        %2354 = vmatprep.subr.mxu0 0.0
        %2355 = vmatpush1.msra.mxu0 %v2329
        %2356 = vmatprep.subr.mxu0 0.0
        %2357 = vmatpush1.msra.mxu0 %v2330
        %2358 = vmatprep.subr.mxu0 0.0
        %2359 = vmatpush1.msra.mxu0 %v2331
        %2360 = vmatprep.subr.mxu0 0.0
        %2361 = vmatpush1.msra.mxu0 %v2332
        %2362 = vmatprep.subr.mxu0 0.0
        %2363 = vmatpush1.msra.mxu0 %v2333
        %2364 = vmatprep.subr.mxu0 0.0
        %2365 = vmatpush1.msra.mxu0 %v2334
        %2366 = vmatprep.subr.mxu0 0.0
        %2367 = vmatpush1.msra.mxu0 %v2335
        %2368 = vmatprep.subr.mxu0 0.0
        %2369 = vmatpush1.msra.mxu0 0.0
        %2370 = vmatprep.subr.mxu0 0.0
        %2371 = vmatpush1.msra.mxu0 0.0
        %2372 = vmatprep.subr.mxu0 0.0
        %2373 = vmatpush1.msra.mxu0 0.0
        %2374 = vmatprep.subr.mxu0 0.0
        %2375 = vmatpush1.msra.mxu0 0.0
        %2376 = vmatprep.subr.mxu0 0.0
        %2377 = vmatpush1.msra.mxu0 0.0
        %2378 = vmatprep.subr.mxu0 0.0
        %2379 = vmatpush1.msra.mxu0 0.0
        %2380 = vmatprep.subr.mxu0 0.0
        %2381 = vmatpush1.msra.mxu0 0.0
        %2382 = vmatprep.subr.mxu0 0.0
        %2383 = vmatpush1.msra.mxu0 0.0
        %2384 = vmatprep.subr.mxu0 0.0
        %2385 = vmatpush1.msra.mxu0 0.0
        %2386 = vmatprep.subr.mxu0 0.0
        %2387 = vmatpush1.msra.mxu0 0.0
        %2388 = vmatprep.subr.mxu0 0.0
        %2389 = vmatpush1.msra.mxu0 0.0
        %2390 = vmatprep.subr.mxu0 0.0
        %2391 = vmatpush1.msra.mxu0 0.0
        %2392 = vmatprep.subr.mxu0 0.0
        %2393 = vmatpush1.msra.mxu0 0.0
        %2394 = vmatprep.subr.mxu0 0.0
        %2395 = vmatpush1.msra.mxu0 0.0
        %2396 = vmatprep.subr.mxu0 0.0
        %2397 = vmatpush1.msra.mxu0 0.0
        %2398 = vmatprep.subr.mxu0 0.0
        %2399 = vmatpush1.msra.mxu0 0.0
        %2400 = vmatprep.mubr.f32.mxu0 0.0
        %2401 = vmatmul.mubr.f32.gmra.mrb[0].mxu0 0.0
        %v2402 = vpop.f32.mrb[0].mxu0
        %v2403 = vadd.f32 0.0, %v2402
        %v2404 = vpop.f32.mrb[0].mxu0
        %2405 = vmatprep.mubr.f32.mxu0 0.0
        %2406 = vmatmul.mubr.f32.gmra.mrb[0].mxu0 %v449
        %v2407 = vpop.f32.mrb[0].mxu0
        %v2408 = vadd.f32 0.0, %v2407
        %v2409 = vpop.f32.mrb[0].mxu0
        %2410 = vmatprep.mubr.f32.mxu0 0.0
        %2411 = vmatmul.mubr.f32.gmra.mrb[0].mxu0 %v534
        %v2412 = vpop.f32.mrb[0].mxu0
        %v2413 = vadd.f32 0.0, %v2412
        %v2414 = vpop.f32.mrb[0].mxu0
        %2415 = vmatprep.mubr.f32.mxu0 0.0
        %2416 = vmatmul.mubr.f32.gmra.mrb[0].mxu0 %v619
        %v2417 = vpop.f32.mrb[0].mxu0
        %v2418 = vadd.f32 0.0, %v2417
        %v2419 = vpop.f32.mrb[0].mxu0
        %2420 = vmatprep.mubr.f32.mxu0 0.0
        %2421 = vmatmul.mubr.f32.gmra.mrb[0].mxu0 0.0
        %v2422 = vpop.f32.mrb[0].mxu0
        %v2423 = vadd.f32 0.0, %v2422
        %v2424 = vpop.f32.mrb[0].mxu0
        %2425 = vmatprep.mubr.f32.mxu0 0.0
        %2426 = vmatmul.mubr.f32.gmra.mrb[0].mxu0 %v789
        %v2427 = vpop.f32.mrb[0].mxu0
        %v2428 = vadd.f32 0.0, %v2427
        %v2429 = vpop.f32.mrb[0].mxu0
        %2430 = vmatprep.mubr.f32.mxu0 0.0
        %2431 = vmatmul.mubr.f32.gmra.mrb[0].mxu0 %v874
        %v2432 = vpop.f32.mrb[0].mxu0
        %v2433 = vadd.f32 0.0, %v2432
        %v2434 = vpop.f32.mrb[0].mxu0
        %2435 = vmatprep.mubr.f32.mxu0 0.0
        %2436 = vmatmul.mubr.f32.gmra.mrb[0].mxu0 %v959
        %v2437 = vpop.f32.mrb[0].mxu0
        %v2438 = vadd.f32 0.0, %v2437
        %v2439 = vpop.f32.mrb[0].mxu0
        %2440 = vmatprep.mubr.f32.mxu0 0.0
        %2441 = vmatmul.mubr.f32.gmra.mrb[0].mxu0 0.0
        %v2442 = vpop.f32.mrb[0].mxu0
        %v2443 = vadd.f32 0.0, %v2442
        %v2444 = vpop.f32.mrb[0].mxu0
        %2445 = vmatprep.mubr.f32.mxu0 0.0
        %2446 = vmatmul.mubr.f32.gmra.mrb[0].mxu0 %v1129
        %v2447 = vpop.f32.mrb[0].mxu0
        %v2448 = vadd.f32 0.0, %v2447
        %v2449 = vpop.f32.mrb[0].mxu0
        %2450 = vmatprep.mubr.f32.mxu0 0.0
        %2451 = vmatmul.mubr.f32.gmra.mrb[0].mxu0 %v1214
        %v2452 = vpop.f32.mrb[0].mxu0
        %v2453 = vadd.f32 0.0, %v2452
        %v2454 = vpop.f32.mrb[0].mxu0
        %2455 = vmatprep.mubr.f32.mxu0 0.0
        %2456 = vmatmul.mubr.f32.gmra.mrb[0].mxu0 %v1299
        %v2457 = vpop.f32.mrb[0].mxu0
        %v2458 = vadd.f32 0.0, %v2457
        %v2459 = vpop.f32.mrb[0].mxu0
        %2460 = vmatprep.mubr.f32.mxu0 0.0
        %2461 = vmatmul.mubr.f32.gmra.mrb[0].mxu0 0.0
        %v2462 = vpop.f32.mrb[0].mxu0
        %v2463 = vadd.f32 0.0, %v2462
        %v2464 = vpop.f32.mrb[0].mxu0
        %2465 = vmatprep.mubr.f32.mxu0 0.0
        %2466 = vmatmul.mubr.f32.gmra.mrb[0].mxu0 %v1469
        %v2467 = vpop.f32.mrb[0].mxu0
        %v2468 = vadd.f32 0.0, %v2467
        %v2469 = vpop.f32.mrb[0].mxu0
        %2470 = vmatprep.mubr.f32.mxu0 0.0
        %2471 = vmatmul.mubr.f32.gmra.mrb[0].mxu0 %v1554
        %v2472 = vpop.f32.mrb[0].mxu0
        %v2473 = vadd.f32 0.0, %v2472
        %v2474 = vpop.f32.mrb[0].mxu0
        %2475 = vmatprep.mubr.f32.mxu0 0.0
        %2476 = vmatmul.mubr.f32.gmra.mrb[0].mxu0 %v1639
        %v2477 = vpop.f32.mrb[0].mxu0
        %v2478 = vadd.f32 0.0, %v2477
        %v2479 = vpop.f32.mrb[0].mxu0
        %2480 = vdwg.mxu0
        %v2481 = vld [vmem:[#allocation2] sm:$0xff]
        %v2482 = vld [vmem:[#allocation2 + $0x8] sm:$0xff]
        %v2483 = vld [vmem:[#allocation2 + $0x10] sm:$0xff]
        %v2484 = vld [vmem:[#allocation2 + $0x18] sm:$0xff]
        %v2485 = vld [vmem:[#allocation2 + $0x20] sm:$0xff]
        %v2486 = vld [vmem:[#allocation2 + $0x28] sm:$0xff]
        %v2487 = vld [vmem:[#allocation2 + $0x30] sm:$0xff]
        %v2488 = vld [vmem:[#allocation2 + $0x38] sm:$0xff]
        %v2489 = vld [vmem:[#allocation2 + $0x40] sm:$0xff]
        %v2490 = vld [vmem:[#allocation2 + $0x48] sm:$0xff]
        %v2491 = vld [vmem:[#allocation2 + $0x50] sm:$0xff]
        %v2492 = vld [vmem:[#allocation2 + $0x58] sm:$0xff]
        %v2493 = vld [vmem:[#allocation2 + $0x60] sm:$0xff]
        %v2494 = vld [vmem:[#allocation2 + $0x68] sm:$0xff]
        %v2495 = vld [vmem:[#allocation2 + $0x70] sm:$0xff]
        %v2496 = vld [vmem:[#allocation2 + $0x78] sm:$0xff]
        %v2497 = vadd.f32 %v2481, %v2403
        %v2498 = vadd.f32 %v2482, %v2408
        %v2499 = vadd.f32 %v2483, %v2413
        %v2500 = vadd.f32 %v2484, %v2418
        %v2501 = vadd.f32 %v2485, %v2423
        %v2502 = vadd.f32 %v2486, %v2428
        %v2503 = vadd.f32 %v2487, %v2433
        %v2504 = vadd.f32 %v2488, %v2438
        %v2505 = vadd.f32 %v2489, %v2443
        %v2506 = vadd.f32 %v2490, %v2448
        %v2507 = vadd.f32 %v2491, %v2453
        %v2508 = vadd.f32 %v2492, %v2458
        %v2509 = vadd.f32 %v2493, %v2463
        %v2510 = vadd.f32 %v2494, %v2468
        %v2511 = vadd.f32 %v2495, %v2473
        %v2512 = vadd.f32 %v2496, %v2478
        %2513 = vst [vmem:[#allocation2] sm:$0xff] %v2497
        %2514 = vst [vmem:[#allocation2 + $0x8] sm:$0xff] %v2498
        %2515 = vst [vmem:[#allocation2 + $0x10] sm:$0xff] %v2499
        %2516 = vst [vmem:[#allocation2 + $0x18] sm:$0xff] %v2500
        %2517 = vst [vmem:[#allocation2 + $0x20] sm:$0xff] %v2501
        %2518 = vst [vmem:[#allocation2 + $0x28] sm:$0xff] %v2502
        %2519 = vst [vmem:[#allocation2 + $0x30] sm:$0xff] %v2503
        %2520 = vst [vmem:[#allocation2 + $0x38] sm:$0xff] %v2504
        %2521 = vst [vmem:[#allocation2 + $0x40] sm:$0xff] %v2505
        %2522 = vst [vmem:[#allocation2 + $0x48] sm:$0xff] %v2506
        %2523 = vst [vmem:[#allocation2 + $0x50] sm:$0xff] %v2507
        %2524 = vst [vmem:[#allocation2 + $0x58] sm:$0xff] %v2508
        %2525 = vst [vmem:[#allocation2 + $0x60] sm:$0xff] %v2509
        %2526 = vst [vmem:[#allocation2 + $0x68] sm:$0xff] %v2510
        %2527 = vst [vmem:[#allocation2 + $0x70] sm:$0xff] %v2511
        %2528 = vst [vmem:[#allocation2 + $0x78] sm:$0xff] %v2512
        %v2529 = vld [vmem:[#allocation9 + $0x200] sm:$0xff]
        %v2530 = vld [vmem:[#allocation9 + $0x208] sm:$0xff]
        %v2531 = vld [vmem:[#allocation9 + $0x210] sm:$0xff]
        %v2532 = vld [vmem:[#allocation9 + $0x218] sm:$0xff]
        %v2533 = vld [vmem:[#allocation9 + $0x220] sm:$0xff]
        %v2534 = vld [vmem:[#allocation9 + $0x228] sm:$0xff]
        %v2535 = vld [vmem:[#allocation9 + $0x230] sm:$0xff]
        %v2536 = vld [vmem:[#allocation9 + $0x238] sm:$0xff]
        %v2537 = vld [vmem:[#allocation9 + $0x240] sm:$0xff]
        %v2538 = vld [vmem:[#allocation9 + $0x248] sm:$0xff]
        %v2539 = vld [vmem:[#allocation9 + $0x250] sm:$0xff]
        %v2540 = vld [vmem:[#allocation9 + $0x258] sm:$0xff]
        %v2541 = vld [vmem:[#allocation9 + $0x260] sm:$0xff]
        %v2542 = vld [vmem:[#allocation9 + $0x268] sm:$0xff]
        %v2543 = vld [vmem:[#allocation9 + $0x270] sm:$0xff]
        %v2544 = vld [vmem:[#allocation9 + $0x278] sm:$0xff]
        %2545 = vmatprep.subr.mxu0 0.0
        %2546 = vmatpush1.msra.mxu0 %v2529
        %2547 = vmatprep.subr.mxu0 0.0
        %2548 = vmatpush1.msra.mxu0 %v2530
        %2549 = vmatprep.subr.mxu0 0.0
        %2550 = vmatpush1.msra.mxu0 %v2531
        %2551 = vmatprep.subr.mxu0 0.0
        %2552 = vmatpush1.msra.mxu0 %v2532
        %2553 = vmatprep.subr.mxu0 0.0
        %2554 = vmatpush1.msra.mxu0 %v2533
        %2555 = vmatprep.subr.mxu0 0.0
        %2556 = vmatpush1.msra.mxu0 %v2534
        %2557 = vmatprep.subr.mxu0 0.0
        %2558 = vmatpush1.msra.mxu0 %v2535
        %2559 = vmatprep.subr.mxu0 0.0
        %2560 = vmatpush1.msra.mxu0 %v2536
        %2561 = vmatprep.subr.mxu0 0.0
        %2562 = vmatpush1.msra.mxu0 %v2537
        %2563 = vmatprep.subr.mxu0 0.0
        %2564 = vmatpush1.msra.mxu0 %v2538
        %2565 = vmatprep.subr.mxu0 0.0
        %2566 = vmatpush1.msra.mxu0 %v2539
        %2567 = vmatprep.subr.mxu0 0.0
        %2568 = vmatpush1.msra.mxu0 %v2540
        %2569 = vmatprep.subr.mxu0 0.0
        %2570 = vmatpush1.msra.mxu0 %v2541
        %2571 = vmatprep.subr.mxu0 0.0
        %2572 = vmatpush1.msra.mxu0 %v2542
        %2573 = vmatprep.subr.mxu0 0.0
        %2574 = vmatpush1.msra.mxu0 %v2543
        %2575 = vmatprep.subr.mxu0 0.0
        %2576 = vmatpush1.msra.mxu0 %v2544
        %2577 = vmatprep.subr.mxu0 0.0
        %2578 = vmatpush1.msra.mxu0 0.0
        %2579 = vmatprep.subr.mxu0 0.0
        %2580 = vmatpush1.msra.mxu0 0.0
        %2581 = vmatprep.subr.mxu0 0.0
        %2582 = vmatpush1.msra.mxu0 0.0
        %2583 = vmatprep.subr.mxu0 0.0
        %2584 = vmatpush1.msra.mxu0 0.0
        %2585 = vmatprep.subr.mxu0 0.0
        %2586 = vmatpush1.msra.mxu0 0.0
        %2587 = vmatprep.subr.mxu0 0.0
        %2588 = vmatpush1.msra.mxu0 0.0
        %2589 = vmatprep.subr.mxu0 0.0
        %2590 = vmatpush1.msra.mxu0 0.0
        %2591 = vmatprep.subr.mxu0 0.0
        %2592 = vmatpush1.msra.mxu0 0.0
        %2593 = vmatprep.subr.mxu0 0.0
        %2594 = vmatpush1.msra.mxu0 0.0
        %2595 = vmatprep.subr.mxu0 0.0
        %2596 = vmatpush1.msra.mxu0 0.0
        %2597 = vmatprep.subr.mxu0 0.0
        %2598 = vmatpush1.msra.mxu0 0.0
        %2599 = vmatprep.subr.mxu0 0.0
        %2600 = vmatpush1.msra.mxu0 0.0
        %2601 = vmatprep.subr.mxu0 0.0
        %2602 = vmatpush1.msra.mxu0 0.0
        %2603 = vmatprep.subr.mxu0 0.0
        %2604 = vmatpush1.msra.mxu0 0.0
        %2605 = vmatprep.subr.mxu0 0.0
        %2606 = vmatpush1.msra.mxu0 0.0
        %2607 = vmatprep.subr.mxu0 0.0
        %2608 = vmatpush1.msra.mxu0 0.0
        %2609 = vmatprep.mubr.f32.mxu0 0.0
        %2610 = vmatmul.mubr.f32.gmra.mrb[0].mxu0 %v449
        %v2611 = vpop.f32.mrb[0].mxu0
        %v2612 = vadd.f32 0.0, %v2611
        %v2613 = vpop.f32.mrb[0].mxu0
        %2614 = vmatprep.mubr.f32.mxu0 0.0
        %2615 = vmatmul.mubr.f32.gmra.mrb[0].mxu0 %v534
        %v2616 = vpop.f32.mrb[0].mxu0
        %v2617 = vadd.f32 0.0, %v2616
        %v2618 = vpop.f32.mrb[0].mxu0
        %2619 = vmatprep.mubr.f32.mxu0 0.0
        %2620 = vmatmul.mubr.f32.gmra.mrb[0].mxu0 %v619
        %v2621 = vpop.f32.mrb[0].mxu0
        %v2622 = vadd.f32 0.0, %v2621
        %v2623 = vpop.f32.mrb[0].mxu0
        %2624 = vmatprep.mubr.f32.mxu0 0.0
        %2625 = vmatmul.mubr.f32.gmra.mrb[0].mxu0 %v704
        %v2626 = vpop.f32.mrb[0].mxu0
        %v2627 = vadd.f32 0.0, %v2626
        %v2628 = vpop.f32.mrb[0].mxu0
        %2629 = vmatprep.mubr.f32.mxu0 0.0
        %2630 = vmatmul.mubr.f32.gmra.mrb[0].mxu0 %v789
        %v2631 = vpop.f32.mrb[0].mxu0
        %v2632 = vadd.f32 0.0, %v2631
        %v2633 = vpop.f32.mrb[0].mxu0
        %2634 = vmatprep.mubr.f32.mxu0 0.0
        %2635 = vmatmul.mubr.f32.gmra.mrb[0].mxu0 %v874
        %v2636 = vpop.f32.mrb[0].mxu0
        %v2637 = vadd.f32 0.0, %v2636
        %v2638 = vpop.f32.mrb[0].mxu0
        %2639 = vmatprep.mubr.f32.mxu0 0.0
        %2640 = vmatmul.mubr.f32.gmra.mrb[0].mxu0 %v959
        %v2641 = vpop.f32.mrb[0].mxu0
        %v2642 = vadd.f32 0.0, %v2641
        %v2643 = vpop.f32.mrb[0].mxu0
        %2644 = vmatprep.mubr.f32.mxu0 0.0
        %2645 = vmatmul.mubr.f32.gmra.mrb[0].mxu0 %v1044
        %v2646 = vpop.f32.mrb[0].mxu0
        %v2647 = vadd.f32 0.0, %v2646
        %v2648 = vpop.f32.mrb[0].mxu0
        %2649 = vmatprep.mubr.f32.mxu0 0.0
        %2650 = vmatmul.mubr.f32.gmra.mrb[0].mxu0 %v1129
        %v2651 = vpop.f32.mrb[0].mxu0
        %v2652 = vadd.f32 0.0, %v2651
        %v2653 = vpop.f32.mrb[0].mxu0
        %2654 = vmatprep.mubr.f32.mxu0 0.0
        %2655 = vmatmul.mubr.f32.gmra.mrb[0].mxu0 %v1214
        %v2656 = vpop.f32.mrb[0].mxu0
        %v2657 = vadd.f32 0.0, %v2656
        %v2658 = vpop.f32.mrb[0].mxu0
        %2659 = vmatprep.mubr.f32.mxu0 0.0
        %2660 = vmatmul.mubr.f32.gmra.mrb[0].mxu0 %v1299
        %v2661 = vpop.f32.mrb[0].mxu0
        %v2662 = vadd.f32 0.0, %v2661
        %v2663 = vpop.f32.mrb[0].mxu0
        %2664 = vmatprep.mubr.f32.mxu0 0.0
        %2665 = vmatmul.mubr.f32.gmra.mrb[0].mxu0 %v1384
        %v2666 = vpop.f32.mrb[0].mxu0
        %v2667 = vadd.f32 0.0, %v2666
        %v2668 = vpop.f32.mrb[0].mxu0
        %2669 = vmatprep.mubr.f32.mxu0 0.0
        %2670 = vmatmul.mubr.f32.gmra.mrb[0].mxu0 %v1469
        %v2671 = vpop.f32.mrb[0].mxu0
        %v2672 = vadd.f32 0.0, %v2671
        %v2673 = vpop.f32.mrb[0].mxu0
        %2674 = vmatprep.mubr.f32.mxu0 0.0
        %2675 = vmatmul.mubr.f32.gmra.mrb[0].mxu0 %v1554
        %v2676 = vpop.f32.mrb[0].mxu0
        %v2677 = vadd.f32 0.0, %v2676
        %v2678 = vpop.f32.mrb[0].mxu0
        %2679 = vmatprep.mubr.f32.mxu0 0.0
        %2680 = vmatmul.mubr.f32.gmra.mrb[0].mxu0 %v1639
        %v2681 = vpop.f32.mrb[0].mxu0
        %v2682 = vadd.f32 0.0, %v2681
        %v2683 = vpop.f32.mrb[0].mxu0
        %2684 = vmatprep.mubr.f32.mxu0 0.0
        %2685 = vmatmul.mubr.f32.gmra.mrb[0].mxu0 %v1724
        %v2686 = vpop.f32.mrb[0].mxu0
        %v2687 = vadd.f32 0.0, %v2686
        %v2688 = vpop.f32.mrb[0].mxu0
        %2689 = vdwg.mxu0
        %v2690 = vld [vmem:[#allocation2] sm:$0xff]
        %v2691 = vld [vmem:[#allocation2 + $0x8] sm:$0xff]
        %v2692 = vld [vmem:[#allocation2 + $0x10] sm:$0xff]
        %v2693 = vld [vmem:[#allocation2 + $0x18] sm:$0xff]
        %v2694 = vld [vmem:[#allocation2 + $0x20] sm:$0xff]
        %v2695 = vld [vmem:[#allocation2 + $0x28] sm:$0xff]
        %v2696 = vld [vmem:[#allocation2 + $0x30] sm:$0xff]
        %v2697 = vld [vmem:[#allocation2 + $0x38] sm:$0xff]
        %v2698 = vld [vmem:[#allocation2 + $0x40] sm:$0xff]
        %v2699 = vld [vmem:[#allocation2 + $0x48] sm:$0xff]
        %v2700 = vld [vmem:[#allocation2 + $0x50] sm:$0xff]
        %v2701 = vld [vmem:[#allocation2 + $0x58] sm:$0xff]
        %v2702 = vld [vmem:[#allocation2 + $0x60] sm:$0xff]
        %v2703 = vld [vmem:[#allocation2 + $0x68] sm:$0xff]
        %v2704 = vld [vmem:[#allocation2 + $0x70] sm:$0xff]
        %v2705 = vld [vmem:[#allocation2 + $0x78] sm:$0xff]
        %v2706 = vadd.f32 %v2690, %v2612
        %v2707 = vadd.f32 %v2691, %v2617
        %v2708 = vadd.f32 %v2692, %v2622
        %v2709 = vadd.f32 %v2693, %v2627
        %v2710 = vadd.f32 %v2694, %v2632
        %v2711 = vadd.f32 %v2695, %v2637
        %v2712 = vadd.f32 %v2696, %v2642
        %v2713 = vadd.f32 %v2697, %v2647
        %v2714 = vadd.f32 %v2698, %v2652
        %v2715 = vadd.f32 %v2699, %v2657
        %v2716 = vadd.f32 %v2700, %v2662
        %v2717 = vadd.f32 %v2701, %v2667
        %v2718 = vadd.f32 %v2702, %v2672
        %v2719 = vadd.f32 %v2703, %v2677
        %v2720 = vadd.f32 %v2704, %v2682
        %v2721 = vadd.f32 %v2705, %v2687
        %2722 = vst [vmem:[#allocation2] sm:$0xff] %v2706
        %2723 = vst [vmem:[#allocation2 + $0x8] sm:$0xff] %v2707
        %2724 = vst [vmem:[#allocation2 + $0x10] sm:$0xff] %v2708
        %2725 = vst [vmem:[#allocation2 + $0x18] sm:$0xff] %v2709
        %2726 = vst [vmem:[#allocation2 + $0x20] sm:$0xff] %v2710
        %2727 = vst [vmem:[#allocation2 + $0x28] sm:$0xff] %v2711
        %2728 = vst [vmem:[#allocation2 + $0x30] sm:$0xff] %v2712
        %2729 = vst [vmem:[#allocation2 + $0x38] sm:$0xff] %v2713
        %2730 = vst [vmem:[#allocation2 + $0x40] sm:$0xff] %v2714
        %2731 = vst [vmem:[#allocation2 + $0x48] sm:$0xff] %v2715
        %2732 = vst [vmem:[#allocation2 + $0x50] sm:$0xff] %v2716
        %2733 = vst [vmem:[#allocation2 + $0x58] sm:$0xff] %v2717
        %2734 = vst [vmem:[#allocation2 + $0x60] sm:$0xff] %v2718
        %2735 = vst [vmem:[#allocation2 + $0x68] sm:$0xff] %v2719
        %2736 = vst [vmem:[#allocation2 + $0x70] sm:$0xff] %v2720
        %2737 = vst [vmem:[#allocation2 + $0x78] sm:$0xff] %v2721
        %v2738 = vld [vmem:[#allocation9 + $0x280] sm:$0xff]
        %v2739 = vld [vmem:[#allocation9 + $0x288] sm:$0xff]
        %v2740 = vld [vmem:[#allocation9 + $0x290] sm:$0xff]
        %v2741 = vld [vmem:[#allocation9 + $0x298] sm:$0xff]
        %v2742 = vld [vmem:[#allocation9 + $0x2a0] sm:$0xff]
        %v2743 = vld [vmem:[#allocation9 + $0x2a8] sm:$0xff]
        %v2744 = vld [vmem:[#allocation9 + $0x2b0] sm:$0xff]
        %v2745 = vld [vmem:[#allocation9 + $0x2b8] sm:$0xff]
        %v2746 = vld [vmem:[#allocation9 + $0x2c0] sm:$0xff]
        %v2747 = vld [vmem:[#allocation9 + $0x2c8] sm:$0xff]
        %v2748 = vld [vmem:[#allocation9 + $0x2d0] sm:$0xff]
        %v2749 = vld [vmem:[#allocation9 + $0x2d8] sm:$0xff]
        %v2750 = vld [vmem:[#allocation9 + $0x2e0] sm:$0xff]
        %v2751 = vld [vmem:[#allocation9 + $0x2e8] sm:$0xff]
        %v2752 = vld [vmem:[#allocation9 + $0x2f0] sm:$0xff]
        %v2753 = vld [vmem:[#allocation9 + $0x2f8] sm:$0xff]
        %2754 = vmatprep.subr.mxu0 0.0
        %2755 = vmatpush1.msra.mxu0 %v2738
        %2756 = vmatprep.subr.mxu0 0.0
        %2757 = vmatpush1.msra.mxu0 %v2739
        %2758 = vmatprep.subr.mxu0 0.0
        %2759 = vmatpush1.msra.mxu0 %v2740
        %2760 = vmatprep.subr.mxu0 0.0
        %2761 = vmatpush1.msra.mxu0 %v2741
        %2762 = vmatprep.subr.mxu0 0.0
        %2763 = vmatpush1.msra.mxu0 %v2742
        %2764 = vmatprep.subr.mxu0 0.0
        %2765 = vmatpush1.msra.mxu0 %v2743
        %2766 = vmatprep.subr.mxu0 0.0
        %2767 = vmatpush1.msra.mxu0 %v2744
        %2768 = vmatprep.subr.mxu0 0.0
        %2769 = vmatpush1.msra.mxu0 %v2745
        %2770 = vmatprep.subr.mxu0 0.0
        %2771 = vmatpush1.msra.mxu0 %v2746
        %2772 = vmatprep.subr.mxu0 0.0
        %2773 = vmatpush1.msra.mxu0 %v2747
        %2774 = vmatprep.subr.mxu0 0.0
        %2775 = vmatpush1.msra.mxu0 %v2748
        %2776 = vmatprep.subr.mxu0 0.0
        %2777 = vmatpush1.msra.mxu0 %v2749
        %2778 = vmatprep.subr.mxu0 0.0
        %2779 = vmatpush1.msra.mxu0 %v2750
        %2780 = vmatprep.subr.mxu0 0.0
        %2781 = vmatpush1.msra.mxu0 %v2751
        %2782 = vmatprep.subr.mxu0 0.0
        %2783 = vmatpush1.msra.mxu0 %v2752
        %2784 = vmatprep.subr.mxu0 0.0
        %2785 = vmatpush1.msra.mxu0 %v2753
        %2786 = vmatprep.subr.mxu0 0.0
        %2787 = vmatpush1.msra.mxu0 0.0
        %2788 = vmatprep.subr.mxu0 0.0
        %2789 = vmatpush1.msra.mxu0 0.0
        %2790 = vmatprep.subr.mxu0 0.0
        %2791 = vmatpush1.msra.mxu0 0.0
        %2792 = vmatprep.subr.mxu0 0.0
        %2793 = vmatpush1.msra.mxu0 0.0
        %2794 = vmatprep.subr.mxu0 0.0
        %2795 = vmatpush1.msra.mxu0 0.0
        %2796 = vmatprep.subr.mxu0 0.0
        %2797 = vmatpush1.msra.mxu0 0.0
        %2798 = vmatprep.subr.mxu0 0.0
        %2799 = vmatpush1.msra.mxu0 0.0
        %2800 = vmatprep.subr.mxu0 0.0
        %2801 = vmatpush1.msra.mxu0 0.0
        %2802 = vmatprep.subr.mxu0 0.0
        %2803 = vmatpush1.msra.mxu0 0.0
        %2804 = vmatprep.subr.mxu0 0.0
        %2805 = vmatpush1.msra.mxu0 0.0
        %2806 = vmatprep.subr.mxu0 0.0
        %2807 = vmatpush1.msra.mxu0 0.0
        %2808 = vmatprep.subr.mxu0 0.0
        %2809 = vmatpush1.msra.mxu0 0.0
        %2810 = vmatprep.subr.mxu0 0.0
        %2811 = vmatpush1.msra.mxu0 0.0
        %2812 = vmatprep.subr.mxu0 0.0
        %2813 = vmatpush1.msra.mxu0 0.0
        %2814 = vmatprep.subr.mxu0 0.0
        %2815 = vmatpush1.msra.mxu0 0.0
        %2816 = vmatprep.subr.mxu0 0.0
        %2817 = vmatpush1.msra.mxu0 0.0
        %2818 = vmatprep.mubr.f32.mxu0 0.0
        %2819 = vmatmul.mubr.f32.gmra.mrb[0].mxu0 %v534
        %v2820 = vpop.f32.mrb[0].mxu0
        %v2821 = vadd.f32 0.0, %v2820
        %v2822 = vpop.f32.mrb[0].mxu0
        %2823 = vmatprep.mubr.f32.mxu0 0.0
        %2824 = vmatmul.mubr.f32.gmra.mrb[0].mxu0 %v619
        %v2825 = vpop.f32.mrb[0].mxu0
        %v2826 = vadd.f32 0.0, %v2825
        %v2827 = vpop.f32.mrb[0].mxu0
        %2828 = vmatprep.mubr.f32.mxu0 0.0
        %2829 = vmatmul.mubr.f32.gmra.mrb[0].mxu0 %v704
        %v2830 = vpop.f32.mrb[0].mxu0
        %v2831 = vadd.f32 0.0, %v2830
        %v2832 = vpop.f32.mrb[0].mxu0
        %2833 = vmatprep.mubr.f32.mxu0 0.0
        %2834 = vmatmul.mubr.f32.gmra.mrb[0].mxu0 0.0
        %v2835 = vpop.f32.mrb[0].mxu0
        %v2836 = vadd.f32 0.0, %v2835
        %v2837 = vpop.f32.mrb[0].mxu0
        %2838 = vmatprep.mubr.f32.mxu0 0.0
        %2839 = vmatmul.mubr.f32.gmra.mrb[0].mxu0 %v874
        %v2840 = vpop.f32.mrb[0].mxu0
        %v2841 = vadd.f32 0.0, %v2840
        %v2842 = vpop.f32.mrb[0].mxu0
        %2843 = vmatprep.mubr.f32.mxu0 0.0
        %2844 = vmatmul.mubr.f32.gmra.mrb[0].mxu0 %v959
        %v2845 = vpop.f32.mrb[0].mxu0
        %v2846 = vadd.f32 0.0, %v2845
        %v2847 = vpop.f32.mrb[0].mxu0
        %2848 = vmatprep.mubr.f32.mxu0 0.0
        %2849 = vmatmul.mubr.f32.gmra.mrb[0].mxu0 %v1044
        %v2850 = vpop.f32.mrb[0].mxu0
        %v2851 = vadd.f32 0.0, %v2850
        %v2852 = vpop.f32.mrb[0].mxu0
        %2853 = vmatprep.mubr.f32.mxu0 0.0
        %2854 = vmatmul.mubr.f32.gmra.mrb[0].mxu0 0.0
        %v2855 = vpop.f32.mrb[0].mxu0
        %v2856 = vadd.f32 0.0, %v2855
        %v2857 = vpop.f32.mrb[0].mxu0
        %2858 = vmatprep.mubr.f32.mxu0 0.0
        %2859 = vmatmul.mubr.f32.gmra.mrb[0].mxu0 %v1214
        %v2860 = vpop.f32.mrb[0].mxu0
        %v2861 = vadd.f32 0.0, %v2860
        %v2862 = vpop.f32.mrb[0].mxu0
        %2863 = vmatprep.mubr.f32.mxu0 0.0
        %2864 = vmatmul.mubr.f32.gmra.mrb[0].mxu0 %v1299
        %v2865 = vpop.f32.mrb[0].mxu0
        %v2866 = vadd.f32 0.0, %v2865
        %v2867 = vpop.f32.mrb[0].mxu0
        %2868 = vmatprep.mubr.f32.mxu0 0.0
        %2869 = vmatmul.mubr.f32.gmra.mrb[0].mxu0 %v1384
        %v2870 = vpop.f32.mrb[0].mxu0
        %v2871 = vadd.f32 0.0, %v2870
        %v2872 = vpop.f32.mrb[0].mxu0
        %2873 = vmatprep.mubr.f32.mxu0 0.0
        %2874 = vmatmul.mubr.f32.gmra.mrb[0].mxu0 0.0
        %v2875 = vpop.f32.mrb[0].mxu0
        %v2876 = vadd.f32 0.0, %v2875
        %v2877 = vpop.f32.mrb[0].mxu0
        %2878 = vmatprep.mubr.f32.mxu0 0.0
        %2879 = vmatmul.mubr.f32.gmra.mrb[0].mxu0 %v1554
        %v2880 = vpop.f32.mrb[0].mxu0
        %v2881 = vadd.f32 0.0, %v2880
        %v2882 = vpop.f32.mrb[0].mxu0
        %2883 = vmatprep.mubr.f32.mxu0 0.0
        %2884 = vmatmul.mubr.f32.gmra.mrb[0].mxu0 %v1639
        %v2885 = vpop.f32.mrb[0].mxu0
        %v2886 = vadd.f32 0.0, %v2885
        %v2887 = vpop.f32.mrb[0].mxu0
        %2888 = vmatprep.mubr.f32.mxu0 0.0
        %2889 = vmatmul.mubr.f32.gmra.mrb[0].mxu0 %v1724
        %v2890 = vpop.f32.mrb[0].mxu0
        %v2891 = vadd.f32 0.0, %v2890
        %v2892 = vpop.f32.mrb[0].mxu0
        %2893 = vmatprep.mubr.f32.mxu0 0.0
        %2894 = vmatmul.mubr.f32.gmra.mrb[0].mxu0 0.0
        %v2895 = vpop.f32.mrb[0].mxu0
        %v2896 = vadd.f32 0.0, %v2895
        %v2897 = vpop.f32.mrb[0].mxu0
        %2898 = vdwg.mxu0
        %v2899 = vld [vmem:[#allocation2] sm:$0xff]
        %v2900 = vld [vmem:[#allocation2 + $0x8] sm:$0xff]
        %v2901 = vld [vmem:[#allocation2 + $0x10] sm:$0xff]
        %v2902 = vld [vmem:[#allocation2 + $0x18] sm:$0xff]
        %v2903 = vld [vmem:[#allocation2 + $0x20] sm:$0xff]
        %v2904 = vld [vmem:[#allocation2 + $0x28] sm:$0xff]
        %v2905 = vld [vmem:[#allocation2 + $0x30] sm:$0xff]
        %v2906 = vld [vmem:[#allocation2 + $0x38] sm:$0xff]
        %v2907 = vld [vmem:[#allocation2 + $0x40] sm:$0xff]
        %v2908 = vld [vmem:[#allocation2 + $0x48] sm:$0xff]
        %v2909 = vld [vmem:[#allocation2 + $0x50] sm:$0xff]
        %v2910 = vld [vmem:[#allocation2 + $0x58] sm:$0xff]
        %v2911 = vld [vmem:[#allocation2 + $0x60] sm:$0xff]
        %v2912 = vld [vmem:[#allocation2 + $0x68] sm:$0xff]
        %v2913 = vld [vmem:[#allocation2 + $0x70] sm:$0xff]
        %v2914 = vld [vmem:[#allocation2 + $0x78] sm:$0xff]
        %v2915 = vadd.f32 %v2899, %v2821
        %v2916 = vadd.f32 %v2900, %v2826
        %v2917 = vadd.f32 %v2901, %v2831
        %v2918 = vadd.f32 %v2902, %v2836
        %v2919 = vadd.f32 %v2903, %v2841
        %v2920 = vadd.f32 %v2904, %v2846
        %v2921 = vadd.f32 %v2905, %v2851
        %v2922 = vadd.f32 %v2906, %v2856
        %v2923 = vadd.f32 %v2907, %v2861
        %v2924 = vadd.f32 %v2908, %v2866
        %v2925 = vadd.f32 %v2909, %v2871
        %v2926 = vadd.f32 %v2910, %v2876
        %v2927 = vadd.f32 %v2911, %v2881
        %v2928 = vadd.f32 %v2912, %v2886
        %v2929 = vadd.f32 %v2913, %v2891
        %v2930 = vadd.f32 %v2914, %v2896
        %2931 = vst [vmem:[#allocation2] sm:$0xff] %v2915
        %2932 = vst [vmem:[#allocation2 + $0x8] sm:$0xff] %v2916
        %2933 = vst [vmem:[#allocation2 + $0x10] sm:$0xff] %v2917
        %2934 = vst [vmem:[#allocation2 + $0x18] sm:$0xff] %v2918
        %2935 = vst [vmem:[#allocation2 + $0x20] sm:$0xff] %v2919
        %2936 = vst [vmem:[#allocation2 + $0x28] sm:$0xff] %v2920
        %2937 = vst [vmem:[#allocation2 + $0x30] sm:$0xff] %v2921
        %2938 = vst [vmem:[#allocation2 + $0x38] sm:$0xff] %v2922
        %2939 = vst [vmem:[#allocation2 + $0x40] sm:$0xff] %v2923
        %2940 = vst [vmem:[#allocation2 + $0x48] sm:$0xff] %v2924
        %2941 = vst [vmem:[#allocation2 + $0x50] sm:$0xff] %v2925
        %2942 = vst [vmem:[#allocation2 + $0x58] sm:$0xff] %v2926
        %2943 = vst [vmem:[#allocation2 + $0x60] sm:$0xff] %v2927
        %2944 = vst [vmem:[#allocation2 + $0x68] sm:$0xff] %v2928
        %2945 = vst [vmem:[#allocation2 + $0x70] sm:$0xff] %v2929
        %2946 = vst [vmem:[#allocation2 + $0x78] sm:$0xff] %v2930
        %v2947 = vld [vmem:[#allocation9 + $0x300] sm:$0xff]
        %v2948 = vld [vmem:[#allocation9 + $0x308] sm:$0xff]
        %v2949 = vld [vmem:[#allocation9 + $0x310] sm:$0xff]
        %v2950 = vld [vmem:[#allocation9 + $0x318] sm:$0xff]
        %v2951 = vld [vmem:[#allocation9 + $0x320] sm:$0xff]
        %v2952 = vld [vmem:[#allocation9 + $0x328] sm:$0xff]
        %v2953 = vld [vmem:[#allocation9 + $0x330] sm:$0xff]
        %v2954 = vld [vmem:[#allocation9 + $0x338] sm:$0xff]
        %v2955 = vld [vmem:[#allocation9 + $0x340] sm:$0xff]
        %v2956 = vld [vmem:[#allocation9 + $0x348] sm:$0xff]
        %v2957 = vld [vmem:[#allocation9 + $0x350] sm:$0xff]
        %v2958 = vld [vmem:[#allocation9 + $0x358] sm:$0xff]
        %v2959 = vld [vmem:[#allocation9 + $0x360] sm:$0xff]
        %v2960 = vld [vmem:[#allocation9 + $0x368] sm:$0xff]
        %v2961 = vld [vmem:[#allocation9 + $0x370] sm:$0xff]
        %v2962 = vld [vmem:[#allocation9 + $0x378] sm:$0xff]
        %2963 = vmatprep.subr.mxu0 0.0
        %2964 = vmatpush1.msra.mxu0 %v2947
        %2965 = vmatprep.subr.mxu0 0.0
        %2966 = vmatpush1.msra.mxu0 %v2948
        %2967 = vmatprep.subr.mxu0 0.0
        %2968 = vmatpush1.msra.mxu0 %v2949
        %2969 = vmatprep.subr.mxu0 0.0
        %2970 = vmatpush1.msra.mxu0 %v2950
        %2971 = vmatprep.subr.mxu0 0.0
        %2972 = vmatpush1.msra.mxu0 %v2951
        %2973 = vmatprep.subr.mxu0 0.0
        %2974 = vmatpush1.msra.mxu0 %v2952
        %2975 = vmatprep.subr.mxu0 0.0
        %2976 = vmatpush1.msra.mxu0 %v2953
        %2977 = vmatprep.subr.mxu0 0.0
        %2978 = vmatpush1.msra.mxu0 %v2954
        %2979 = vmatprep.subr.mxu0 0.0
        %2980 = vmatpush1.msra.mxu0 %v2955
        %2981 = vmatprep.subr.mxu0 0.0
        %2982 = vmatpush1.msra.mxu0 %v2956
        %2983 = vmatprep.subr.mxu0 0.0
        %2984 = vmatpush1.msra.mxu0 %v2957
        %2985 = vmatprep.subr.mxu0 0.0
        %2986 = vmatpush1.msra.mxu0 %v2958
        %2987 = vmatprep.subr.mxu0 0.0
        %2988 = vmatpush1.msra.mxu0 %v2959
        %2989 = vmatprep.subr.mxu0 0.0
        %2990 = vmatpush1.msra.mxu0 %v2960
        %2991 = vmatprep.subr.mxu0 0.0
        %2992 = vmatpush1.msra.mxu0 %v2961
        %2993 = vmatprep.subr.mxu0 0.0
        %2994 = vmatpush1.msra.mxu0 %v2962
        %2995 = vmatprep.subr.mxu0 0.0
        %2996 = vmatpush1.msra.mxu0 0.0
        %2997 = vmatprep.subr.mxu0 0.0
        %2998 = vmatpush1.msra.mxu0 0.0
        %2999 = vmatprep.subr.mxu0 0.0
        %3000 = vmatpush1.msra.mxu0 0.0
        %3001 = vmatprep.subr.mxu0 0.0
        %3002 = vmatpush1.msra.mxu0 0.0
        %3003 = vmatprep.subr.mxu0 0.0
        %3004 = vmatpush1.msra.mxu0 0.0
        %3005 = vmatprep.subr.mxu0 0.0
        %3006 = vmatpush1.msra.mxu0 0.0
        %3007 = vmatprep.subr.mxu0 0.0
        %3008 = vmatpush1.msra.mxu0 0.0
        %3009 = vmatprep.subr.mxu0 0.0
        %3010 = vmatpush1.msra.mxu0 0.0
        %3011 = vmatprep.subr.mxu0 0.0
        %3012 = vmatpush1.msra.mxu0 0.0
        %3013 = vmatprep.subr.mxu0 0.0
        %3014 = vmatpush1.msra.mxu0 0.0
        %3015 = vmatprep.subr.mxu0 0.0
        %3016 = vmatpush1.msra.mxu0 0.0
        %3017 = vmatprep.subr.mxu0 0.0
        %3018 = vmatpush1.msra.mxu0 0.0
        %3019 = vmatprep.subr.mxu0 0.0
        %3020 = vmatpush1.msra.mxu0 0.0
        %3021 = vmatprep.subr.mxu0 0.0
        %3022 = vmatpush1.msra.mxu0 0.0
        %3023 = vmatprep.subr.mxu0 0.0
        %3024 = vmatpush1.msra.mxu0 0.0
        %3025 = vmatprep.subr.mxu0 0.0
        %3026 = vmatpush1.msra.mxu0 0.0
        %3027 = vmatprep.mubr.f32.mxu0 0.0
        %3028 = vmatmul.mubr.f32.gmra.mrb[0].mxu0 0.0
        %v3029 = vpop.f32.mrb[0].mxu0
        %v3030 = vadd.f32 0.0, %v3029
        %v3031 = vpop.f32.mrb[0].mxu0
        %3032 = vmatprep.mubr.f32.mxu0 0.0
        %3033 = vmatmul.mubr.f32.gmra.mrb[0].mxu0 %v789
        %v3034 = vpop.f32.mrb[0].mxu0
        %v3035 = vadd.f32 0.0, %v3034
        %v3036 = vpop.f32.mrb[0].mxu0
        %3037 = vmatprep.mubr.f32.mxu0 0.0
        %3038 = vmatmul.mubr.f32.gmra.mrb[0].mxu0 %v874
        %v3039 = vpop.f32.mrb[0].mxu0
        %v3040 = vadd.f32 0.0, %v3039
        %v3041 = vpop.f32.mrb[0].mxu0
        %3042 = vmatprep.mubr.f32.mxu0 0.0
        %3043 = vmatmul.mubr.f32.gmra.mrb[0].mxu0 %v959
        %v3044 = vpop.f32.mrb[0].mxu0
        %v3045 = vadd.f32 0.0, %v3044
        %v3046 = vpop.f32.mrb[0].mxu0
        %3047 = vmatprep.mubr.f32.mxu0 0.0
        %3048 = vmatmul.mubr.f32.gmra.mrb[0].mxu0 0.0
        %v3049 = vpop.f32.mrb[0].mxu0
        %v3050 = vadd.f32 0.0, %v3049
        %v3051 = vpop.f32.mrb[0].mxu0
        %3052 = vmatprep.mubr.f32.mxu0 0.0
        %3053 = vmatmul.mubr.f32.gmra.mrb[0].mxu0 %v1129
        %v3054 = vpop.f32.mrb[0].mxu0
        %v3055 = vadd.f32 0.0, %v3054
        %v3056 = vpop.f32.mrb[0].mxu0
        %3057 = vmatprep.mubr.f32.mxu0 0.0
        %3058 = vmatmul.mubr.f32.gmra.mrb[0].mxu0 %v1214
        %v3059 = vpop.f32.mrb[0].mxu0
        %v3060 = vadd.f32 0.0, %v3059
        %v3061 = vpop.f32.mrb[0].mxu0
        %3062 = vmatprep.mubr.f32.mxu0 0.0
        %3063 = vmatmul.mubr.f32.gmra.mrb[0].mxu0 %v1299
        %v3064 = vpop.f32.mrb[0].mxu0
        %v3065 = vadd.f32 0.0, %v3064
        %v3066 = vpop.f32.mrb[0].mxu0
        %3067 = vmatprep.mubr.f32.mxu0 0.0
        %3068 = vmatmul.mubr.f32.gmra.mrb[0].mxu0 0.0
        %v3069 = vpop.f32.mrb[0].mxu0
        %v3070 = vadd.f32 0.0, %v3069
        %v3071 = vpop.f32.mrb[0].mxu0
        %3072 = vmatprep.mubr.f32.mxu0 0.0
        %3073 = vmatmul.mubr.f32.gmra.mrb[0].mxu0 %v1469
        %v3074 = vpop.f32.mrb[0].mxu0
        %v3075 = vadd.f32 0.0, %v3074
        %v3076 = vpop.f32.mrb[0].mxu0
        %3077 = vmatprep.mubr.f32.mxu0 0.0
        %3078 = vmatmul.mubr.f32.gmra.mrb[0].mxu0 %v1554
        %v3079 = vpop.f32.mrb[0].mxu0
        %v3080 = vadd.f32 0.0, %v3079
        %v3081 = vpop.f32.mrb[0].mxu0
        %3082 = vmatprep.mubr.f32.mxu0 0.0
        %3083 = vmatmul.mubr.f32.gmra.mrb[0].mxu0 %v1639
        %v3084 = vpop.f32.mrb[0].mxu0
        %v3085 = vadd.f32 0.0, %v3084
        %v3086 = vpop.f32.mrb[0].mxu0
        %3087 = vmatprep.mubr.f32.mxu0 0.0
        %3088 = vmatmul.mubr.f32.gmra.mrb[0].mxu0 0.0
        %v3089 = vpop.f32.mrb[0].mxu0
        %v3090 = vadd.f32 0.0, %v3089
        %v3091 = vpop.f32.mrb[0].mxu0
        %3092 = vmatprep.mubr.f32.mxu0 0.0
        %3093 = vmatmul.mubr.f32.gmra.mrb[0].mxu0 0.0
        %v3094 = vpop.f32.mrb[0].mxu0
        %v3095 = vadd.f32 0.0, %v3094
        %v3096 = vpop.f32.mrb[0].mxu0
        %3097 = vmatprep.mubr.f32.mxu0 0.0
        %3098 = vmatmul.mubr.f32.gmra.mrb[0].mxu0 0.0
        %v3099 = vpop.f32.mrb[0].mxu0
        %v3100 = vadd.f32 0.0, %v3099
        %v3101 = vpop.f32.mrb[0].mxu0
        %3102 = vmatprep.mubr.f32.mxu0 0.0
        %3103 = vmatmul.mubr.f32.gmra.mrb[0].mxu0 0.0
        %v3104 = vpop.f32.mrb[0].mxu0
        %v3105 = vadd.f32 0.0, %v3104
        %v3106 = vpop.f32.mrb[0].mxu0
        %3107 = vdwg.mxu0
        %v3108 = vld [vmem:[#allocation2] sm:$0xff]
        %v3109 = vld [vmem:[#allocation2 + $0x8] sm:$0xff]
        %v3110 = vld [vmem:[#allocation2 + $0x10] sm:$0xff]
        %v3111 = vld [vmem:[#allocation2 + $0x18] sm:$0xff]
        %v3112 = vld [vmem:[#allocation2 + $0x20] sm:$0xff]
        %v3113 = vld [vmem:[#allocation2 + $0x28] sm:$0xff]
        %v3114 = vld [vmem:[#allocation2 + $0x30] sm:$0xff]
        %v3115 = vld [vmem:[#allocation2 + $0x38] sm:$0xff]
        %v3116 = vld [vmem:[#allocation2 + $0x40] sm:$0xff]
        %v3117 = vld [vmem:[#allocation2 + $0x48] sm:$0xff]
        %v3118 = vld [vmem:[#allocation2 + $0x50] sm:$0xff]
        %v3119 = vld [vmem:[#allocation2 + $0x58] sm:$0xff]
        %v3120 = vld [vmem:[#allocation2 + $0x60] sm:$0xff]
        %v3121 = vld [vmem:[#allocation2 + $0x68] sm:$0xff]
        %v3122 = vld [vmem:[#allocation2 + $0x70] sm:$0xff]
        %v3123 = vld [vmem:[#allocation2 + $0x78] sm:$0xff]
        %v3124 = vadd.f32 %v3108, %v3030
        %v3125 = vadd.f32 %v3109, %v3035
        %v3126 = vadd.f32 %v3110, %v3040
        %v3127 = vadd.f32 %v3111, %v3045
        %v3128 = vadd.f32 %v3112, %v3050
        %v3129 = vadd.f32 %v3113, %v3055
        %v3130 = vadd.f32 %v3114, %v3060
        %v3131 = vadd.f32 %v3115, %v3065
        %v3132 = vadd.f32 %v3116, %v3070
        %v3133 = vadd.f32 %v3117, %v3075
        %v3134 = vadd.f32 %v3118, %v3080
        %v3135 = vadd.f32 %v3119, %v3085
        %v3136 = vadd.f32 %v3120, %v3090
        %v3137 = vadd.f32 %v3121, %v3095
        %v3138 = vadd.f32 %v3122, %v3100
        %v3139 = vadd.f32 %v3123, %v3105
        %3140 = vst [vmem:[#allocation2] sm:$0xff] %v3124
        %3141 = vst [vmem:[#allocation2 + $0x8] sm:$0xff] %v3125
        %3142 = vst [vmem:[#allocation2 + $0x10] sm:$0xff] %v3126
        %3143 = vst [vmem:[#allocation2 + $0x18] sm:$0xff] %v3127
        %3144 = vst [vmem:[#allocation2 + $0x20] sm:$0xff] %v3128
        %3145 = vst [vmem:[#allocation2 + $0x28] sm:$0xff] %v3129
        %3146 = vst [vmem:[#allocation2 + $0x30] sm:$0xff] %v3130
        %3147 = vst [vmem:[#allocation2 + $0x38] sm:$0xff] %v3131
        %3148 = vst [vmem:[#allocation2 + $0x40] sm:$0xff] %v3132
        %3149 = vst [vmem:[#allocation2 + $0x48] sm:$0xff] %v3133
        %3150 = vst [vmem:[#allocation2 + $0x50] sm:$0xff] %v3134
        %3151 = vst [vmem:[#allocation2 + $0x58] sm:$0xff] %v3135
        %3152 = vst [vmem:[#allocation2 + $0x60] sm:$0xff] %v3136
        %3153 = vst [vmem:[#allocation2 + $0x68] sm:$0xff] %v3137
        %3154 = vst [vmem:[#allocation2 + $0x70] sm:$0xff] %v3138
        %3155 = vst [vmem:[#allocation2 + $0x78] sm:$0xff] %v3139
        %v3156 = vld [vmem:[#allocation9 + $0x380] sm:$0xff]
        %v3157 = vld [vmem:[#allocation9 + $0x388] sm:$0xff]
        %v3158 = vld [vmem:[#allocation9 + $0x390] sm:$0xff]
        %v3159 = vld [vmem:[#allocation9 + $0x398] sm:$0xff]
        %v3160 = vld [vmem:[#allocation9 + $0x3a0] sm:$0xff]
        %v3161 = vld [vmem:[#allocation9 + $0x3a8] sm:$0xff]
        %v3162 = vld [vmem:[#allocation9 + $0x3b0] sm:$0xff]
        %v3163 = vld [vmem:[#allocation9 + $0x3b8] sm:$0xff]
        %v3164 = vld [vmem:[#allocation9 + $0x3c0] sm:$0xff]
        %v3165 = vld [vmem:[#allocation9 + $0x3c8] sm:$0xff]
        %v3166 = vld [vmem:[#allocation9 + $0x3d0] sm:$0xff]
        %v3167 = vld [vmem:[#allocation9 + $0x3d8] sm:$0xff]
        %v3168 = vld [vmem:[#allocation9 + $0x3e0] sm:$0xff]
        %v3169 = vld [vmem:[#allocation9 + $0x3e8] sm:$0xff]
        %v3170 = vld [vmem:[#allocation9 + $0x3f0] sm:$0xff]
        %v3171 = vld [vmem:[#allocation9 + $0x3f8] sm:$0xff]
        %3172 = vmatprep.subr.mxu0 0.0
        %3173 = vmatpush1.msra.mxu0 %v3156
        %3174 = vmatprep.subr.mxu0 0.0
        %3175 = vmatpush1.msra.mxu0 %v3157
        %3176 = vmatprep.subr.mxu0 0.0
        %3177 = vmatpush1.msra.mxu0 %v3158
        %3178 = vmatprep.subr.mxu0 0.0
        %3179 = vmatpush1.msra.mxu0 %v3159
        %3180 = vmatprep.subr.mxu0 0.0
        %3181 = vmatpush1.msra.mxu0 %v3160
        %3182 = vmatprep.subr.mxu0 0.0
        %3183 = vmatpush1.msra.mxu0 %v3161
        %3184 = vmatprep.subr.mxu0 0.0
        %3185 = vmatpush1.msra.mxu0 %v3162
        %3186 = vmatprep.subr.mxu0 0.0
        %3187 = vmatpush1.msra.mxu0 %v3163
        %3188 = vmatprep.subr.mxu0 0.0
        %3189 = vmatpush1.msra.mxu0 %v3164
        %3190 = vmatprep.subr.mxu0 0.0
        %3191 = vmatpush1.msra.mxu0 %v3165
        %3192 = vmatprep.subr.mxu0 0.0
        %3193 = vmatpush1.msra.mxu0 %v3166
        %3194 = vmatprep.subr.mxu0 0.0
        %3195 = vmatpush1.msra.mxu0 %v3167
        %3196 = vmatprep.subr.mxu0 0.0
        %3197 = vmatpush1.msra.mxu0 %v3168
        %3198 = vmatprep.subr.mxu0 0.0
        %3199 = vmatpush1.msra.mxu0 %v3169
        %3200 = vmatprep.subr.mxu0 0.0
        %3201 = vmatpush1.msra.mxu0 %v3170
        %3202 = vmatprep.subr.mxu0 0.0
        %3203 = vmatpush1.msra.mxu0 %v3171
        %3204 = vmatprep.subr.mxu0 0.0
        %3205 = vmatpush1.msra.mxu0 0.0
        %3206 = vmatprep.subr.mxu0 0.0
        %3207 = vmatpush1.msra.mxu0 0.0
        %3208 = vmatprep.subr.mxu0 0.0
        %3209 = vmatpush1.msra.mxu0 0.0
        %3210 = vmatprep.subr.mxu0 0.0
        %3211 = vmatpush1.msra.mxu0 0.0
        %3212 = vmatprep.subr.mxu0 0.0
        %3213 = vmatpush1.msra.mxu0 0.0
        %3214 = vmatprep.subr.mxu0 0.0
        %3215 = vmatpush1.msra.mxu0 0.0
        %3216 = vmatprep.subr.mxu0 0.0
        %3217 = vmatpush1.msra.mxu0 0.0
        %3218 = vmatprep.subr.mxu0 0.0
        %3219 = vmatpush1.msra.mxu0 0.0
        %3220 = vmatprep.subr.mxu0 0.0
        %3221 = vmatpush1.msra.mxu0 0.0
        %3222 = vmatprep.subr.mxu0 0.0
        %3223 = vmatpush1.msra.mxu0 0.0
        %3224 = vmatprep.subr.mxu0 0.0
        %3225 = vmatpush1.msra.mxu0 0.0
        %3226 = vmatprep.subr.mxu0 0.0
        %3227 = vmatpush1.msra.mxu0 0.0
        %3228 = vmatprep.subr.mxu0 0.0
        %3229 = vmatpush1.msra.mxu0 0.0
        %3230 = vmatprep.subr.mxu0 0.0
        %3231 = vmatpush1.msra.mxu0 0.0
        %3232 = vmatprep.subr.mxu0 0.0
        %3233 = vmatpush1.msra.mxu0 0.0
        %3234 = vmatprep.subr.mxu0 0.0
        %3235 = vmatpush1.msra.mxu0 0.0
        %3236 = vmatprep.mubr.f32.mxu0 0.0
        %3237 = vmatmul.mubr.f32.gmra.mrb[0].mxu0 %v789
        %v3238 = vpop.f32.mrb[0].mxu0
        %v3239 = vadd.f32 0.0, %v3238
        %v3240 = vpop.f32.mrb[0].mxu0
        %3241 = vmatprep.mubr.f32.mxu0 0.0
        %3242 = vmatmul.mubr.f32.gmra.mrb[0].mxu0 %v874
        %v3243 = vpop.f32.mrb[0].mxu0
        %v3244 = vadd.f32 0.0, %v3243
        %v3245 = vpop.f32.mrb[0].mxu0
        %3246 = vmatprep.mubr.f32.mxu0 0.0
        %3247 = vmatmul.mubr.f32.gmra.mrb[0].mxu0 %v959
        %v3248 = vpop.f32.mrb[0].mxu0
        %v3249 = vadd.f32 0.0, %v3248
        %v3250 = vpop.f32.mrb[0].mxu0
        %3251 = vmatprep.mubr.f32.mxu0 0.0
        %3252 = vmatmul.mubr.f32.gmra.mrb[0].mxu0 %v1044
        %v3253 = vpop.f32.mrb[0].mxu0
        %v3254 = vadd.f32 0.0, %v3253
        %v3255 = vpop.f32.mrb[0].mxu0
        %3256 = vmatprep.mubr.f32.mxu0 0.0
        %3257 = vmatmul.mubr.f32.gmra.mrb[0].mxu0 %v1129
        %v3258 = vpop.f32.mrb[0].mxu0
        %v3259 = vadd.f32 0.0, %v3258
        %v3260 = vpop.f32.mrb[0].mxu0
        %3261 = vmatprep.mubr.f32.mxu0 0.0
        %3262 = vmatmul.mubr.f32.gmra.mrb[0].mxu0 %v1214
        %v3263 = vpop.f32.mrb[0].mxu0
        %v3264 = vadd.f32 0.0, %v3263
        %v3265 = vpop.f32.mrb[0].mxu0
        %3266 = vmatprep.mubr.f32.mxu0 0.0
        %3267 = vmatmul.mubr.f32.gmra.mrb[0].mxu0 %v1299
        %v3268 = vpop.f32.mrb[0].mxu0
        %v3269 = vadd.f32 0.0, %v3268
        %v3270 = vpop.f32.mrb[0].mxu0
        %3271 = vmatprep.mubr.f32.mxu0 0.0
        %3272 = vmatmul.mubr.f32.gmra.mrb[0].mxu0 %v1384
        %v3273 = vpop.f32.mrb[0].mxu0
        %v3274 = vadd.f32 0.0, %v3273
        %v3275 = vpop.f32.mrb[0].mxu0
        %3276 = vmatprep.mubr.f32.mxu0 0.0
        %3277 = vmatmul.mubr.f32.gmra.mrb[0].mxu0 %v1469
        %v3278 = vpop.f32.mrb[0].mxu0
        %v3279 = vadd.f32 0.0, %v3278
        %v3280 = vpop.f32.mrb[0].mxu0
        %3281 = vmatprep.mubr.f32.mxu0 0.0
        %3282 = vmatmul.mubr.f32.gmra.mrb[0].mxu0 %v1554
        %v3283 = vpop.f32.mrb[0].mxu0
        %v3284 = vadd.f32 0.0, %v3283
        %v3285 = vpop.f32.mrb[0].mxu0
        %3286 = vmatprep.mubr.f32.mxu0 0.0
        %3287 = vmatmul.mubr.f32.gmra.mrb[0].mxu0 %v1639
        %v3288 = vpop.f32.mrb[0].mxu0
        %v3289 = vadd.f32 0.0, %v3288
        %v3290 = vpop.f32.mrb[0].mxu0
        %3291 = vmatprep.mubr.f32.mxu0 0.0
        %3292 = vmatmul.mubr.f32.gmra.mrb[0].mxu0 %v1724
        %v3293 = vpop.f32.mrb[0].mxu0
        %v3294 = vadd.f32 0.0, %v3293
        %v3295 = vpop.f32.mrb[0].mxu0
        %3296 = vmatprep.mubr.f32.mxu0 0.0
        %3297 = vmatmul.mubr.f32.gmra.mrb[0].mxu0 0.0
        %v3298 = vpop.f32.mrb[0].mxu0
        %v3299 = vadd.f32 0.0, %v3298
        %v3300 = vpop.f32.mrb[0].mxu0
        %3301 = vmatprep.mubr.f32.mxu0 0.0
        %3302 = vmatmul.mubr.f32.gmra.mrb[0].mxu0 0.0
        %v3303 = vpop.f32.mrb[0].mxu0
        %v3304 = vadd.f32 0.0, %v3303
        %v3305 = vpop.f32.mrb[0].mxu0
        %3306 = vmatprep.mubr.f32.mxu0 0.0
        %3307 = vmatmul.mubr.f32.gmra.mrb[0].mxu0 0.0
        %v3308 = vpop.f32.mrb[0].mxu0
        %v3309 = vadd.f32 0.0, %v3308
        %v3310 = vpop.f32.mrb[0].mxu0
        %3311 = vmatprep.mubr.f32.mxu0 0.0
        %3312 = vmatmul.mubr.f32.gmra.mrb[0].mxu0 0.0
        %v3313 = vpop.f32.mrb[0].mxu0
        %v3314 = vadd.f32 0.0, %v3313
        %v3315 = vpop.f32.mrb[0].mxu0
        %3316 = vdwg.mxu0
        %v3317 = vld [vmem:[#allocation2] sm:$0xff]
        %v3318 = vld [vmem:[#allocation2 + $0x8] sm:$0xff]
        %v3319 = vld [vmem:[#allocation2 + $0x10] sm:$0xff]
        %v3320 = vld [vmem:[#allocation2 + $0x18] sm:$0xff]
        %v3321 = vld [vmem:[#allocation2 + $0x20] sm:$0xff]
        %v3322 = vld [vmem:[#allocation2 + $0x28] sm:$0xff]
        %v3323 = vld [vmem:[#allocation2 + $0x30] sm:$0xff]
        %v3324 = vld [vmem:[#allocation2 + $0x38] sm:$0xff]
        %v3325 = vld [vmem:[#allocation2 + $0x40] sm:$0xff]
        %v3326 = vld [vmem:[#allocation2 + $0x48] sm:$0xff]
        %v3327 = vld [vmem:[#allocation2 + $0x50] sm:$0xff]
        %v3328 = vld [vmem:[#allocation2 + $0x58] sm:$0xff]
        %v3329 = vld [vmem:[#allocation2 + $0x60] sm:$0xff]
        %v3330 = vld [vmem:[#allocation2 + $0x68] sm:$0xff]
        %v3331 = vld [vmem:[#allocation2 + $0x70] sm:$0xff]
        %v3332 = vld [vmem:[#allocation2 + $0x78] sm:$0xff]
        %v3333 = vadd.f32 %v3317, %v3239
        %v3334 = vadd.f32 %v3318, %v3244
        %v3335 = vadd.f32 %v3319, %v3249
        %v3336 = vadd.f32 %v3320, %v3254
        %v3337 = vadd.f32 %v3321, %v3259
        %v3338 = vadd.f32 %v3322, %v3264
        %v3339 = vadd.f32 %v3323, %v3269
        %v3340 = vadd.f32 %v3324, %v3274
        %v3341 = vadd.f32 %v3325, %v3279
        %v3342 = vadd.f32 %v3326, %v3284
        %v3343 = vadd.f32 %v3327, %v3289
        %v3344 = vadd.f32 %v3328, %v3294
        %v3345 = vadd.f32 %v3329, %v3299
        %v3346 = vadd.f32 %v3330, %v3304
        %v3347 = vadd.f32 %v3331, %v3309
        %v3348 = vadd.f32 %v3332, %v3314
        %3349 = vst [vmem:[#allocation2] sm:$0xff] %v3333
        %3350 = vst [vmem:[#allocation2 + $0x8] sm:$0xff] %v3334
        %3351 = vst [vmem:[#allocation2 + $0x10] sm:$0xff] %v3335
        %3352 = vst [vmem:[#allocation2 + $0x18] sm:$0xff] %v3336
        %3353 = vst [vmem:[#allocation2 + $0x20] sm:$0xff] %v3337
        %3354 = vst [vmem:[#allocation2 + $0x28] sm:$0xff] %v3338
        %3355 = vst [vmem:[#allocation2 + $0x30] sm:$0xff] %v3339
        %3356 = vst [vmem:[#allocation2 + $0x38] sm:$0xff] %v3340
        %3357 = vst [vmem:[#allocation2 + $0x40] sm:$0xff] %v3341
        %3358 = vst [vmem:[#allocation2 + $0x48] sm:$0xff] %v3342
        %3359 = vst [vmem:[#allocation2 + $0x50] sm:$0xff] %v3343
        %3360 = vst [vmem:[#allocation2 + $0x58] sm:$0xff] %v3344
        %3361 = vst [vmem:[#allocation2 + $0x60] sm:$0xff] %v3345
        %3362 = vst [vmem:[#allocation2 + $0x68] sm:$0xff] %v3346
        %3363 = vst [vmem:[#allocation2 + $0x70] sm:$0xff] %v3347
        %3364 = vst [vmem:[#allocation2 + $0x78] sm:$0xff] %v3348
        %v3365 = vld [vmem:[#allocation9 + $0x400] sm:$0xff]
        %v3366 = vld [vmem:[#allocation9 + $0x408] sm:$0xff]
        %v3367 = vld [vmem:[#allocation9 + $0x410] sm:$0xff]
        %v3368 = vld [vmem:[#allocation9 + $0x418] sm:$0xff]
        %v3369 = vld [vmem:[#allocation9 + $0x420] sm:$0xff]
        %v3370 = vld [vmem:[#allocation9 + $0x428] sm:$0xff]
        %v3371 = vld [vmem:[#allocation9 + $0x430] sm:$0xff]
        %v3372 = vld [vmem:[#allocation9 + $0x438] sm:$0xff]
        %v3373 = vld [vmem:[#allocation9 + $0x440] sm:$0xff]
        %v3374 = vld [vmem:[#allocation9 + $0x448] sm:$0xff]
        %v3375 = vld [vmem:[#allocation9 + $0x450] sm:$0xff]
        %v3376 = vld [vmem:[#allocation9 + $0x458] sm:$0xff]
        %v3377 = vld [vmem:[#allocation9 + $0x460] sm:$0xff]
        %v3378 = vld [vmem:[#allocation9 + $0x468] sm:$0xff]
        %v3379 = vld [vmem:[#allocation9 + $0x470] sm:$0xff]
        %v3380 = vld [vmem:[#allocation9 + $0x478] sm:$0xff]
        %3381 = vmatprep.subr.mxu0 0.0
        %3382 = vmatpush1.msra.mxu0 %v3365
        %3383 = vmatprep.subr.mxu0 0.0
        %3384 = vmatpush1.msra.mxu0 %v3366
        %3385 = vmatprep.subr.mxu0 0.0
        %3386 = vmatpush1.msra.mxu0 %v3367
        %3387 = vmatprep.subr.mxu0 0.0
        %3388 = vmatpush1.msra.mxu0 %v3368
        %3389 = vmatprep.subr.mxu0 0.0
        %3390 = vmatpush1.msra.mxu0 %v3369
        %3391 = vmatprep.subr.mxu0 0.0
        %3392 = vmatpush1.msra.mxu0 %v3370
        %3393 = vmatprep.subr.mxu0 0.0
        %3394 = vmatpush1.msra.mxu0 %v3371
        %3395 = vmatprep.subr.mxu0 0.0
        %3396 = vmatpush1.msra.mxu0 %v3372
        %3397 = vmatprep.subr.mxu0 0.0
        %3398 = vmatpush1.msra.mxu0 %v3373
        %3399 = vmatprep.subr.mxu0 0.0
        %3400 = vmatpush1.msra.mxu0 %v3374
        %3401 = vmatprep.subr.mxu0 0.0
        %3402 = vmatpush1.msra.mxu0 %v3375
        %3403 = vmatprep.subr.mxu0 0.0
        %3404 = vmatpush1.msra.mxu0 %v3376
        %3405 = vmatprep.subr.mxu0 0.0
        %3406 = vmatpush1.msra.mxu0 %v3377
        %3407 = vmatprep.subr.mxu0 0.0
        %3408 = vmatpush1.msra.mxu0 %v3378
        %3409 = vmatprep.subr.mxu0 0.0
        %3410 = vmatpush1.msra.mxu0 %v3379
        %3411 = vmatprep.subr.mxu0 0.0
        %3412 = vmatpush1.msra.mxu0 %v3380
        %3413 = vmatprep.subr.mxu0 0.0
        %3414 = vmatpush1.msra.mxu0 0.0
        %3415 = vmatprep.subr.mxu0 0.0
        %3416 = vmatpush1.msra.mxu0 0.0
        %3417 = vmatprep.subr.mxu0 0.0
        %3418 = vmatpush1.msra.mxu0 0.0
        %3419 = vmatprep.subr.mxu0 0.0
        %3420 = vmatpush1.msra.mxu0 0.0
        %3421 = vmatprep.subr.mxu0 0.0
        %3422 = vmatpush1.msra.mxu0 0.0
        %3423 = vmatprep.subr.mxu0 0.0
        %3424 = vmatpush1.msra.mxu0 0.0
        %3425 = vmatprep.subr.mxu0 0.0
        %3426 = vmatpush1.msra.mxu0 0.0
        %3427 = vmatprep.subr.mxu0 0.0
        %3428 = vmatpush1.msra.mxu0 0.0
        %3429 = vmatprep.subr.mxu0 0.0
        %3430 = vmatpush1.msra.mxu0 0.0
        %3431 = vmatprep.subr.mxu0 0.0
        %3432 = vmatpush1.msra.mxu0 0.0
        %3433 = vmatprep.subr.mxu0 0.0
        %3434 = vmatpush1.msra.mxu0 0.0
        %3435 = vmatprep.subr.mxu0 0.0
        %3436 = vmatpush1.msra.mxu0 0.0
        %3437 = vmatprep.subr.mxu0 0.0
        %3438 = vmatpush1.msra.mxu0 0.0
        %3439 = vmatprep.subr.mxu0 0.0
        %3440 = vmatpush1.msra.mxu0 0.0
        %3441 = vmatprep.subr.mxu0 0.0
        %3442 = vmatpush1.msra.mxu0 0.0
        %3443 = vmatprep.subr.mxu0 0.0
        %3444 = vmatpush1.msra.mxu0 0.0
        %3445 = vmatprep.mubr.f32.mxu0 0.0
        %3446 = vmatmul.mubr.f32.gmra.mrb[0].mxu0 %v874
        %v3447 = vpop.f32.mrb[0].mxu0
        %v3448 = vadd.f32 0.0, %v3447
        %v3449 = vpop.f32.mrb[0].mxu0
        %3450 = vmatprep.mubr.f32.mxu0 0.0
        %3451 = vmatmul.mubr.f32.gmra.mrb[0].mxu0 %v959
        %v3452 = vpop.f32.mrb[0].mxu0
        %v3453 = vadd.f32 0.0, %v3452
        %v3454 = vpop.f32.mrb[0].mxu0
        %3455 = vmatprep.mubr.f32.mxu0 0.0
        %3456 = vmatmul.mubr.f32.gmra.mrb[0].mxu0 %v1044
        %v3457 = vpop.f32.mrb[0].mxu0
        %v3458 = vadd.f32 0.0, %v3457
        %v3459 = vpop.f32.mrb[0].mxu0
        %3460 = vmatprep.mubr.f32.mxu0 0.0
        %3461 = vmatmul.mubr.f32.gmra.mrb[0].mxu0 0.0
        %v3462 = vpop.f32.mrb[0].mxu0
        %v3463 = vadd.f32 0.0, %v3462
        %v3464 = vpop.f32.mrb[0].mxu0
        %3465 = vmatprep.mubr.f32.mxu0 0.0
        %3466 = vmatmul.mubr.f32.gmra.mrb[0].mxu0 %v1214
        %v3467 = vpop.f32.mrb[0].mxu0
        %v3468 = vadd.f32 0.0, %v3467
        %v3469 = vpop.f32.mrb[0].mxu0
        %3470 = vmatprep.mubr.f32.mxu0 0.0
        %3471 = vmatmul.mubr.f32.gmra.mrb[0].mxu0 %v1299
        %v3472 = vpop.f32.mrb[0].mxu0
        %v3473 = vadd.f32 0.0, %v3472
        %v3474 = vpop.f32.mrb[0].mxu0
        %3475 = vmatprep.mubr.f32.mxu0 0.0
        %3476 = vmatmul.mubr.f32.gmra.mrb[0].mxu0 %v1384
        %v3477 = vpop.f32.mrb[0].mxu0
        %v3478 = vadd.f32 0.0, %v3477
        %v3479 = vpop.f32.mrb[0].mxu0
        %3480 = vmatprep.mubr.f32.mxu0 0.0
        %3481 = vmatmul.mubr.f32.gmra.mrb[0].mxu0 0.0
        %v3482 = vpop.f32.mrb[0].mxu0
        %v3483 = vadd.f32 0.0, %v3482
        %v3484 = vpop.f32.mrb[0].mxu0
        %3485 = vmatprep.mubr.f32.mxu0 0.0
        %3486 = vmatmul.mubr.f32.gmra.mrb[0].mxu0 %v1554
        %v3487 = vpop.f32.mrb[0].mxu0
        %v3488 = vadd.f32 0.0, %v3487
        %v3489 = vpop.f32.mrb[0].mxu0
        %3490 = vmatprep.mubr.f32.mxu0 0.0
        %3491 = vmatmul.mubr.f32.gmra.mrb[0].mxu0 %v1639
        %v3492 = vpop.f32.mrb[0].mxu0
        %v3493 = vadd.f32 0.0, %v3492
        %v3494 = vpop.f32.mrb[0].mxu0
        %3495 = vmatprep.mubr.f32.mxu0 0.0
        %3496 = vmatmul.mubr.f32.gmra.mrb[0].mxu0 %v1724
        %v3497 = vpop.f32.mrb[0].mxu0
        %v3498 = vadd.f32 0.0, %v3497
        %v3499 = vpop.f32.mrb[0].mxu0
        %3500 = vmatprep.mubr.f32.mxu0 0.0
        %3501 = vmatmul.mubr.f32.gmra.mrb[0].mxu0 0.0
        %v3502 = vpop.f32.mrb[0].mxu0
        %v3503 = vadd.f32 0.0, %v3502
        %v3504 = vpop.f32.mrb[0].mxu0
        %3505 = vmatprep.mubr.f32.mxu0 0.0
        %3506 = vmatmul.mubr.f32.gmra.mrb[0].mxu0 0.0
        %v3507 = vpop.f32.mrb[0].mxu0
        %v3508 = vadd.f32 0.0, %v3507
        %v3509 = vpop.f32.mrb[0].mxu0
        %3510 = vmatprep.mubr.f32.mxu0 0.0
        %3511 = vmatmul.mubr.f32.gmra.mrb[0].mxu0 0.0
        %v3512 = vpop.f32.mrb[0].mxu0
        %v3513 = vadd.f32 0.0, %v3512
        %v3514 = vpop.f32.mrb[0].mxu0
        %3515 = vmatprep.mubr.f32.mxu0 0.0
        %3516 = vmatmul.mubr.f32.gmra.mrb[0].mxu0 0.0
        %v3517 = vpop.f32.mrb[0].mxu0
        %v3518 = vadd.f32 0.0, %v3517
        %v3519 = vpop.f32.mrb[0].mxu0
        %3520 = vmatprep.mubr.f32.mxu0 0.0
        %3521 = vmatmul.mubr.f32.gmra.mrb[0].mxu0 0.0
        %v3522 = vpop.f32.mrb[0].mxu0
        %v3523 = vadd.f32 0.0, %v3522
        %v3524 = vpop.f32.mrb[0].mxu0
        %3525 = vdwg.mxu0
        %v3526 = vld [vmem:[#allocation2] sm:$0xff]
        %v3527 = vld [vmem:[#allocation2 + $0x8] sm:$0xff]
        %v3528 = vld [vmem:[#allocation2 + $0x10] sm:$0xff]
        %v3529 = vld [vmem:[#allocation2 + $0x18] sm:$0xff]
        %v3530 = vld [vmem:[#allocation2 + $0x20] sm:$0xff]
        %v3531 = vld [vmem:[#allocation2 + $0x28] sm:$0xff]
        %v3532 = vld [vmem:[#allocation2 + $0x30] sm:$0xff]
        %v3533 = vld [vmem:[#allocation2 + $0x38] sm:$0xff]
        %v3534 = vld [vmem:[#allocation2 + $0x40] sm:$0xff]
        %v3535 = vld [vmem:[#allocation2 + $0x48] sm:$0xff]
        %v3536 = vld [vmem:[#allocation2 + $0x50] sm:$0xff]
        %v3537 = vld [vmem:[#allocation2 + $0x58] sm:$0xff]
        %v3538 = vld [vmem:[#allocation2 + $0x60] sm:$0xff]
        %v3539 = vld [vmem:[#allocation2 + $0x68] sm:$0xff]
        %v3540 = vld [vmem:[#allocation2 + $0x70] sm:$0xff]
        %v3541 = vld [vmem:[#allocation2 + $0x78] sm:$0xff]
        %v3542 = vadd.f32 %v3526, %v3448
        %v3543 = vadd.f32 %v3527, %v3453
        %v3544 = vadd.f32 %v3528, %v3458
        %v3545 = vadd.f32 %v3529, %v3463
        %v3546 = vadd.f32 %v3530, %v3468
        %v3547 = vadd.f32 %v3531, %v3473
        %v3548 = vadd.f32 %v3532, %v3478
        %v3549 = vadd.f32 %v3533, %v3483
        %v3550 = vadd.f32 %v3534, %v3488
        %v3551 = vadd.f32 %v3535, %v3493
        %v3552 = vadd.f32 %v3536, %v3498
        %v3553 = vadd.f32 %v3537, %v3503
        %v3554 = vadd.f32 %v3538, %v3508
        %v3555 = vadd.f32 %v3539, %v3513
        %v3556 = vadd.f32 %v3540, %v3518
        %v3557 = vadd.f32 %v3541, %v3523
        %3558 = vst [vmem:[#allocation2] sm:$0xff] %v3542
        %3559 = vst [vmem:[#allocation2 + $0x8] sm:$0xff] %v3543
        %3560 = vst [vmem:[#allocation2 + $0x10] sm:$0xff] %v3544
        %3561 = vst [vmem:[#allocation2 + $0x18] sm:$0xff] %v3545
        %3562 = vst [vmem:[#allocation2 + $0x20] sm:$0xff] %v3546
        %3563 = vst [vmem:[#allocation2 + $0x28] sm:$0xff] %v3547
        %3564 = vst [vmem:[#allocation2 + $0x30] sm:$0xff] %v3548
        %3565 = vst [vmem:[#allocation2 + $0x38] sm:$0xff] %v3549
        %3566 = vst [vmem:[#allocation2 + $0x40] sm:$0xff] %v3550
        %3567 = vst [vmem:[#allocation2 + $0x48] sm:$0xff] %v3551
        %3568 = vst [vmem:[#allocation2 + $0x50] sm:$0xff] %v3552
        %3569 = vst [vmem:[#allocation2 + $0x58] sm:$0xff] %v3553
        %3570 = vst [vmem:[#allocation2 + $0x60] sm:$0xff] %v3554
        %3571 = vst [vmem:[#allocation2 + $0x68] sm:$0xff] %v3555
        %3572 = vst [vmem:[#allocation2 + $0x70] sm:$0xff] %v3556
        %3573 = vst [vmem:[#allocation2 + $0x78] sm:$0xff] %v3557
        %v3574 = vld [vmem:[#allocation2] sm:$0xff]
        %v3575 = vld [vmem:[#allocation2 + $0x8] sm:$0xff]
        %v3576 = vld [vmem:[#allocation2 + $0x10] sm:$0xff]
        %v3577 = vld [vmem:[#allocation2 + $0x18] sm:$0xff]
        %v3578 = vld [vmem:[#allocation2 + $0x20] sm:$0xff]
        %v3579 = vld [vmem:[#allocation2 + $0x28] sm:$0xff]
        %v3580 = vld [vmem:[#allocation2 + $0x30] sm:$0xff]
        %v3581 = vld [vmem:[#allocation2 + $0x38] sm:$0xff]
        %v3582 = vld [vmem:[#allocation2 + $0x40] sm:$0xff]
        %v3583 = vld [vmem:[#allocation2 + $0x48] sm:$0xff]
        %v3584 = vld [vmem:[#allocation2 + $0x50] sm:$0xff]
        %v3585 = vld [vmem:[#allocation2 + $0x58] sm:$0xff]
        %v3586 = vld [vmem:[#allocation2 + $0x60] sm:$0xff]
        %v3587 = vld [vmem:[#allocation2 + $0x68] sm:$0xff]
        %v3588 = vld [vmem:[#allocation2 + $0x70] sm:$0xff]
        %v3589 = vld [vmem:[#allocation2 + $0x78] sm:$0xff]
        %v3590 = vld [vmem:[%s4] sm:$0x1]
        %v3592 = vlaneseq
        %v3593 = vshrl.u32 %v3592, 7
        %v3594 = vsub.s32 0, %v3593
        %v3595 = vrot.slane %v3590, %v3594
        %v3597 = vadd.f32 %v3574, %v3595
        %v3598 = vadd.f32 %v3575, %v3595
        %v3599 = vadd.f32 %v3576, %v3595
        %v3600 = vadd.f32 %v3577, %v3595
        %v3601 = vadd.f32 %v3578, %v3595
        %v3602 = vadd.f32 %v3579, %v3595
        %v3603 = vadd.f32 %v3580, %v3595
        %v3604 = vadd.f32 %v3581, %v3595
        %v3605 = vadd.f32 %v3582, %v3595
        %v3606 = vadd.f32 %v3583, %v3595
        %v3607 = vadd.f32 %v3584, %v3595
        %v3608 = vadd.f32 %v3585, %v3595
        %v3609 = vadd.f32 %v3586, %v3595
        %v3610 = vadd.f32 %v3587, %v3595
        %v3611 = vadd.f32 %v3588, %v3595
        %v3612 = vadd.f32 %v3589, %v3595
        %v3613 = vmul.f32 %v3597, 0.083333336
        %v3614 = vmul.f32 %v3598, 0.083333336
        %v3615 = vmul.f32 %v3599, 0.083333336
        %v3616 = vmul.f32 %v3600, 0.083333336
        %v3617 = vmul.f32 %v3601, 0.083333336
        %v3618 = vmul.f32 %v3602, 0.083333336
        %v3619 = vmul.f32 %v3603, 0.083333336
        %v3620 = vmul.f32 %v3604, 0.083333336
        %v3621 = vmul.f32 %v3605, 0.083333336
        %v3622 = vmul.f32 %v3606, 0.083333336
        %v3623 = vmul.f32 %v3607, 0.083333336
        %v3624 = vmul.f32 %v3608, 0.083333336
        %v3625 = vmul.f32 %v3609, 0.083333336
        %v3626 = vmul.f32 %v3610, 0.083333336
        %v3627 = vmul.f32 %v3611, 0.083333336
        %v3628 = vmul.f32 %v3612, 0.083333336
        %vm3629 = vcmp.ge.f32.partialorder %v3613, 0.0
        %vm3630 = vcmp.ge.f32.partialorder %v3614, 0.0
        %vm3631 = vcmp.ge.f32.partialorder %v3615, 0.0
        %vm3632 = vcmp.ge.f32.partialorder %v3616, 0.0
        %vm3633 = vcmp.ge.f32.partialorder %v3617, 0.0
        %vm3634 = vcmp.ge.f32.partialorder %v3618, 0.0
        %vm3635 = vcmp.ge.f32.partialorder %v3619, 0.0
        %vm3636 = vcmp.ge.f32.partialorder %v3620, 0.0
        %vm3637 = vcmp.ge.f32.partialorder %v3621, 0.0
        %vm3638 = vcmp.ge.f32.partialorder %v3622, 0.0
        %vm3639 = vcmp.ge.f32.partialorder %v3623, 0.0
        %vm3640 = vcmp.ge.f32.partialorder %v3624, 0.0
        %vm3641 = vcmp.ge.f32.partialorder %v3625, 0.0
        %vm3642 = vcmp.ge.f32.partialorder %v3626, 0.0
        %vm3643 = vcmp.ge.f32.partialorder %v3627, 0.0
        %vm3644 = vcmp.ge.f32.partialorder %v3628, 0.0
        %v3645 = vmul.f32 %v3613, 0.2
        %v3646 = vmul.f32 %v3614, 0.2
        %v3647 = vmul.f32 %v3615, 0.2
        %v3648 = vmul.f32 %v3616, 0.2
        %v3649 = vmul.f32 %v3617, 0.2
        %v3650 = vmul.f32 %v3618, 0.2
        %v3651 = vmul.f32 %v3619, 0.2
        %v3652 = vmul.f32 %v3620, 0.2
        %v3653 = vmul.f32 %v3621, 0.2
        %v3654 = vmul.f32 %v3622, 0.2
        %v3655 = vmul.f32 %v3623, 0.2
        %v3656 = vmul.f32 %v3624, 0.2
        %v3657 = vmul.f32 %v3625, 0.2
        %v3658 = vmul.f32 %v3626, 0.2
        %v3659 = vmul.f32 %v3627, 0.2
        %v3660 = vmul.f32 %v3628, 0.2
        %v3661 = vsel %vm3629, %v3613, %v3645
        %v3662 = vsel %vm3630, %v3614, %v3646
        %v3663 = vsel %vm3631, %v3615, %v3647
        %v3664 = vsel %vm3632, %v3616, %v3648
        %v3665 = vsel %vm3633, %v3617, %v3649
        %v3666 = vsel %vm3634, %v3618, %v3650
        %v3667 = vsel %vm3635, %v3619, %v3651
        %v3668 = vsel %vm3636, %v3620, %v3652
        %v3669 = vsel %vm3637, %v3621, %v3653
        %v3670 = vsel %vm3638, %v3622, %v3654
        %v3671 = vsel %vm3639, %v3623, %v3655
        %v3672 = vsel %vm3640, %v3624, %v3656
        %v3673 = vsel %vm3641, %v3625, %v3657
        %v3674 = vsel %vm3642, %v3626, %v3658
        %v3675 = vsel %vm3643, %v3627, %v3659
        %v3676 = vsel %vm3644, %v3628, %v3660
        %v3677 = vmul.f32 %v3661, %v3661
        %v3678 = vmul.f32 %v3662, %v3662
        %v3679 = vmul.f32 %v3663, %v3663
        %v3680 = vmul.f32 %v3664, %v3664
        %v3681 = vmul.f32 %v3665, %v3665
        %v3682 = vmul.f32 %v3666, %v3666
        %v3683 = vmul.f32 %v3667, %v3667
        %v3684 = vmul.f32 %v3668, %v3668
        %v3685 = vmul.f32 %v3669, %v3669
        %v3686 = vmul.f32 %v3670, %v3670
        %v3687 = vmul.f32 %v3671, %v3671
        %v3688 = vmul.f32 %v3672, %v3672
        %v3689 = vmul.f32 %v3673, %v3673
        %v3690 = vmul.f32 %v3674, %v3674
        %v3691 = vmul.f32 %v3675, %v3675
        %v3692 = vmul.f32 %v3676, %v3676
        %3693 = vadd.xlane.f32.xlu0 %v3677
        %v3694 = vpop.xlane.xlu0 %3693
        %3695 = vadd.xlane.f32.xlu0 %v3678
        %v3696 = vpop.xlane.xlu0 %3695
        %3697 = vadd.xlane.f32.xlu0 %v3679
        %v3698 = vpop.xlane.xlu0 %3697
        %3699 = vadd.xlane.f32.xlu0 %v3680
        %v3700 = vpop.xlane.xlu0 %3699
        %3701 = vadd.xlane.f32.xlu0 %v3681
        %v3702 = vpop.xlane.xlu0 %3701
        %3703 = vadd.xlane.f32.xlu0 %v3682
        %v3704 = vpop.xlane.xlu0 %3703
        %3705 = vadd.xlane.f32.xlu0 %v3683
        %v3706 = vpop.xlane.xlu0 %3705
        %3707 = vadd.xlane.f32.xlu0 %v3684
        %v3708 = vpop.xlane.xlu0 %3707
        %3709 = vadd.xlane.f32.xlu0 %v3685
        %v3710 = vpop.xlane.xlu0 %3709
        %3711 = vadd.xlane.f32.xlu0 %v3686
        %v3712 = vpop.xlane.xlu0 %3711
        %3713 = vadd.xlane.f32.xlu0 %v3687
        %v3714 = vpop.xlane.xlu0 %3713
        %3715 = vadd.xlane.f32.xlu0 %v3688
        %v3716 = vpop.xlane.xlu0 %3715
        %3717 = vadd.xlane.f32.xlu0 %v3689
        %v3718 = vpop.xlane.xlu0 %3717
        %3719 = vadd.xlane.f32.xlu0 %v3690
        %v3720 = vpop.xlane.xlu0 %3719
        %3721 = vadd.xlane.f32.xlu0 %v3691
        %v3722 = vpop.xlane.xlu0 %3721
        %3723 = vadd.xlane.f32.xlu0 %v3692
        %v3724 = vpop.xlane.xlu0 %3723
        %v3725 = vmul.f32 %v3694, 0.03125
        %v3726 = vmul.f32 %v3696, 0.03125
        %v3727 = vmul.f32 %v3698, 0.03125
        %v3728 = vmul.f32 %v3700, 0.03125
        %v3729 = vmul.f32 %v3702, 0.03125
        %v3730 = vmul.f32 %v3704, 0.03125
        %v3731 = vmul.f32 %v3706, 0.03125
        %v3732 = vmul.f32 %v3708, 0.03125
        %v3733 = vmul.f32 %v3710, 0.03125
        %v3734 = vmul.f32 %v3712, 0.03125
        %v3735 = vmul.f32 %v3714, 0.03125
        %v3736 = vmul.f32 %v3716, 0.03125
        %v3737 = vmul.f32 %v3718, 0.03125
        %v3738 = vmul.f32 %v3720, 0.03125
        %v3739 = vmul.f32 %v3722, 0.03125
        %v3740 = vmul.f32 %v3724, 0.03125
        %v3741 = vadd.f32 %v3725, 1e-08
        %v3742 = vadd.f32 %v3726, 1e-08
        %v3743 = vadd.f32 %v3727, 1e-08
        %v3744 = vadd.f32 %v3728, 1e-08
        %v3745 = vadd.f32 %v3729, 1e-08
        %v3746 = vadd.f32 %v3730, 1e-08
        %v3747 = vadd.f32 %v3731, 1e-08
        %v3748 = vadd.f32 %v3732, 1e-08
        %v3749 = vadd.f32 %v3733, 1e-08
        %v3750 = vadd.f32 %v3734, 1e-08
        %v3751 = vadd.f32 %v3735, 1e-08
        %v3752 = vadd.f32 %v3736, 1e-08
        %v3753 = vadd.f32 %v3737, 1e-08
        %v3754 = vadd.f32 %v3738, 1e-08
        %v3755 = vadd.f32 %v3739, 1e-08
        %v3756 = vadd.f32 %v3740, 1e-08
        %v3757 = vrsqrt.pop %v3741
        %v3758 = vrsqrt.pop %v3742
        %v3759 = vrsqrt.pop %v3743
        %v3760 = vrsqrt.pop %v3744
        %v3761 = vrsqrt.pop %v3745
        %v3762 = vrsqrt.pop %v3746
        %v3763 = vrsqrt.pop %v3747
        %v3764 = vrsqrt.pop %v3748
        %v3765 = vrsqrt.pop %v3749
        %v3766 = vrsqrt.pop %v3750
        %v3767 = vrsqrt.pop %v3751
        %v3768 = vrsqrt.pop %v3752
        %v3769 = vrsqrt.pop %v3753
        %v3770 = vrsqrt.pop %v3754
        %v3771 = vrsqrt.pop %v3755
        %v3772 = vrsqrt.pop %v3756
        %v3773 = vmul.f32 %v3661, %v3757
        %v3774 = vmul.f32 %v3662, %v3758
        %v3775 = vmul.f32 %v3663, %v3759
        %v3776 = vmul.f32 %v3664, %v3760
        %v3777 = vmul.f32 %v3665, %v3761
        %v3778 = vmul.f32 %v3666, %v3762
        %v3779 = vmul.f32 %v3667, %v3763
        %v3780 = vmul.f32 %v3668, %v3764
        %v3781 = vmul.f32 %v3669, %v3765
        %v3782 = vmul.f32 %v3670, %v3766
        %v3783 = vmul.f32 %v3671, %v3767
        %v3784 = vmul.f32 %v3672, %v3768
        %v3785 = vmul.f32 %v3673, %v3769
        %v3786 = vmul.f32 %v3674, %v3770
        %v3787 = vmul.f32 %v3675, %v3771
        %v3788 = vmul.f32 %v3676, %v3772
        %v3789 = vld [vmem:[#allocation11] sm:$0xff]
        %v3790 = vld [vmem:[#allocation11 + $0x8] sm:$0xff]
        %v3791 = vld [vmem:[#allocation11 + $0x10] sm:$0xff]
        %v3792 = vld [vmem:[#allocation11 + $0x18] sm:$0xff]
        %v3793 = vld [vmem:[#allocation11 + $0x20] sm:$0xff]
        %v3794 = vld [vmem:[#allocation11 + $0x28] sm:$0xff]
        %v3795 = vld [vmem:[#allocation11 + $0x30] sm:$0xff]
        %v3796 = vld [vmem:[#allocation11 + $0x38] sm:$0xff]
        %v3797 = vld [vmem:[#allocation11 + $0x40] sm:$0xff]
        %v3798 = vld [vmem:[#allocation11 + $0x48] sm:$0xff]
        %v3799 = vld [vmem:[#allocation11 + $0x50] sm:$0xff]
        %v3800 = vld [vmem:[#allocation11 + $0x58] sm:$0xff]
        %v3801 = vld [vmem:[#allocation11 + $0x60] sm:$0xff]
        %v3802 = vld [vmem:[#allocation11 + $0x68] sm:$0xff]
        %v3803 = vld [vmem:[#allocation11 + $0x70] sm:$0xff]
        %v3804 = vld [vmem:[#allocation11 + $0x78] sm:$0xff]
        %v3805 = vld [vmem:[%s6] sm:$0x1]
        %v3807 = vlaneseq
        %v3808 = vshrl.u32 %v3807, 7
        %v3809 = vsub.s32 0, %v3808
        %v3810 = vrot.slane %v3805, %v3809
        %3812 = vmatprep.subr.mxu0 0.0
        %3813 = vmatpush1.msra.mxu0 %v3789
        %3814 = vmatprep.subr.mxu0 0.0
        %3815 = vmatpush1.msra.mxu0 %v3790
        %3816 = vmatprep.subr.mxu0 0.0
        %3817 = vmatpush1.msra.mxu0 %v3791
        %3818 = vmatprep.subr.mxu0 0.0
        %3819 = vmatpush1.msra.mxu0 %v3792
        %3820 = vmatprep.subr.mxu0 0.0
        %3821 = vmatpush1.msra.mxu0 %v3793
        %3822 = vmatprep.subr.mxu0 0.0
        %3823 = vmatpush1.msra.mxu0 %v3794
        %3824 = vmatprep.subr.mxu0 0.0
        %3825 = vmatpush1.msra.mxu0 %v3795
        %3826 = vmatprep.subr.mxu0 0.0
        %3827 = vmatpush1.msra.mxu0 %v3796
        %3828 = vmatprep.subr.mxu0 0.0
        %3829 = vmatpush1.msra.mxu0 %v3797
        %3830 = vmatprep.subr.mxu0 0.0
        %3831 = vmatpush1.msra.mxu0 %v3798
        %3832 = vmatprep.subr.mxu0 0.0
        %3833 = vmatpush1.msra.mxu0 %v3799
        %3834 = vmatprep.subr.mxu0 0.0
        %3835 = vmatpush1.msra.mxu0 %v3800
        %3836 = vmatprep.subr.mxu0 0.0
        %3837 = vmatpush1.msra.mxu0 %v3801
        %3838 = vmatprep.subr.mxu0 0.0
        %3839 = vmatpush1.msra.mxu0 %v3802
        %3840 = vmatprep.subr.mxu0 0.0
        %3841 = vmatpush1.msra.mxu0 %v3803
        %3842 = vmatprep.subr.mxu0 0.0
        %3843 = vmatpush1.msra.mxu0 %v3804
        %3844 = vmatprep.subr.mxu0 0.0
        %3845 = vmatpush1.msra.mxu0 0.0
        %3846 = vmatprep.subr.mxu0 0.0
        %3847 = vmatpush1.msra.mxu0 0.0
        %3848 = vmatprep.subr.mxu0 0.0
        %3849 = vmatpush1.msra.mxu0 0.0
        %3850 = vmatprep.subr.mxu0 0.0
        %3851 = vmatpush1.msra.mxu0 0.0
        %3852 = vmatprep.subr.mxu0 0.0
        %3853 = vmatpush1.msra.mxu0 0.0
        %3854 = vmatprep.subr.mxu0 0.0
        %3855 = vmatpush1.msra.mxu0 0.0
        %3856 = vmatprep.subr.mxu0 0.0
        %3857 = vmatpush1.msra.mxu0 0.0
        %3858 = vmatprep.subr.mxu0 0.0
        %3859 = vmatpush1.msra.mxu0 0.0
        %3860 = vmatprep.subr.mxu0 0.0
        %3861 = vmatpush1.msra.mxu0 0.0
        %3862 = vmatprep.subr.mxu0 0.0
        %3863 = vmatpush1.msra.mxu0 0.0
        %3864 = vmatprep.subr.mxu0 0.0
        %3865 = vmatpush1.msra.mxu0 0.0
        %3866 = vmatprep.subr.mxu0 0.0
        %3867 = vmatpush1.msra.mxu0 0.0
        %3868 = vmatprep.subr.mxu0 0.0
        %3869 = vmatpush1.msra.mxu0 0.0
        %3870 = vmatprep.subr.mxu0 0.0
        %3871 = vmatpush1.msra.mxu0 0.0
        %3872 = vmatprep.subr.mxu0 0.0
        %3873 = vmatpush1.msra.mxu0 0.0
        %3874 = vmatprep.subr.mxu0 0.0
        %3875 = vmatpush1.msra.mxu0 0.0
        %3876 = vmatprep.mubr.f32.mxu0 0.0
        %3877 = vmatmul.mubr.f32.gmra.mrb[0].mxu0 %v3773
        %v3878 = vpop.f32.mrb[0].mxu0
        %v3879 = vadd.f32 %v3810, %v3878
        %v3880 = vpop.f32.mrb[0].mxu0
        %3881 = vmatprep.mubr.f32.mxu0 0.0
        %3882 = vmatmul.mubr.f32.gmra.mrb[0].mxu0 %v3774
        %v3883 = vpop.f32.mrb[0].mxu0
        %v3884 = vadd.f32 %v3810, %v3883
        %v3885 = vpop.f32.mrb[0].mxu0
        %3886 = vmatprep.mubr.f32.mxu0 0.0
        %3887 = vmatmul.mubr.f32.gmra.mrb[0].mxu0 %v3775
        %v3888 = vpop.f32.mrb[0].mxu0
        %v3889 = vadd.f32 %v3810, %v3888
        %v3890 = vpop.f32.mrb[0].mxu0
        %3891 = vmatprep.mubr.f32.mxu0 0.0
        %3892 = vmatmul.mubr.f32.gmra.mrb[0].mxu0 %v3776
        %v3893 = vpop.f32.mrb[0].mxu0
        %v3894 = vadd.f32 %v3810, %v3893
        %v3895 = vpop.f32.mrb[0].mxu0
        %3896 = vmatprep.mubr.f32.mxu0 0.0
        %3897 = vmatmul.mubr.f32.gmra.mrb[0].mxu0 %v3777
        %v3898 = vpop.f32.mrb[0].mxu0
        %v3899 = vadd.f32 %v3810, %v3898
        %v3900 = vpop.f32.mrb[0].mxu0
        %3901 = vmatprep.mubr.f32.mxu0 0.0
        %3902 = vmatmul.mubr.f32.gmra.mrb[0].mxu0 %v3778
        %v3903 = vpop.f32.mrb[0].mxu0
        %v3904 = vadd.f32 %v3810, %v3903
        %v3905 = vpop.f32.mrb[0].mxu0
        %3906 = vmatprep.mubr.f32.mxu0 0.0
        %3907 = vmatmul.mubr.f32.gmra.mrb[0].mxu0 %v3779
        %v3908 = vpop.f32.mrb[0].mxu0
        %v3909 = vadd.f32 %v3810, %v3908
        %v3910 = vpop.f32.mrb[0].mxu0
        %3911 = vmatprep.mubr.f32.mxu0 0.0
        %3912 = vmatmul.mubr.f32.gmra.mrb[0].mxu0 %v3780
        %v3913 = vpop.f32.mrb[0].mxu0
        %v3914 = vadd.f32 %v3810, %v3913
        %v3915 = vpop.f32.mrb[0].mxu0
        %3916 = vmatprep.mubr.f32.mxu0 0.0
        %3917 = vmatmul.mubr.f32.gmra.mrb[0].mxu0 %v3781
        %v3918 = vpop.f32.mrb[0].mxu0
        %v3919 = vadd.f32 %v3810, %v3918
        %v3920 = vpop.f32.mrb[0].mxu0
        %3921 = vmatprep.mubr.f32.mxu0 0.0
        %3922 = vmatmul.mubr.f32.gmra.mrb[0].mxu0 %v3782
        %v3923 = vpop.f32.mrb[0].mxu0
        %v3924 = vadd.f32 %v3810, %v3923
        %v3925 = vpop.f32.mrb[0].mxu0
        %3926 = vmatprep.mubr.f32.mxu0 0.0
        %3927 = vmatmul.mubr.f32.gmra.mrb[0].mxu0 %v3783
        %v3928 = vpop.f32.mrb[0].mxu0
        %v3929 = vadd.f32 %v3810, %v3928
        %v3930 = vpop.f32.mrb[0].mxu0
        %3931 = vmatprep.mubr.f32.mxu0 0.0
        %3932 = vmatmul.mubr.f32.gmra.mrb[0].mxu0 %v3784
        %v3933 = vpop.f32.mrb[0].mxu0
        %v3934 = vadd.f32 %v3810, %v3933
        %v3935 = vpop.f32.mrb[0].mxu0
        %3936 = vmatprep.mubr.f32.mxu0 0.0
        %3937 = vmatmul.mubr.f32.gmra.mrb[0].mxu0 %v3785
        %v3938 = vpop.f32.mrb[0].mxu0
        %v3939 = vadd.f32 %v3810, %v3938
        %v3940 = vpop.f32.mrb[0].mxu0
        %3941 = vmatprep.mubr.f32.mxu0 0.0
        %3942 = vmatmul.mubr.f32.gmra.mrb[0].mxu0 %v3786
        %v3943 = vpop.f32.mrb[0].mxu0
        %v3944 = vadd.f32 %v3810, %v3943
        %v3945 = vpop.f32.mrb[0].mxu0
        %3946 = vmatprep.mubr.f32.mxu0 0.0
        %3947 = vmatmul.mubr.f32.gmra.mrb[0].mxu0 %v3787
        %v3948 = vpop.f32.mrb[0].mxu0
        %v3949 = vadd.f32 %v3810, %v3948
        %v3950 = vpop.f32.mrb[0].mxu0
        %3951 = vmatprep.mubr.f32.mxu0 0.0
        %3952 = vmatmul.mubr.f32.gmra.mrb[0].mxu0 %v3788
        %v3953 = vpop.f32.mrb[0].mxu0
        %v3954 = vadd.f32 %v3810, %v3953
        %v3955 = vpop.f32.mrb[0].mxu0
        %3956 = vdwg.mxu0
        %v3957 = vmul.f32 %v3879, 0.25
        %v3958 = vmul.f32 %v3884, 0.25
        %v3959 = vmul.f32 %v3889, 0.25
        %v3960 = vmul.f32 %v3894, 0.25
        %v3961 = vmul.f32 %v3899, 0.25
        %v3962 = vmul.f32 %v3904, 0.25
        %v3963 = vmul.f32 %v3909, 0.25
        %v3964 = vmul.f32 %v3914, 0.25
        %v3965 = vmul.f32 %v3919, 0.25
        %v3966 = vmul.f32 %v3924, 0.25
        %v3967 = vmul.f32 %v3929, 0.25
        %v3968 = vmul.f32 %v3934, 0.25
        %v3969 = vmul.f32 %v3939, 0.25
        %v3970 = vmul.f32 %v3944, 0.25
        %v3971 = vmul.f32 %v3949, 0.25
        %v3972 = vmul.f32 %v3954, 0.25
        %3973 = vst [vmem:[%s349] sm:$0xff] %v3957
        %3974 = vst [vmem:[%s349 + $0x8] sm:$0xff] %v3958
        %3975 = vst [vmem:[%s349 + $0x10] sm:$0xff] %v3959
        %3976 = vst [vmem:[%s349 + $0x18] sm:$0xff] %v3960
        %3977 = vst [vmem:[%s349 + $0x20] sm:$0xff] %v3961
        %3978 = vst [vmem:[%s349 + $0x28] sm:$0xff] %v3962
        %3979 = vst [vmem:[%s349 + $0x30] sm:$0xff] %v3963
        %3980 = vst [vmem:[%s349 + $0x38] sm:$0xff] %v3964
        %3981 = vst [vmem:[%s349 + $0x40] sm:$0xff] %v3965
        %3982 = vst [vmem:[%s349 + $0x48] sm:$0xff] %v3966
        %3983 = vst [vmem:[%s349 + $0x50] sm:$0xff] %v3967
        %3984 = vst [vmem:[%s349 + $0x58] sm:$0xff] %v3968
        %3985 = vst [vmem:[%s349 + $0x60] sm:$0xff] %v3969
        %3986 = vst [vmem:[%s349 + $0x68] sm:$0xff] %v3970
        %3987 = vst [vmem:[%s349 + $0x70] sm:$0xff] %v3971
        %3988 = vst [vmem:[%s349 + $0x78] sm:$0xff] %v3972
        %s3989 = sand.u32 %s186, 1
        %s3990 = scalar_lea.sflag [#allocation5], %s3989
        %s3991 = sand.u32 %s186, 1
        %s3992 = smul.addr %s3991, 128
        %s3993 = scalar_lea.vmem [#allocation12], %s3992
        // Predicated region
        $region69: #{tpu_custom_call.1} parent=47 // pred_check
          %p3994 = pneg %p196
        $region70: #{tpu_custom_call.1} parent=47 // pred_check_branch
          %3996 = sbr.rel (%p3994) target = $region72
        $region71: #{tpu_custom_call.1} parent=47 // pred_region
          %s3997 = smul.u32 16, %s26
          %s3999 = ssub.s32 2048, 2048
          %4000 = vsyncadd %s3990, %s3999
          %s4001 = smul.addr %s3997, 128
          %s4002 = scalar_lea.hbm %s7, %s4001
          %s4003 = sshll.u32 %s3993, 4
          %s4004 = int_to_ptr.vmem [resolvable:$true] %s4003
          %4009 = dma.vmem_to_hbm [thread:$0]  %s4004, 2048, %s4002, %s3990, 128, 128, 8
        $region72: #{tpu_custom_call.1} parent=47 // pred_fallthru
          _
      $region48: #{tpu_custom_call.1} parent=5 // pred_fallthru
        _
      %p4010 = scmp.le.s32.totalorder 2, %s21
      // Predicated region
      $region73: #{tpu_custom_call.1} parent=5 // pred_check
        %p4011 = pneg %p4010
      $region74: #{tpu_custom_call.1} parent=5 // pred_check_branch
        %4013 = sbr.rel (%p4011) target = $region76
      $region75: #{tpu_custom_call.1} parent=5 // pred_region
        %s4014 = ssub.s32 %s21, 2
        // Predicated region
        $region77: #{tpu_custom_call.1} parent=75 // pred_check
          %p4015 = pneg %p202
        $region78: #{tpu_custom_call.1} parent=75 // pred_check_branch
          %4017 = sbr.rel (%p4015) target = $region80
        $region79: #{tpu_custom_call.1} parent=75 // pred_region
          %s4018 = sand.u32 %s187, 1
          %s4019 = scalar_lea.sflag [#allocation5], %s4018
          %s4020 = sand.u32 %s187, 1
          %s4021 = smul.addr %s4020, 128
          %s4022 = scalar_lea.vmem [#allocation12], %s4021
          %4023 = dma.done %s4019, 2048
        $region80: #{tpu_custom_call.1} parent=75 // pred_fallthru
          _
      $region76: #{tpu_custom_call.1} parent=5 // pred_fallthru
        _
    $region6: #{tpu_custom_call.1} parent=1 // loop_footer
      %s25 = sadd.s32 1, %s21
    $region7: #{tpu_custom_call.1} parent=1 // loop_footer_branch
      %20 = sbr.rel target = $region3
    $region8: #{tpu_custom_call.1} parent=1 // loop_exit
      _
    %4024 = vsyncpa [#allocation4], 1
    %s4025 = scalar_lea.sflag [#allocation4], 1
    %4026 = vsyncpa %s4025, 1
    %4027 = vsyncpa [#allocation7], 1
    %4028 = vsyncpa [#allocation10], 1
    %4029 = vsyncpa [#allocation5], 1
    %s4030 = scalar_lea.sflag [#allocation5], 1
    %4031 = vsyncpa %s4030, 1

</llo_original>
